<compile_context>
chip_gen: v5e
topology: v5e:2x2
jax: 0.10.0
libtpu: 0.0.40
codegen_flags: <defaults>
</compile_context>

<pallas_src>
import math

import jax
import jax.numpy as jnp
from jax.experimental import pallas as pl
from jax.experimental.pallas import tpu as pltpu

# ---------------- model hyper-parameters (small, consistent with module) ----
B = 2            # batch
S = 8            # sequence length
E = 32           # embedding_dim
H = 4            # num_heads  (E % H == 0)
HD = E // H      # head_dim
FF = 64          # ff_dim
V = 128          # vocab_size
NUM_LAYERS = 2
MAX_LEN = 16
LN_EPS = 1e-5    # PyTorch nn.LayerNorm default
N_TOK = B * S    # flattened token rows


# ---------------------------- fused Pallas kernel ----------------------------
def fused_forward_kernel(tok_ref,                         # (N,1) int32  VMEM
                         emb_ref, pe_ref,                 # (V,E), (N,E)
                         wqkv_ref, wo_ref,                # (L,E,3E), (L,E,E)
                         ln1_g_ref, ln1_b_ref,            # (L,1,E) x2
                         ln3_g_ref, ln3_b_ref,            # (L,1,E) x2
                         w1_ref, b1_ref,                  # (L,E,FF), (L,1,FF)
                         w2_ref, b2_ref,                  # (L,FF,E), (L,1,E)
                         wout_ref, bout_ref,              # (E,V), (1,V)
                         logits_ref):                     # out (N,V)
    f32 = jnp.float32

    # --- embedding lookup as one-hot matmul (MXU) + positional encoding -----
    tok = tok_ref[...]                                            # (N, 1)
    vocab_iota = jax.lax.broadcasted_iota(jnp.int32, (N_TOK, V), 1)
    one_hot = (vocab_iota == tok).astype(f32)                     # (N, V)
    x = jnp.dot(one_hot, emb_ref[...],
                preferred_element_type=f32) + pe_ref[...]         # (N, E)
    # dropout (PositionalEncoding / model dropout) -> identity in eval.

    def layer_norm(y, gamma, beta):
        # one-pass biased variance: E[x^2] - mean^2 (single extra reduction)
        mean = jnp.mean(y, axis=-1, keepdims=True)
        var = jnp.mean(y * y, axis=-1, keepdims=True) - mean * mean
        return (y - mean) * jax.lax.rsqrt(var + LN_EPS) * gamma + beta

    for li in range(NUM_LAYERS):
        # --- self-attention: fused QKV projection (W_q pre-scaled by 1/sqrt(hd))
        qkv = jnp.dot(x, wqkv_ref[li], preferred_element_type=f32)  # (N, 3E)
        per_batch = []
        for b in range(B):                    # static unroll, B = 2
            blk = qkv[b * S:(b + 1) * S]                              # (S, 3E)
            q = blk[:, 0:E].reshape(S, H, HD).transpose(1, 0, 2)      # (H,S,hd)
            k = blk[:, E:2 * E].reshape(S, H, HD).transpose(1, 0, 2)
            v = blk[:, 2 * E:3 * E].reshape(S, H, HD).transpose(1, 0, 2)
            scores = jnp.einsum('hqd,hkd->hqk', q, k,
                                preferred_element_type=f32)           # (H,S,S)
            probs = jax.nn.softmax(scores, axis=-1)  # mask is None -> no mask
            attn = jnp.einsum('hqk,hkd->hqd', probs, v,
                              preferred_element_type=f32)             # (H,S,hd)
            per_batch.append(attn.transpose(1, 0, 2).reshape(S, E))   # concat heads
        concat = jnp.concatenate(per_batch, axis=0)                   # (N, E)
        attn_out = jnp.dot(concat, wo_ref[li], preferred_element_type=f32)

        x = layer_norm(attn_out + x, ln1_g_ref[li], ln1_b_ref[li])    # norm1
        # encoder_outputs is None -> cross-attention / norm2 branch skipped.

        # --- position-wise FFN: Linear -> ReLU -> Linear (dropout = identity)
        h = jnp.dot(x, w1_ref[li], preferred_element_type=f32) + b1_ref[li]
        h = jnp.maximum(h, 0.0)
        ff_out = jnp.dot(h, w2_ref[li], preferred_element_type=f32) + b2_ref[li]
        x = layer_norm(ff_out + x, ln3_g_ref[li], ln3_b_ref[li])      # norm3

    # --- final vocab projection: only HBM store, lane-dense (last dim = 128) --
    logits_ref[...] = (jnp.dot(x, wout_ref[...], preferred_element_type=f32)
                       + bout_ref[...])


# ---------------------------- pallas_call wrapper ----------------------------
def gpt2_forward(tokens, p):
    tok = tokens.reshape(N_TOK, 1).astype(jnp.int32)
    vmem = pl.BlockSpec(memory_space=pltpu.MemorySpace.VMEM)  # whole array in VMEM
    # Grid-less single-step call: everything resident, one launch, one HBM store.
    # (v7x note: at these sizes the kernel is launch-overhead bound, so
    #  core-parallel sharding across its 2 TensorCores is intentionally skipped.)
    logits = pl.pallas_call(
        fused_forward_kernel,
        out_shape=jax.ShapeDtypeStruct((N_TOK, V), jnp.float32),
        in_specs=[vmem] * 15,
        out_specs=vmem,
    )(tok, p["emb"], p["pe_flat"], p["wqkv"], p["wo"],
      p["ln1_g"], p["ln1_b"], p["ln3_g"], p["ln3_b"],
      p["w1"], p["b1"], p["w2"], p["b2"], p["w_out"], p["b_out"])
    return logits.reshape(B, S, V)


# ---------------------------- parameters -------------------------------------
def positional_encoding(max_len, dim):
    position = jnp.arange(max_len, dtype=jnp.float32)[:, None]
    div_term = jnp.exp(jnp.arange(0, dim, 2, dtype=jnp.float32)
                       * -(jnp.log(10000.0) / dim))
    pe = jnp.zeros((max_len, dim), jnp.float32)
    pe = pe.at[:, 0::2].set(jnp.sin(position * div_term))
    pe = pe.at[:, 1::2].set(jnp.cos(position * div_term))
    return pe


def init_params(key):
    """Packed parameters: per-layer weights stacked along a leading L axis,
    Linear weights pre-transposed to [in, out], W_q pre-scaled by 1/sqrt(hd)."""
    def nrm(k, shape, scale=0.02):
        return jax.random.normal(k, shape, dtype=jnp.float32) * scale

    keys = jax.random.split(key, 2 + NUM_LAYERS)
    emb = nrm(keys[0], (V, E), 1.0)                 # nn.Embedding ~ N(0,1)
    w_out = nrm(keys[1], (E, V))                    # final Linear (transposed)
    b_out = jnp.zeros((1, V), jnp.float32)

    inv_scale = 1.0 / math.sqrt(HD)                 # folds scores / sqrt(hd)
    wqkv, wo, w1, b1, w2, b2 = [], [], [], [], [], []
    ln1_g, ln1_b, ln3_g, ln3_b = [], [], [], []
    for li in range(NUM_LAYERS):
        lk = jax.random.split(keys[2 + li], 6)
        wq = nrm(lk[0], (E, E)) * inv_scale         # pre-scaled Q projection
        wk = nrm(lk[1], (E, E))
        wv = nrm(lk[2], (E, E))
        wqkv.append(jnp.concatenate([wq, wk, wv], axis=1))        # (E, 3E)
        wo.append(nrm(lk[3], (E, E)))
        w1.append(nrm(lk[4], (E, FF)))
        b1.append(jnp.zeros((1, FF), jnp.float32))
        w2.append(nrm(lk[5], (FF, E)))
        b2.append(jnp.zeros((1, E), jnp.float32))
        ln1_g.append(jnp.ones((1, E), jnp.float32))
        ln1_b.append(jnp.zeros((1, E), jnp.float32))
        ln3_g.append(jnp.ones((1, E), jnp.float32))
        ln3_b.append(jnp.zeros((1, E), jnp.float32))

    stack = lambda xs: jnp.stack(xs, axis=0)
    pe = positional_encoding(MAX_LEN, E)
    return {
        "emb": emb,
        "pe_flat": jnp.tile(pe[:S], (B, 1)),        # (B*S, E), row r -> pe[r % S]
        "wqkv": stack(wqkv), "wo": stack(wo),
        "ln1_g": stack(ln1_g), "ln1_b": stack(ln1_b),
        "ln3_g": stack(ln3_g), "ln3_b": stack(ln3_b),
        "w1": stack(w1), "b1": stack(b1),
        "w2": stack(w2), "b2": stack(b2),
        "w_out": w_out, "b_out": b_out,
    }


# ---------------------------- main --------------------------------------------
if __name__ == "__main__":
    key = jax.random.PRNGKey(0)
    pkey, tkey = jax.random.split(key)
    params = init_params(pkey)
    tokens = jax.random.randint(tkey, (B, S), 0, V, dtype=jnp.int32)

    logits = jax.jit(gpt2_forward)(tokens, params)
    jax.block_until_ready(logits)
    assert logits.shape == (B, S, V) and logits.dtype == jnp.float32
    assert bool(jnp.all(jnp.isfinite(logits)))
    print("KERNEL_OK")
</pallas_src>

<mosaic_0001>
module attributes {stable_mosaic.version = 11 : i64} {
  func.func @fused_forward_kernel(%arg0: memref<16x1xi32, #tpu.memory_space<vmem>>, %arg1: memref<128x32xf32, #tpu.memory_space<vmem>>, %arg2: memref<16x32xf32, #tpu.memory_space<vmem>>, %arg3: memref<2x32x96xf32, #tpu.memory_space<vmem>>, %arg4: memref<2x32x32xf32, #tpu.memory_space<vmem>>, %arg5: memref<2x1x32xf32, #tpu.memory_space<vmem>>, %arg6: memref<2x1x32xf32, #tpu.memory_space<vmem>>, %arg7: memref<2x1x32xf32, #tpu.memory_space<vmem>>, %arg8: memref<2x1x32xf32, #tpu.memory_space<vmem>>, %arg9: memref<2x32x64xf32, #tpu.memory_space<vmem>>, %arg10: memref<2x1x64xf32, #tpu.memory_space<vmem>>, %arg11: memref<2x64x32xf32, #tpu.memory_space<vmem>>, %arg12: memref<2x1x32xf32, #tpu.memory_space<vmem>>, %arg13: memref<32x128xf32, #tpu.memory_space<vmem>>, %arg14: memref<1x128xf32, #tpu.memory_space<vmem>>, %arg15: memref<16x128xf32, #tpu.memory_space<vmem>>) attributes {dimension_semantics = [], scalar_prefetch = 0 : i64, scratch_operands = 0 : i64, tpu.core_type = #tpu.core_type<tc>} {
    %c0 = arith.constant 0 : index
    %c0_0 = arith.constant 0 : index
    %0 = vector.load %arg0[%c0, %c0_0] : memref<16x1xi32, #tpu.memory_space<vmem>>, vector<16x1xi32>
    %1 = tpu.iota {dimensions = array<i32: 1>} : vector<16x128xi32>
    %2 = vector.broadcast %0 : vector<16x1xi32> to vector<16x128xi32>
    %3 = arith.cmpi eq, %1, %2 : vector<16x128xi32>
    %4 = arith.extui %3 : vector<16x128xi1> to vector<16x128xi32>
    %5 = arith.sitofp %4 : vector<16x128xi32> to vector<16x128xf32>
    %c0_1 = arith.constant 0 : index
    %c0_2 = arith.constant 0 : index
    %6 = vector.load %arg1[%c0_1, %c0_2] : memref<128x32xf32, #tpu.memory_space<vmem>>, vector<128x32xf32>
    %cst = arith.constant dense<0.000000e+00> : vector<16x32xf32>
    %7 = tpu.matmul %5, %6, %cst {dimension_numbers = #tpu.dot_dimension_numbers<[1], [0], [0], [1], [0, 0, 1, 1], [], []>} : vector<16x128xf32>, vector<128x32xf32>, vector<16x32xf32> -> vector<16x32xf32>
    %c0_3 = arith.constant 0 : index
    %c0_4 = arith.constant 0 : index
    %8 = vector.load %arg2[%c0_3, %c0_4] : memref<16x32xf32, #tpu.memory_space<vmem>>, vector<16x32xf32>
    %9 = arith.addf %7, %8 : vector<16x32xf32>
    %c0_5 = arith.constant 0 : index
    %c0_6 = arith.constant 0 : index
    %c0_7 = arith.constant 0 : index
    %10 = vector.load %arg3[%c0_5, %c0_6, %c0_7] : memref<2x32x96xf32, #tpu.memory_space<vmem>>, vector<1x32x96xf32>
    %11 = vector.shape_cast %10 : vector<1x32x96xf32> to vector<32x96xf32>
    %cst_8 = arith.constant dense<0.000000e+00> : vector<16x96xf32>
    %12 = tpu.matmul %9, %11, %cst_8 {dimension_numbers = #tpu.dot_dimension_numbers<[1], [0], [0], [1], [0, 0, 1, 1], [], []>} : vector<16x32xf32>, vector<32x96xf32>, vector<16x96xf32> -> vector<16x96xf32>
    %13 = vector.extract_strided_slice %12 {offsets = [0, 0], sizes = [8, 96], strides = [1, 1]} : vector<16x96xf32> to vector<8x96xf32>
    %14 = vector.extract_strided_slice %13 {offsets = [0, 0], sizes = [8, 32], strides = [1, 1]} : vector<8x96xf32> to vector<8x32xf32>
    %15 = vector.shape_cast %14 : vector<8x32xf32> to vector<8x4x8xf32>
    %16 = tpu.transpose %15, [1, 0, 2] : vector<8x4x8xf32> -> vector<4x8x8xf32>
    %17 = vector.extract_strided_slice %13 {offsets = [0, 32], sizes = [8, 32], strides = [1, 1]} : vector<8x96xf32> to vector<8x32xf32>
    %18 = vector.shape_cast %17 : vector<8x32xf32> to vector<8x4x8xf32>
    %19 = tpu.transpose %18, [1, 0, 2] : vector<8x4x8xf32> -> vector<4x8x8xf32>
    %20 = vector.extract_strided_slice %13 {offsets = [0, 64], sizes = [8, 32], strides = [1, 1]} : vector<8x96xf32> to vector<8x32xf32>
    %21 = vector.shape_cast %20 : vector<8x32xf32> to vector<8x4x8xf32>
    %22 = tpu.transpose %21, [1, 0, 2] : vector<8x4x8xf32> -> vector<4x8x8xf32>
    "tpu.trace_start"() <{level = 10 : i32, message = "hqd,hkd->hqk"}> : () -> ()
    %cst_9 = arith.constant dense<0.000000e+00> : vector<4x8x8xf32>
    %23 = tpu.matmul %16, %19, %cst_9 {dimension_numbers = #tpu.dot_dimension_numbers<[2], [2], [1], [1], [0, 0, 0, 1, 1, 1], [0], [0]>} : vector<4x8x8xf32>, vector<4x8x8xf32>, vector<4x8x8xf32> -> vector<4x8x8xf32>
    "tpu.trace_stop"() : () -> ()
    %cst_10 = arith.constant dense<0xFF800000> : vector<4x8xf32>
    %24 = vector.multi_reduction <maximumf>, %23, %cst_10 [2] : vector<4x8x8xf32> to vector<4x8xf32>
    %cst_11 = arith.constant 0xFF800000 : f32
    %25 = vector.broadcast %cst_11 : f32 to vector<4x8xf32>
    %26 = arith.maximumf %25, %24 : vector<4x8xf32>
    %27 = vector.shape_cast %26 : vector<4x8xf32> to vector<4x8x1xf32>
    %28 = vector.broadcast %27 : vector<4x8x1xf32> to vector<4x8x8xf32>
    %29 = arith.subf %23, %28 : vector<4x8x8xf32>
    %30 = math.exp %29 : vector<4x8x8xf32>
    %cst_12 = arith.constant dense<0.000000e+00> : vector<4x8xf32>
    %31 = vector.multi_reduction <add>, %30, %cst_12 [2] : vector<4x8x8xf32> to vector<4x8xf32>
    %32 = vector.shape_cast %31 : vector<4x8xf32> to vector<4x8x1xf32>
    %33 = vector.broadcast %32 : vector<4x8x1xf32> to vector<4x8x8xf32>
    %34 = arith.divf %30, %33 : vector<4x8x8xf32>
    "tpu.trace_start"() <{level = 10 : i32, message = "hqk,hkd->hqd"}> : () -> ()
    %cst_13 = arith.constant dense<0.000000e+00> : vector<4x8x8xf32>
    %35 = tpu.matmul %34, %22, %cst_13 {dimension_numbers = #tpu.dot_dimension_numbers<[2], [1], [1], [2], [0, 0, 0, 1, 1, 2], [0], [0]>} : vector<4x8x8xf32>, vector<4x8x8xf32>, vector<4x8x8xf32> -> vector<4x8x8xf32>
    "tpu.trace_stop"() : () -> ()
    %36 = tpu.transpose %35, [1, 0, 2] : vector<4x8x8xf32> -> vector<8x4x8xf32>
    %37 = vector.shape_cast %36 : vector<8x4x8xf32> to vector<8x32xf32>
    %38 = vector.extract_strided_slice %12 {offsets = [8, 0], sizes = [8, 96], strides = [1, 1]} : vector<16x96xf32> to vector<8x96xf32>
    %39 = vector.extract_strided_slice %38 {offsets = [0, 0], sizes = [8, 32], strides = [1, 1]} : vector<8x96xf32> to vector<8x32xf32>
    %40 = vector.shape_cast %39 : vector<8x32xf32> to vector<8x4x8xf32>
    %41 = tpu.transpose %40, [1, 0, 2] : vector<8x4x8xf32> -> vector<4x8x8xf32>
    %42 = vector.extract_strided_slice %38 {offsets = [0, 32], sizes = [8, 32], strides = [1, 1]} : vector<8x96xf32> to vector<8x32xf32>
    %43 = vector.shape_cast %42 : vector<8x32xf32> to vector<8x4x8xf32>
    %44 = tpu.transpose %43, [1, 0, 2] : vector<8x4x8xf32> -> vector<4x8x8xf32>
    %45 = vector.extract_strided_slice %38 {offsets = [0, 64], sizes = [8, 32], strides = [1, 1]} : vector<8x96xf32> to vector<8x32xf32>
    %46 = vector.shape_cast %45 : vector<8x32xf32> to vector<8x4x8xf32>
    %47 = tpu.transpose %46, [1, 0, 2] : vector<8x4x8xf32> -> vector<4x8x8xf32>
    "tpu.trace_start"() <{level = 10 : i32, message = "hqd,hkd->hqk"}> : () -> ()
    %cst_14 = arith.constant dense<0.000000e+00> : vector<4x8x8xf32>
    %48 = tpu.matmul %41, %44, %cst_14 {dimension_numbers = #tpu.dot_dimension_numbers<[2], [2], [1], [1], [0, 0, 0, 1, 1, 1], [0], [0]>} : vector<4x8x8xf32>, vector<4x8x8xf32>, vector<4x8x8xf32> -> vector<4x8x8xf32>
    "tpu.trace_stop"() : () -> ()
    %cst_15 = arith.constant dense<0xFF800000> : vector<4x8xf32>
    %49 = vector.multi_reduction <maximumf>, %48, %cst_15 [2] : vector<4x8x8xf32> to vector<4x8xf32>
    %cst_16 = arith.constant 0xFF800000 : f32
    %50 = vector.broadcast %cst_16 : f32 to vector<4x8xf32>
    %51 = arith.maximumf %50, %49 : vector<4x8xf32>
    %52 = vector.shape_cast %51 : vector<4x8xf32> to vector<4x8x1xf32>
    %53 = vector.broadcast %52 : vector<4x8x1xf32> to vector<4x8x8xf32>
    %54 = arith.subf %48, %53 : vector<4x8x8xf32>
    %55 = math.exp %54 : vector<4x8x8xf32>
    %cst_17 = arith.constant dense<0.000000e+00> : vector<4x8xf32>
    %56 = vector.multi_reduction <add>, %55, %cst_17 [2] : vector<4x8x8xf32> to vector<4x8xf32>
    %57 = vector.shape_cast %56 : vector<4x8xf32> to vector<4x8x1xf32>
    %58 = vector.broadcast %57 : vector<4x8x1xf32> to vector<4x8x8xf32>
    %59 = arith.divf %55, %58 : vector<4x8x8xf32>
    "tpu.trace_start"() <{level = 10 : i32, message = "hqk,hkd->hqd"}> : () -> ()
    %cst_18 = arith.constant dense<0.000000e+00> : vector<4x8x8xf32>
    %60 = tpu.matmul %59, %47, %cst_18 {dimension_numbers = #tpu.dot_dimension_numbers<[2], [1], [1], [2], [0, 0, 0, 1, 1, 2], [0], [0]>} : vector<4x8x8xf32>, vector<4x8x8xf32>, vector<4x8x8xf32> -> vector<4x8x8xf32>
    "tpu.trace_stop"() : () -> ()
    %61 = tpu.transpose %60, [1, 0, 2] : vector<4x8x8xf32> -> vector<8x4x8xf32>
    %62 = vector.shape_cast %61 : vector<8x4x8xf32> to vector<8x32xf32>
    %63 = tpu.concatenate %37, %62 in 0 : vector<8x32xf32>, vector<8x32xf32> -> vector<16x32xf32>
    %c0_19 = arith.constant 0 : index
    %c0_20 = arith.constant 0 : index
    %c0_21 = arith.constant 0 : index
    %64 = vector.load %arg4[%c0_19, %c0_20, %c0_21] : memref<2x32x32xf32, #tpu.memory_space<vmem>>, vector<1x32x32xf32>
    %65 = vector.shape_cast %64 : vector<1x32x32xf32> to vector<32x32xf32>
    %cst_22 = arith.constant dense<0.000000e+00> : vector<16x32xf32>
    %66 = tpu.matmul %63, %65, %cst_22 {dimension_numbers = #tpu.dot_dimension_numbers<[1], [0], [0], [1], [0, 0, 1, 1], [], []>} : vector<16x32xf32>, vector<32x32xf32>, vector<16x32xf32> -> vector<16x32xf32>
    %67 = arith.addf %66, %9 : vector<16x32xf32>
    %c0_23 = arith.constant 0 : index
    %c0_24 = arith.constant 0 : index
    %c0_25 = arith.constant 0 : index
    %68 = vector.load %arg5[%c0_23, %c0_24, %c0_25] : memref<2x1x32xf32, #tpu.memory_space<vmem>>, vector<1x1x32xf32>
    %69 = vector.shape_cast %68 : vector<1x1x32xf32> to vector<1x32xf32>
    %c0_26 = arith.constant 0 : index
    %c0_27 = arith.constant 0 : index
    %c0_28 = arith.constant 0 : index
    %70 = vector.load %arg6[%c0_26, %c0_27, %c0_28] : memref<2x1x32xf32, #tpu.memory_space<vmem>>, vector<1x1x32xf32>
    %71 = vector.shape_cast %70 : vector<1x1x32xf32> to vector<1x32xf32>
    %cst_29 = arith.constant dense<0.000000e+00> : vector<16xf32>
    %72 = vector.multi_reduction <add>, %67, %cst_29 [1] : vector<16x32xf32> to vector<16xf32>
    %73 = vector.shape_cast %72 : vector<16xf32> to vector<16x1xf32>
    %cst_30 = arith.constant 3.200000e+01 : f32
    %74 = vector.broadcast %cst_30 : f32 to vector<16x1xf32>
    %75 = arith.divf %73, %74 : vector<16x1xf32>
    %76 = arith.mulf %67, %67 : vector<16x32xf32>
    %cst_31 = arith.constant dense<0.000000e+00> : vector<16xf32>
    %77 = vector.multi_reduction <add>, %76, %cst_31 [1] : vector<16x32xf32> to vector<16xf32>
    %78 = vector.shape_cast %77 : vector<16xf32> to vector<16x1xf32>
    %cst_32 = arith.constant 3.200000e+01 : f32
    %79 = vector.broadcast %cst_32 : f32 to vector<16x1xf32>
    %80 = arith.divf %78, %79 : vector<16x1xf32>
    %81 = arith.mulf %75, %75 : vector<16x1xf32>
    %82 = arith.subf %80, %81 : vector<16x1xf32>
    %83 = vector.broadcast %75 : vector<16x1xf32> to vector<16x32xf32>
    %84 = arith.subf %67, %83 : vector<16x32xf32>
    %cst_33 = arith.constant 9.99999974E-6 : f32
    %85 = vector.broadcast %cst_33 : f32 to vector<16x1xf32>
    %86 = arith.addf %82, %85 : vector<16x1xf32>
    %87 = math.rsqrt %86 : vector<16x1xf32>
    %88 = vector.broadcast %87 : vector<16x1xf32> to vector<16x32xf32>
    %89 = arith.mulf %84, %88 : vector<16x32xf32>
    %90 = vector.broadcast %69 : vector<1x32xf32> to vector<16x32xf32>
    %91 = arith.mulf %89, %90 : vector<16x32xf32>
    %92 = vector.broadcast %71 : vector<1x32xf32> to vector<16x32xf32>
    %93 = arith.addf %91, %92 : vector<16x32xf32>
    %c0_34 = arith.constant 0 : index
    %c0_35 = arith.constant 0 : index
    %c0_36 = arith.constant 0 : index
    %94 = vector.load %arg9[%c0_34, %c0_35, %c0_36] : memref<2x32x64xf32, #tpu.memory_space<vmem>>, vector<1x32x64xf32>
    %95 = vector.shape_cast %94 : vector<1x32x64xf32> to vector<32x64xf32>
    %cst_37 = arith.constant dense<0.000000e+00> : vector<16x64xf32>
    %96 = tpu.matmul %93, %95, %cst_37 {dimension_numbers = #tpu.dot_dimension_numbers<[1], [0], [0], [1], [0, 0, 1, 1], [], []>} : vector<16x32xf32>, vector<32x64xf32>, vector<16x64xf32> -> vector<16x64xf32>
    %c0_38 = arith.constant 0 : index
    %c0_39 = arith.constant 0 : index
    %c0_40 = arith.constant 0 : index
    %97 = vector.load %arg10[%c0_38, %c0_39, %c0_40] : memref<2x1x64xf32, #tpu.memory_space<vmem>>, vector<1x1x64xf32>
    %98 = vector.shape_cast %97 : vector<1x1x64xf32> to vector<1x64xf32>
    %99 = vector.broadcast %98 : vector<1x64xf32> to vector<16x64xf32>
    %100 = arith.addf %96, %99 : vector<16x64xf32>
    %cst_41 = arith.constant 0.000000e+00 : f32
    %101 = vector.broadcast %cst_41 : f32 to vector<16x64xf32>
    %102 = arith.maximumf %100, %101 : vector<16x64xf32>
    %c0_42 = arith.constant 0 : index
    %c0_43 = arith.constant 0 : index
    %c0_44 = arith.constant 0 : index
    %103 = vector.load %arg11[%c0_42, %c0_43, %c0_44] : memref<2x64x32xf32, #tpu.memory_space<vmem>>, vector<1x64x32xf32>
    %104 = vector.shape_cast %103 : vector<1x64x32xf32> to vector<64x32xf32>
    %cst_45 = arith.constant dense<0.000000e+00> : vector<16x32xf32>
    %105 = tpu.matmul %102, %104, %cst_45 {dimension_numbers = #tpu.dot_dimension_numbers<[1], [0], [0], [1], [0, 0, 1, 1], [], []>} : vector<16x64xf32>, vector<64x32xf32>, vector<16x32xf32> -> vector<16x32xf32>
    %c0_46 = arith.constant 0 : index
    %c0_47 = arith.constant 0 : index
    %c0_48 = arith.constant 0 : index
    %106 = vector.load %arg12[%c0_46, %c0_47, %c0_48] : memref<2x1x32xf32, #tpu.memory_space<vmem>>, vector<1x1x32xf32>
    %107 = vector.shape_cast %106 : vector<1x1x32xf32> to vector<1x32xf32>
    %108 = vector.broadcast %107 : vector<1x32xf32> to vector<16x32xf32>
    %109 = arith.addf %105, %108 : vector<16x32xf32>
    %110 = arith.addf %109, %93 : vector<16x32xf32>
    %c0_49 = arith.constant 0 : index
    %c0_50 = arith.constant 0 : index
    %c0_51 = arith.constant 0 : index
    %111 = vector.load %arg7[%c0_49, %c0_50, %c0_51] : memref<2x1x32xf32, #tpu.memory_space<vmem>>, vector<1x1x32xf32>
    %112 = vector.shape_cast %111 : vector<1x1x32xf32> to vector<1x32xf32>
    %c0_52 = arith.constant 0 : index
    %c0_53 = arith.constant 0 : index
    %c0_54 = arith.constant 0 : index
    %113 = vector.load %arg8[%c0_52, %c0_53, %c0_54] : memref<2x1x32xf32, #tpu.memory_space<vmem>>, vector<1x1x32xf32>
    %114 = vector.shape_cast %113 : vector<1x1x32xf32> to vector<1x32xf32>
    %cst_55 = arith.constant dense<0.000000e+00> : vector<16xf32>
    %115 = vector.multi_reduction <add>, %110, %cst_55 [1] : vector<16x32xf32> to vector<16xf32>
    %116 = vector.shape_cast %115 : vector<16xf32> to vector<16x1xf32>
    %cst_56 = arith.constant 3.200000e+01 : f32
    %117 = vector.broadcast %cst_56 : f32 to vector<16x1xf32>
    %118 = arith.divf %116, %117 : vector<16x1xf32>
    %119 = arith.mulf %110, %110 : vector<16x32xf32>
    %cst_57 = arith.constant dense<0.000000e+00> : vector<16xf32>
    %120 = vector.multi_reduction <add>, %119, %cst_57 [1] : vector<16x32xf32> to vector<16xf32>
    %121 = vector.shape_cast %120 : vector<16xf32> to vector<16x1xf32>
    %cst_58 = arith.constant 3.200000e+01 : f32
    %122 = vector.broadcast %cst_58 : f32 to vector<16x1xf32>
    %123 = arith.divf %121, %122 : vector<16x1xf32>
    %124 = arith.mulf %118, %118 : vector<16x1xf32>
    %125 = arith.subf %123, %124 : vector<16x1xf32>
    %126 = vector.broadcast %118 : vector<16x1xf32> to vector<16x32xf32>
    %127 = arith.subf %110, %126 : vector<16x32xf32>
    %cst_59 = arith.constant 9.99999974E-6 : f32
    %128 = vector.broadcast %cst_59 : f32 to vector<16x1xf32>
    %129 = arith.addf %125, %128 : vector<16x1xf32>
    %130 = math.rsqrt %129 : vector<16x1xf32>
    %131 = vector.broadcast %130 : vector<16x1xf32> to vector<16x32xf32>
    %132 = arith.mulf %127, %131 : vector<16x32xf32>
    %133 = vector.broadcast %112 : vector<1x32xf32> to vector<16x32xf32>
    %134 = arith.mulf %132, %133 : vector<16x32xf32>
    %135 = vector.broadcast %114 : vector<1x32xf32> to vector<16x32xf32>
    %136 = arith.addf %134, %135 : vector<16x32xf32>
    %c1 = arith.constant 1 : index
    %c0_60 = arith.constant 0 : index
    %c0_61 = arith.constant 0 : index
    %137 = vector.load %arg3[%c1, %c0_60, %c0_61] : memref<2x32x96xf32, #tpu.memory_space<vmem>>, vector<1x32x96xf32>
    %138 = vector.shape_cast %137 : vector<1x32x96xf32> to vector<32x96xf32>
    %cst_62 = arith.constant dense<0.000000e+00> : vector<16x96xf32>
    %139 = tpu.matmul %136, %138, %cst_62 {dimension_numbers = #tpu.dot_dimension_numbers<[1], [0], [0], [1], [0, 0, 1, 1], [], []>} : vector<16x32xf32>, vector<32x96xf32>, vector<16x96xf32> -> vector<16x96xf32>
    %140 = vector.extract_strided_slice %139 {offsets = [0, 0], sizes = [8, 96], strides = [1, 1]} : vector<16x96xf32> to vector<8x96xf32>
    %141 = vector.extract_strided_slice %140 {offsets = [0, 0], sizes = [8, 32], strides = [1, 1]} : vector<8x96xf32> to vector<8x32xf32>
    %142 = vector.shape_cast %141 : vector<8x32xf32> to vector<8x4x8xf32>
    %143 = tpu.transpose %142, [1, 0, 2] : vector<8x4x8xf32> -> vector<4x8x8xf32>
    %144 = vector.extract_strided_slice %140 {offsets = [0, 32], sizes = [8, 32], strides = [1, 1]} : vector<8x96xf32> to vector<8x32xf32>
    %145 = vector.shape_cast %144 : vector<8x32xf32> to vector<8x4x8xf32>
    %146 = tpu.transpose %145, [1, 0, 2] : vector<8x4x8xf32> -> vector<4x8x8xf32>
    %147 = vector.extract_strided_slice %140 {offsets = [0, 64], sizes = [8, 32], strides = [1, 1]} : vector<8x96xf32> to vector<8x32xf32>
    %148 = vector.shape_cast %147 : vector<8x32xf32> to vector<8x4x8xf32>
    %149 = tpu.transpose %148, [1, 0, 2] : vector<8x4x8xf32> -> vector<4x8x8xf32>
    "tpu.trace_start"() <{level = 10 : i32, message = "hqd,hkd->hqk"}> : () -> ()
    %cst_63 = arith.constant dense<0.000000e+00> : vector<4x8x8xf32>
    %150 = tpu.matmul %143, %146, %cst_63 {dimension_numbers = #tpu.dot_dimension_numbers<[2], [2], [1], [1], [0, 0, 0, 1, 1, 1], [0], [0]>} : vector<4x8x8xf32>, vector<4x8x8xf32>, vector<4x8x8xf32> -> vector<4x8x8xf32>
    "tpu.trace_stop"() : () -> ()
    %cst_64 = arith.constant dense<0xFF800000> : vector<4x8xf32>
    %151 = vector.multi_reduction <maximumf>, %150, %cst_64 [2] : vector<4x8x8xf32> to vector<4x8xf32>
    %cst_65 = arith.constant 0xFF800000 : f32
    %152 = vector.broadcast %cst_65 : f32 to vector<4x8xf32>
    %153 = arith.maximumf %152, %151 : vector<4x8xf32>
    %154 = vector.shape_cast %153 : vector<4x8xf32> to vector<4x8x1xf32>
    %155 = vector.broadcast %154 : vector<4x8x1xf32> to vector<4x8x8xf32>
    %156 = arith.subf %150, %155 : vector<4x8x8xf32>
    %157 = math.exp %156 : vector<4x8x8xf32>
    %cst_66 = arith.constant dense<0.000000e+00> : vector<4x8xf32>
    %158 = vector.multi_reduction <add>, %157, %cst_66 [2] : vector<4x8x8xf32> to vector<4x8xf32>
    %159 = vector.shape_cast %158 : vector<4x8xf32> to vector<4x8x1xf32>
    %160 = vector.broadcast %159 : vector<4x8x1xf32> to vector<4x8x8xf32>
    %161 = arith.divf %157, %160 : vector<4x8x8xf32>
    "tpu.trace_start"() <{level = 10 : i32, message = "hqk,hkd->hqd"}> : () -> ()
    %cst_67 = arith.constant dense<0.000000e+00> : vector<4x8x8xf32>
    %162 = tpu.matmul %161, %149, %cst_67 {dimension_numbers = #tpu.dot_dimension_numbers<[2], [1], [1], [2], [0, 0, 0, 1, 1, 2], [0], [0]>} : vector<4x8x8xf32>, vector<4x8x8xf32>, vector<4x8x8xf32> -> vector<4x8x8xf32>
    "tpu.trace_stop"() : () -> ()
    %163 = tpu.transpose %162, [1, 0, 2] : vector<4x8x8xf32> -> vector<8x4x8xf32>
    %164 = vector.shape_cast %163 : vector<8x4x8xf32> to vector<8x32xf32>
    %165 = vector.extract_strided_slice %139 {offsets = [8, 0], sizes = [8, 96], strides = [1, 1]} : vector<16x96xf32> to vector<8x96xf32>
    %166 = vector.extract_strided_slice %165 {offsets = [0, 0], sizes = [8, 32], strides = [1, 1]} : vector<8x96xf32> to vector<8x32xf32>
    %167 = vector.shape_cast %166 : vector<8x32xf32> to vector<8x4x8xf32>
    %168 = tpu.transpose %167, [1, 0, 2] : vector<8x4x8xf32> -> vector<4x8x8xf32>
    %169 = vector.extract_strided_slice %165 {offsets = [0, 32], sizes = [8, 32], strides = [1, 1]} : vector<8x96xf32> to vector<8x32xf32>
    %170 = vector.shape_cast %169 : vector<8x32xf32> to vector<8x4x8xf32>
    %171 = tpu.transpose %170, [1, 0, 2] : vector<8x4x8xf32> -> vector<4x8x8xf32>
    %172 = vector.extract_strided_slice %165 {offsets = [0, 64], sizes = [8, 32], strides = [1, 1]} : vector<8x96xf32> to vector<8x32xf32>
    %173 = vector.shape_cast %172 : vector<8x32xf32> to vector<8x4x8xf32>
    %174 = tpu.transpose %173, [1, 0, 2] : vector<8x4x8xf32> -> vector<4x8x8xf32>
    "tpu.trace_start"() <{level = 10 : i32, message = "hqd,hkd->hqk"}> : () -> ()
    %cst_68 = arith.constant dense<0.000000e+00> : vector<4x8x8xf32>
    %175 = tpu.matmul %168, %171, %cst_68 {dimension_numbers = #tpu.dot_dimension_numbers<[2], [2], [1], [1], [0, 0, 0, 1, 1, 1], [0], [0]>} : vector<4x8x8xf32>, vector<4x8x8xf32>, vector<4x8x8xf32> -> vector<4x8x8xf32>
    "tpu.trace_stop"() : () -> ()
    %cst_69 = arith.constant dense<0xFF800000> : vector<4x8xf32>
    %176 = vector.multi_reduction <maximumf>, %175, %cst_69 [2] : vector<4x8x8xf32> to vector<4x8xf32>
    %cst_70 = arith.constant 0xFF800000 : f32
    %177 = vector.broadcast %cst_70 : f32 to vector<4x8xf32>
    %178 = arith.maximumf %177, %176 : vector<4x8xf32>
    %179 = vector.shape_cast %178 : vector<4x8xf32> to vector<4x8x1xf32>
    %180 = vector.broadcast %179 : vector<4x8x1xf32> to vector<4x8x8xf32>
    %181 = arith.subf %175, %180 : vector<4x8x8xf32>
    %182 = math.exp %181 : vector<4x8x8xf32>
    %cst_71 = arith.constant dense<0.000000e+00> : vector<4x8xf32>
    %183 = vector.multi_reduction <add>, %182, %cst_71 [2] : vector<4x8x8xf32> to vector<4x8xf32>
    %184 = vector.shape_cast %183 : vector<4x8xf32> to vector<4x8x1xf32>
    %185 = vector.broadcast %184 : vector<4x8x1xf32> to vector<4x8x8xf32>
    %186 = arith.divf %182, %185 : vector<4x8x8xf32>
    "tpu.trace_start"() <{level = 10 : i32, message = "hqk,hkd->hqd"}> : () -> ()
    %cst_72 = arith.constant dense<0.000000e+00> : vector<4x8x8xf32>
    %187 = tpu.matmul %186, %174, %cst_72 {dimension_numbers = #tpu.dot_dimension_numbers<[2], [1], [1], [2], [0, 0, 0, 1, 1, 2], [0], [0]>} : vector<4x8x8xf32>, vector<4x8x8xf32>, vector<4x8x8xf32> -> vector<4x8x8xf32>
    "tpu.trace_stop"() : () -> ()
    %188 = tpu.transpose %187, [1, 0, 2] : vector<4x8x8xf32> -> vector<8x4x8xf32>
    %189 = vector.shape_cast %188 : vector<8x4x8xf32> to vector<8x32xf32>
    %190 = tpu.concatenate %164, %189 in 0 : vector<8x32xf32>, vector<8x32xf32> -> vector<16x32xf32>
    %c1_73 = arith.constant 1 : index
    %c0_74 = arith.constant 0 : index
    %c0_75 = arith.constant 0 : index
    %191 = vector.load %arg4[%c1_73, %c0_74, %c0_75] : memref<2x32x32xf32, #tpu.memory_space<vmem>>, vector<1x32x32xf32>
    %192 = vector.shape_cast %191 : vector<1x32x32xf32> to vector<32x32xf32>
    %cst_76 = arith.constant dense<0.000000e+00> : vector<16x32xf32>
    %193 = tpu.matmul %190, %192, %cst_76 {dimension_numbers = #tpu.dot_dimension_numbers<[1], [0], [0], [1], [0, 0, 1, 1], [], []>} : vector<16x32xf32>, vector<32x32xf32>, vector<16x32xf32> -> vector<16x32xf32>
    %194 = arith.addf %193, %136 : vector<16x32xf32>
    %c1_77 = arith.constant 1 : index
    %c0_78 = arith.constant 0 : index
    %c0_79 = arith.constant 0 : index
    %195 = vector.load %arg5[%c1_77, %c0_78, %c0_79] : memref<2x1x32xf32, #tpu.memory_space<vmem>>, vector<1x1x32xf32>
    %196 = vector.shape_cast %195 : vector<1x1x32xf32> to vector<1x32xf32>
    %c1_80 = arith.constant 1 : index
    %c0_81 = arith.constant 0 : index
    %c0_82 = arith.constant 0 : index
    %197 = vector.load %arg6[%c1_80, %c0_81, %c0_82] : memref<2x1x32xf32, #tpu.memory_space<vmem>>, vector<1x1x32xf32>
    %198 = vector.shape_cast %197 : vector<1x1x32xf32> to vector<1x32xf32>
    %cst_83 = arith.constant dense<0.000000e+00> : vector<16xf32>
    %199 = vector.multi_reduction <add>, %194, %cst_83 [1] : vector<16x32xf32> to vector<16xf32>
    %200 = vector.shape_cast %199 : vector<16xf32> to vector<16x1xf32>
    %cst_84 = arith.constant 3.200000e+01 : f32
    %201 = vector.broadcast %cst_84 : f32 to vector<16x1xf32>
    %202 = arith.divf %200, %201 : vector<16x1xf32>
    %203 = arith.mulf %194, %194 : vector<16x32xf32>
    %cst_85 = arith.constant dense<0.000000e+00> : vector<16xf32>
    %204 = vector.multi_reduction <add>, %203, %cst_85 [1] : vector<16x32xf32> to vector<16xf32>
    %205 = vector.shape_cast %204 : vector<16xf32> to vector<16x1xf32>
    %cst_86 = arith.constant 3.200000e+01 : f32
    %206 = vector.broadcast %cst_86 : f32 to vector<16x1xf32>
    %207 = arith.divf %205, %206 : vector<16x1xf32>
    %208 = arith.mulf %202, %202 : vector<16x1xf32>
    %209 = arith.subf %207, %208 : vector<16x1xf32>
    %210 = vector.broadcast %202 : vector<16x1xf32> to vector<16x32xf32>
    %211 = arith.subf %194, %210 : vector<16x32xf32>
    %cst_87 = arith.constant 9.99999974E-6 : f32
    %212 = vector.broadcast %cst_87 : f32 to vector<16x1xf32>
    %213 = arith.addf %209, %212 : vector<16x1xf32>
    %214 = math.rsqrt %213 : vector<16x1xf32>
    %215 = vector.broadcast %214 : vector<16x1xf32> to vector<16x32xf32>
    %216 = arith.mulf %211, %215 : vector<16x32xf32>
    %217 = vector.broadcast %196 : vector<1x32xf32> to vector<16x32xf32>
    %218 = arith.mulf %216, %217 : vector<16x32xf32>
    %219 = vector.broadcast %198 : vector<1x32xf32> to vector<16x32xf32>
    %220 = arith.addf %218, %219 : vector<16x32xf32>
    %c1_88 = arith.constant 1 : index
    %c0_89 = arith.constant 0 : index
    %c0_90 = arith.constant 0 : index
    %221 = vector.load %arg9[%c1_88, %c0_89, %c0_90] : memref<2x32x64xf32, #tpu.memory_space<vmem>>, vector<1x32x64xf32>
    %222 = vector.shape_cast %221 : vector<1x32x64xf32> to vector<32x64xf32>
    %cst_91 = arith.constant dense<0.000000e+00> : vector<16x64xf32>
    %223 = tpu.matmul %220, %222, %cst_91 {dimension_numbers = #tpu.dot_dimension_numbers<[1], [0], [0], [1], [0, 0, 1, 1], [], []>} : vector<16x32xf32>, vector<32x64xf32>, vector<16x64xf32> -> vector<16x64xf32>
    %c1_92 = arith.constant 1 : index
    %c0_93 = arith.constant 0 : index
    %c0_94 = arith.constant 0 : index
    %224 = vector.load %arg10[%c1_92, %c0_93, %c0_94] : memref<2x1x64xf32, #tpu.memory_space<vmem>>, vector<1x1x64xf32>
    %225 = vector.shape_cast %224 : vector<1x1x64xf32> to vector<1x64xf32>
    %226 = vector.broadcast %225 : vector<1x64xf32> to vector<16x64xf32>
    %227 = arith.addf %223, %226 : vector<16x64xf32>
    %cst_95 = arith.constant 0.000000e+00 : f32
    %228 = vector.broadcast %cst_95 : f32 to vector<16x64xf32>
    %229 = arith.maximumf %227, %228 : vector<16x64xf32>
    %c1_96 = arith.constant 1 : index
    %c0_97 = arith.constant 0 : index
    %c0_98 = arith.constant 0 : index
    %230 = vector.load %arg11[%c1_96, %c0_97, %c0_98] : memref<2x64x32xf32, #tpu.memory_space<vmem>>, vector<1x64x32xf32>
    %231 = vector.shape_cast %230 : vector<1x64x32xf32> to vector<64x32xf32>
    %cst_99 = arith.constant dense<0.000000e+00> : vector<16x32xf32>
    %232 = tpu.matmul %229, %231, %cst_99 {dimension_numbers = #tpu.dot_dimension_numbers<[1], [0], [0], [1], [0, 0, 1, 1], [], []>} : vector<16x64xf32>, vector<64x32xf32>, vector<16x32xf32> -> vector<16x32xf32>
    %c1_100 = arith.constant 1 : index
    %c0_101 = arith.constant 0 : index
    %c0_102 = arith.constant 0 : index
    %233 = vector.load %arg12[%c1_100, %c0_101, %c0_102] : memref<2x1x32xf32, #tpu.memory_space<vmem>>, vector<1x1x32xf32>
    %234 = vector.shape_cast %233 : vector<1x1x32xf32> to vector<1x32xf32>
    %235 = vector.broadcast %234 : vector<1x32xf32> to vector<16x32xf32>
    %236 = arith.addf %232, %235 : vector<16x32xf32>
    %237 = arith.addf %236, %220 : vector<16x32xf32>
    %c1_103 = arith.constant 1 : index
    %c0_104 = arith.constant 0 : index
    %c0_105 = arith.constant 0 : index
    %238 = vector.load %arg7[%c1_103, %c0_104, %c0_105] : memref<2x1x32xf32, #tpu.memory_space<vmem>>, vector<1x1x32xf32>
    %239 = vector.shape_cast %238 : vector<1x1x32xf32> to vector<1x32xf32>
    %c1_106 = arith.constant 1 : index
    %c0_107 = arith.constant 0 : index
    %c0_108 = arith.constant 0 : index
    %240 = vector.load %arg8[%c1_106, %c0_107, %c0_108] : memref<2x1x32xf32, #tpu.memory_space<vmem>>, vector<1x1x32xf32>
    %241 = vector.shape_cast %240 : vector<1x1x32xf32> to vector<1x32xf32>
    %cst_109 = arith.constant dense<0.000000e+00> : vector<16xf32>
    %242 = vector.multi_reduction <add>, %237, %cst_109 [1] : vector<16x32xf32> to vector<16xf32>
    %243 = vector.shape_cast %242 : vector<16xf32> to vector<16x1xf32>
    %cst_110 = arith.constant 3.200000e+01 : f32
    %244 = vector.broadcast %cst_110 : f32 to vector<16x1xf32>
    %245 = arith.divf %243, %244 : vector<16x1xf32>
    %246 = arith.mulf %237, %237 : vector<16x32xf32>
    %cst_111 = arith.constant dense<0.000000e+00> : vector<16xf32>
    %247 = vector.multi_reduction <add>, %246, %cst_111 [1] : vector<16x32xf32> to vector<16xf32>
    %248 = vector.shape_cast %247 : vector<16xf32> to vector<16x1xf32>
    %cst_112 = arith.constant 3.200000e+01 : f32
    %249 = vector.broadcast %cst_112 : f32 to vector<16x1xf32>
    %250 = arith.divf %248, %249 : vector<16x1xf32>
    %251 = arith.mulf %245, %245 : vector<16x1xf32>
    %252 = arith.subf %250, %251 : vector<16x1xf32>
    %253 = vector.broadcast %245 : vector<16x1xf32> to vector<16x32xf32>
    %254 = arith.subf %237, %253 : vector<16x32xf32>
    %cst_113 = arith.constant 9.99999974E-6 : f32
    %255 = vector.broadcast %cst_113 : f32 to vector<16x1xf32>
    %256 = arith.addf %252, %255 : vector<16x1xf32>
    %257 = math.rsqrt %256 : vector<16x1xf32>
    %258 = vector.broadcast %257 : vector<16x1xf32> to vector<16x32xf32>
    %259 = arith.mulf %254, %258 : vector<16x32xf32>
    %260 = vector.broadcast %239 : vector<1x32xf32> to vector<16x32xf32>
    %261 = arith.mulf %259, %260 : vector<16x32xf32>
    %262 = vector.broadcast %241 : vector<1x32xf32> to vector<16x32xf32>
    %263 = arith.addf %261, %262 : vector<16x32xf32>
    %c0_114 = arith.constant 0 : index
    %c0_115 = arith.constant 0 : index
    %264 = vector.load %arg13[%c0_114, %c0_115] : memref<32x128xf32, #tpu.memory_space<vmem>>, vector<32x128xf32>
    %cst_116 = arith.constant dense<0.000000e+00> : vector<16x128xf32>
    %265 = tpu.matmul %263, %264, %cst_116 {dimension_numbers = #tpu.dot_dimension_numbers<[1], [0], [0], [1], [0, 0, 1, 1], [], []>} : vector<16x32xf32>, vector<32x128xf32>, vector<16x128xf32> -> vector<16x128xf32>
    %c0_117 = arith.constant 0 : index
    %c0_118 = arith.constant 0 : index
    %266 = vector.load %arg14[%c0_117, %c0_118] : memref<1x128xf32, #tpu.memory_space<vmem>>, vector<1x128xf32>
    %267 = vector.broadcast %266 : vector<1x128xf32> to vector<16x128xf32>
    %268 = arith.addf %265, %267 : vector<16x128xf32>
    %c0_119 = arith.constant 0 : index
    %c0_120 = arith.constant 0 : index
    %269 = vector.load %arg15[%c0_119, %c0_120] : memref<16x128xf32, #tpu.memory_space<vmem>>, vector<16x128xf32>
    tpu.vector_store %arg15[%c0_119, %c0_120], %268 {strides = array<i32>} : memref<16x128xf32, #tpu.memory_space<vmem>>, vector<16x128xf32>,
    return
  }
}

</mosaic_0001>

<llo_original>
// kernel: gpt2_forward.1
$region0: #{gpt2_forward.1}
  #allocation0 [shape = 'u32[]', space=smem, size = 0x4, offset = 0x4, fixed_abs, tag = 'smem constant byte address 0x4 - core index']
  #allocation1 [shape = 'u32[72,128]{1,0:T(1,128)}', space=vmem, size = 0x9000, scoped, tag = 'internal scratch']
  %s0 = inlined_call_operand.vmem [shape: s32[16,1], index: 0, kind: input, shape index: {}]
  %s1 = inlined_call_operand.vmem [shape: f32[128,32], index: 1, kind: input, shape index: {}]
  %s2 = inlined_call_operand.vmem [shape: f32[16,32], index: 2, kind: input, shape index: {}]
  %s3 = inlined_call_operand.vmem [shape: f32[2,32,96], index: 3, kind: input, shape index: {}]
  %s4 = inlined_call_operand.vmem [shape: f32[2,32,32], index: 4, kind: input, shape index: {}]
  %s5 = inlined_call_operand.vmem [shape: f32[2,1,32], index: 5, kind: input, shape index: {}]
  %s6 = inlined_call_operand.vmem [shape: f32[2,1,32], index: 6, kind: input, shape index: {}]
  %s7 = inlined_call_operand.vmem [shape: f32[2,1,32], index: 7, kind: input, shape index: {}]
  %s8 = inlined_call_operand.vmem [shape: f32[2,1,32], index: 8, kind: input, shape index: {}]
  %s9 = inlined_call_operand.vmem [shape: f32[2,32,64], index: 9, kind: input, shape index: {}]
  %s10 = inlined_call_operand.vmem [shape: f32[2,1,64], index: 10, kind: input, shape index: {}]
  %s11 = inlined_call_operand.vmem [shape: f32[2,64,32], index: 11, kind: input, shape index: {}]
  %s12 = inlined_call_operand.vmem [shape: f32[2,1,32], index: 12, kind: input, shape index: {}]
  %s13 = inlined_call_operand.vmem [shape: f32[32,128], index: 13, kind: input, shape index: {}]
  %s14 = inlined_call_operand.vmem [shape: f32[1,128], index: 14, kind: input, shape index: {}]
  %s15 = inlined_call_operand.hbm [shape: f32[16,128], index: 15, kind: output, shape index: {}]
  %s16 = sld [smem:[#allocation0]]
  $region70: #{gpt2_forward.1} parent=0
    _
  %s18 = ssub.s32 1, %s16
  %s19 = scalar_select 0, %s18, %s16
  $region1: #{gpt2_forward.1} parent=0
    #allocation2 [shape = 'u8[8192]{0}', space=vmem, size = 0x2000, scoped, tag = 'output window, operand 0, single buffered']
    #allocation3 [shape = 's32[1]{0}', space=sflag, size = 0x4, scoped, tag = 'scoped memory for gpt2_forward.1']
    %20 = vsyncpa [#allocation3], 0
    // Predicated region
    $region2: #{gpt2_forward.1} parent=1 // pred_check
      _
    $region3: #{gpt2_forward.1} parent=1 // pred_check_branch
      %22 = sbr.rel (0) target = $region5
    $region4: #{gpt2_forward.1} parent=1 // pred_region
      _
    $region5: #{gpt2_forward.1} parent=1 // pred_fallthru
      _
    // Predicated region
    $region6: #{gpt2_forward.1} parent=1 // pred_check
      _
    $region7: #{gpt2_forward.1} parent=1 // pred_check_branch
      %24 = sbr.rel (0) target = $region9
    $region8: #{gpt2_forward.1} parent=1 // pred_region
      _
    $region9: #{gpt2_forward.1} parent=1 // pred_fallthru
      _
    // Predicated region
    $region10: #{gpt2_forward.1} parent=1 // pred_check
      _
    $region11: #{gpt2_forward.1} parent=1 // pred_check_branch
      %26 = sbr.rel (0) target = $region13
    $region12: #{gpt2_forward.1} parent=1 // pred_region
      _
    $region13: #{gpt2_forward.1} parent=1 // pred_fallthru
      _
    // Predicated region
    $region14: #{gpt2_forward.1} parent=1 // pred_check
      _
    $region15: #{gpt2_forward.1} parent=1 // pred_check_branch
      %28 = sbr.rel (0) target = $region17
    $region16: #{gpt2_forward.1} parent=1 // pred_region
      _
    $region17: #{gpt2_forward.1} parent=1 // pred_fallthru
      _
    // Predicated region
    $region18: #{gpt2_forward.1} parent=1 // pred_check
      _
    $region19: #{gpt2_forward.1} parent=1 // pred_check_branch
      %30 = sbr.rel (0) target = $region21
    $region20: #{gpt2_forward.1} parent=1 // pred_region
      _
    $region21: #{gpt2_forward.1} parent=1 // pred_fallthru
      _
    // Predicated region
    $region22: #{gpt2_forward.1} parent=1 // pred_check
      _
    $region23: #{gpt2_forward.1} parent=1 // pred_check_branch
      %32 = sbr.rel (0) target = $region25
    $region24: #{gpt2_forward.1} parent=1 // pred_region
      _
    $region25: #{gpt2_forward.1} parent=1 // pred_fallthru
      _
    // Predicated region
    $region26: #{gpt2_forward.1} parent=1 // pred_check
      _
    $region27: #{gpt2_forward.1} parent=1 // pred_check_branch
      %34 = sbr.rel (0) target = $region29
    $region28: #{gpt2_forward.1} parent=1 // pred_region
      _
    $region29: #{gpt2_forward.1} parent=1 // pred_fallthru
      _
    // Predicated region
    $region30: #{gpt2_forward.1} parent=1 // pred_check
      _
    $region31: #{gpt2_forward.1} parent=1 // pred_check_branch
      %36 = sbr.rel (0) target = $region33
    $region32: #{gpt2_forward.1} parent=1 // pred_region
      _
    $region33: #{gpt2_forward.1} parent=1 // pred_fallthru
      _
    // Predicated region
    $region34: #{gpt2_forward.1} parent=1 // pred_check
      _
    $region35: #{gpt2_forward.1} parent=1 // pred_check_branch
      %38 = sbr.rel (0) target = $region37
    $region36: #{gpt2_forward.1} parent=1 // pred_region
      _
    $region37: #{gpt2_forward.1} parent=1 // pred_fallthru
      _
    // Predicated region
    $region38: #{gpt2_forward.1} parent=1 // pred_check
      _
    $region39: #{gpt2_forward.1} parent=1 // pred_check_branch
      %40 = sbr.rel (0) target = $region41
    $region40: #{gpt2_forward.1} parent=1 // pred_region
      _
    $region41: #{gpt2_forward.1} parent=1 // pred_fallthru
      _
    // Predicated region
    $region42: #{gpt2_forward.1} parent=1 // pred_check
      _
    $region43: #{gpt2_forward.1} parent=1 // pred_check_branch
      %42 = sbr.rel (0) target = $region45
    $region44: #{gpt2_forward.1} parent=1 // pred_region
      _
    $region45: #{gpt2_forward.1} parent=1 // pred_fallthru
      _
    // Predicated region
    $region46: #{gpt2_forward.1} parent=1 // pred_check
      _
    $region47: #{gpt2_forward.1} parent=1 // pred_check_branch
      %44 = sbr.rel (0) target = $region49
    $region48: #{gpt2_forward.1} parent=1 // pred_region
      _
    $region49: #{gpt2_forward.1} parent=1 // pred_fallthru
      _
    // Predicated region
    $region50: #{gpt2_forward.1} parent=1 // pred_check
      _
    $region51: #{gpt2_forward.1} parent=1 // pred_check_branch
      %46 = sbr.rel (0) target = $region53
    $region52: #{gpt2_forward.1} parent=1 // pred_region
      _
    $region53: #{gpt2_forward.1} parent=1 // pred_fallthru
      _
    // Predicated region
    $region54: #{gpt2_forward.1} parent=1 // pred_check
      _
    $region55: #{gpt2_forward.1} parent=1 // pred_check_branch
      %48 = sbr.rel (0) target = $region57
    $region56: #{gpt2_forward.1} parent=1 // pred_region
      _
    $region57: #{gpt2_forward.1} parent=1 // pred_fallthru
      _
    // Predicated region
    $region58: #{gpt2_forward.1} parent=1 // pred_check
      _
    $region59: #{gpt2_forward.1} parent=1 // pred_check_branch
      %50 = sbr.rel (0) target = $region61
    $region60: #{gpt2_forward.1} parent=1 // pred_region
      _
    $region61: #{gpt2_forward.1} parent=1 // pred_fallthru
      _
    %v51 = vld [vmem:[%s0] sm:$0xff]
    %v52 = vld [vmem:[%s0 + $0x8] sm:$0xff]
    %v53 = vlaneseq
    %v54 = vand.u32 %v53, 127
    %55 = vset.pattern.permute.xlu0 0
    %56 = vperm.xlu0 %55, %v51
    %v57 = vpop.permute.xlu0 %56
    %58 = vset.pattern.permute.xlu0 0
    %59 = vperm.xlu0 %58, %v52
    %v60 = vpop.permute.xlu0 %59
    %vm61 = vcmp.eq.s32.totalorder %v54, %v57
    %vm62 = vcmp.eq.s32.totalorder %v54, %v60
    %v63 = vsel %vm61, 1, 0
    %v64 = vsel %vm62, 1, 0
    %v65 = vcvt.s32.f32 %v63
    %v66 = vcvt.s32.f32 %v64
    %v67 = vld [vmem:[%s1] sm:$0xff]
    %v68 = vld [vmem:[%s1 + $0x8] sm:$0xff]
    %v69 = vld [vmem:[%s1 + $0x10] sm:$0xff]
    %v70 = vld [vmem:[%s1 + $0x18] sm:$0xff]
    %v71 = vld [vmem:[%s1 + $0x20] sm:$0xff]
    %v72 = vld [vmem:[%s1 + $0x28] sm:$0xff]
    %v73 = vld [vmem:[%s1 + $0x30] sm:$0xff]
    %v74 = vld [vmem:[%s1 + $0x38] sm:$0xff]
    %v75 = vld [vmem:[%s1 + $0x40] sm:$0xff]
    %v76 = vld [vmem:[%s1 + $0x48] sm:$0xff]
    %v77 = vld [vmem:[%s1 + $0x50] sm:$0xff]
    %v78 = vld [vmem:[%s1 + $0x58] sm:$0xff]
    %v79 = vld [vmem:[%s1 + $0x60] sm:$0xff]
    %v80 = vld [vmem:[%s1 + $0x68] sm:$0xff]
    %v81 = vld [vmem:[%s1 + $0x70] sm:$0xff]
    %v82 = vld [vmem:[%s1 + $0x78] sm:$0xff]
    %v83 = vld [vmem:[%s2] sm:$0xff]
    %v84 = vld [vmem:[%s2 + $0x8] sm:$0xff]
    %85 = vmatpush.msra.mxu0 %v82
    %86 = vmatpush.msra.mxu0 %v81
    %87 = vmatpush.msra.mxu0 %v80
    %88 = vmatpush.msra.mxu0 %v79
    %89 = vmatpush.msra.mxu0 %v78
    %90 = vmatpush.msra.mxu0 %v77
    %91 = vmatpush.msra.mxu0 %v76
    %92 = vmatpush.msra.mxu0 %v75
    %93 = vmatpush.msra.mxu0 %v74
    %94 = vmatpush.msra.mxu0 %v73
    %95 = vmatpush.msra.mxu0 %v72
    %96 = vmatpush.msra.mxu0 %v71
    %97 = vmatpush.msra.mxu0 %v70
    %98 = vmatpush.msra.mxu0 %v69
    %99 = vmatpush.msra.mxu0 %v68
    %100 = vmatpush.msra.mxu0 %v67
    %101 = vmatmul.f32.gmra.mxu0 %v65
    %v102 = vpop.f32.mrf.mxu0
    %v103 = vadd.f32 %v83, %v102
    %104 = vmatmul.f32.gmra.mxu0 %v66
    %v105 = vpop.f32.mrf.mxu0
    %v106 = vadd.f32 %v84, %v105
    %107 = vdwg.mxu0
    %v108 = vld [vmem:[%s3] sm:$0xff]
    %v109 = vld [vmem:[%s3 + $0x8] sm:$0xff]
    %v110 = vld [vmem:[%s3 + $0x10] sm:$0xff]
    %v111 = vld [vmem:[%s3 + $0x18] sm:$0xff]
    %vm112 = vcmask 261120
    %v114 = vsel %vm112, %v103, 0
    %v117 = vsel %vm112, %v106, 0
    %119 = vmatpush.msra.mxu0 0.0
    %120 = vmatpush.msra.mxu0 0.0
    %121 = vmatpush.msra.mxu0 0.0
    %122 = vmatpush.msra.mxu0 0.0
    %123 = vmatpush.msra.mxu0 0.0
    %124 = vmatpush.msra.mxu0 0.0
    %125 = vmatpush.msra.mxu0 0.0
    %126 = vmatpush.msra.mxu0 0.0
    %127 = vmatpush.msra.mxu0 0.0
    %128 = vmatpush.msra.mxu0 0.0
    %129 = vmatpush.msra.mxu0 0.0
    %130 = vmatpush.msra.mxu0 0.0
    %131 = vmatpush.msra.mxu0 %v111
    %132 = vmatpush.msra.mxu0 %v110
    %133 = vmatpush.msra.mxu0 %v109
    %134 = vmatpush.msra.mxu0 %v108
    %135 = vmatmul.f32.gmra.mxu0 %v114
    %v136 = vpop.f32.mrf.mxu0
    %v137 = vadd.f32 0.0, %v136
    %138 = vmatmul.f32.gmra.mxu0 %v117
    %v139 = vpop.f32.mrf.mxu0
    %v140 = vadd.f32 0.0, %v139
    %141 = vdwg.mxu0
    %143 = vrot.lane.b32.xlu0 %v137, 120
    %v144 = vpop.permute.xlu0 %143
    %146 = vrot.lane.b32.xlu0 %v137, 112
    %v147 = vpop.permute.xlu0 %146
    %149 = vrot.lane.b32.xlu0 %v137, 104
    %v150 = vpop.permute.xlu0 %149
    %v152 = vrot.slane %v147, 4
    %vm153 = vcmask 1047556
    %v154 = vsel %vm153, %v152, %v137
    %v155 = vrot.slane %v137, 4
    %v156 = vsel %vm153, %v147, %v155
    %v158 = vunpack.c.l.s4 1983009808
    %v159 = vunpack.c.0.s8 %v158
    %v160 = vperm.slane %v154, %v159
    %v162 = vunpack.c.l.s4 1983009808
    %v163 = vunpack.c.0.s8 %v162
    %v164 = vperm.slane %v156, %v163
    %v165 = vrot.slane %v150, 4
    %v166 = vsel %vm153, %v165, %v144
    %v167 = vrot.slane %v144, 4
    %v168 = vsel %vm153, %v150, %v167
    %v170 = vunpack.c.l.s4 1983009808
    %v171 = vunpack.c.0.s8 %v170
    %v172 = vperm.slane %v166, %v171
    %v174 = vunpack.c.l.s4 1983009808
    %v175 = vunpack.c.0.s8 %v174
    %v176 = vperm.slane %v168, %v175
    %v177 = vrot.slane %v172, 4
    %v178 = vsel %vm153, %v177, %v160
    %v179 = vrot.slane %v160, 4
    %v180 = vsel %vm153, %v172, %v179
    %v182 = vunpack.c.l.s4 1934713408
    %v183 = vunpack.c.0.s8 %v182
    %v184 = vperm.slane %v178, %v183
    %v186 = vunpack.c.l.s4 1934713408
    %v187 = vunpack.c.0.s8 %v186
    %v188 = vperm.slane %v180, %v187
    %v189 = vrot.slane %v176, 4
    %v190 = vsel %vm153, %v189, %v164
    %v191 = vrot.slane %v164, 4
    %v192 = vsel %vm153, %v176, %v191
    %v194 = vunpack.c.l.s4 1934713408
    %v195 = vunpack.c.0.s8 %v194
    %v196 = vperm.slane %v190, %v195
    %v198 = vunpack.c.l.s4 1934713408
    %v199 = vunpack.c.0.s8 %v198
    %v200 = vperm.slane %v192, %v199
    %v201 = vrot.slane %v184, 4
    %v202 = vsel %vm153, 0.0, %v201
    %v203 = vrot.slane %v188, 4
    %v204 = vsel %vm153, 0.0, %v203
    %v205 = vrot.slane %v196, 4
    %v206 = vsel %vm153, 0.0, %v205
    %v207 = vrot.slane %v200, 4
    %v208 = vsel %vm153, 0.0, %v207
    %v209 = vsel %vm153, %v203, %v184
    %v211 = vunpack.c.l.s4 1983009808
    %v212 = vunpack.c.0.s8 %v211
    %v213 = vperm.slane %v209, %v212
    %v214 = vrot.slane %v204, 4
    %v215 = vsel %vm153, %v214, %v202
    %v217 = vunpack.c.l.s4 1983009808
    %v218 = vunpack.c.0.s8 %v217
    %v219 = vperm.slane %v215, %v218
    %v220 = vsel %vm153, %v207, %v196
    %v222 = vunpack.c.l.s4 1983009808
    %v223 = vunpack.c.0.s8 %v222
    %v224 = vperm.slane %v220, %v223
    %v225 = vrot.slane %v208, 4
    %v226 = vsel %vm153, %v225, %v206
    %v228 = vunpack.c.l.s4 1983009808
    %v229 = vunpack.c.0.s8 %v228
    %v230 = vperm.slane %v226, %v229
    %v231 = vrot.slane %v219, 4
    %v232 = vsel %vm153, %v231, %v213
    %v233 = vrot.slane %v213, 4
    %v234 = vsel %vm153, %v219, %v233
    %v236 = vunpack.c.l.s4 1934713408
    %v237 = vunpack.c.0.s8 %v236
    %v238 = vperm.slane %v232, %v237
    %v240 = vunpack.c.l.s4 1934713408
    %v241 = vunpack.c.0.s8 %v240
    %v242 = vperm.slane %v234, %v241
    %v243 = vrot.slane %v230, 4
    %v244 = vsel %vm153, %v243, %v224
    %v245 = vrot.slane %v224, 4
    %v246 = vsel %vm153, %v230, %v245
    %v248 = vunpack.c.l.s4 1934713408
    %v249 = vunpack.c.0.s8 %v248
    %v250 = vperm.slane %v244, %v249
    %v252 = vunpack.c.l.s4 1934713408
    %v253 = vunpack.c.0.s8 %v252
    %v254 = vperm.slane %v246, %v253
    %v255 = vrot.slane %v250, 4
    %v256 = vsel %vm153, %v255, %v238
    %v257 = vrot.slane %v238, 4
    %v258 = vsel %vm153, %v250, %v257
    %v259 = vrot.slane %v254, 4
    %v260 = vsel %vm153, %v259, %v242
    %v261 = vrot.slane %v242, 4
    %v262 = vsel %vm153, %v254, %v261
    %263 = vrot.lane.b32.xlu0 %v137, 96
    %v264 = vpop.permute.xlu0 %263
    %265 = vrot.lane.b32.xlu0 %v144, 96
    %v266 = vpop.permute.xlu0 %265
    %267 = vrot.lane.b32.xlu0 %v147, 96
    %v268 = vpop.permute.xlu0 %267
    %269 = vrot.lane.b32.xlu0 %v150, 96
    %v270 = vpop.permute.xlu0 %269
    %v275 = vrot.slane %v268, 4
    %v276 = vsel %vm153, %v275, %v264
    %v277 = vrot.slane %v264, 4
    %v278 = vsel %vm153, %v268, %v277
    %v280 = vunpack.c.l.s4 1983009808
    %v281 = vunpack.c.0.s8 %v280
    %v282 = vperm.slane %v276, %v281
    %v284 = vunpack.c.l.s4 1983009808
    %v285 = vunpack.c.0.s8 %v284
    %v286 = vperm.slane %v278, %v285
    %v287 = vrot.slane %v270, 4
    %v288 = vsel %vm153, %v287, %v266
    %v289 = vrot.slane %v266, 4
    %v290 = vsel %vm153, %v270, %v289
    %v292 = vunpack.c.l.s4 1983009808
    %v293 = vunpack.c.0.s8 %v292
    %v294 = vperm.slane %v288, %v293
    %v296 = vunpack.c.l.s4 1983009808
    %v297 = vunpack.c.0.s8 %v296
    %v298 = vperm.slane %v290, %v297
    %v299 = vrot.slane %v294, 4
    %v300 = vsel %vm153, %v299, %v282
    %v301 = vrot.slane %v282, 4
    %v302 = vsel %vm153, %v294, %v301
    %v304 = vunpack.c.l.s4 1934713408
    %v305 = vunpack.c.0.s8 %v304
    %v306 = vperm.slane %v300, %v305
    %v308 = vunpack.c.l.s4 1934713408
    %v309 = vunpack.c.0.s8 %v308
    %v310 = vperm.slane %v302, %v309
    %v311 = vrot.slane %v298, 4
    %v312 = vsel %vm153, %v311, %v286
    %v313 = vrot.slane %v286, 4
    %v314 = vsel %vm153, %v298, %v313
    %v316 = vunpack.c.l.s4 1934713408
    %v317 = vunpack.c.0.s8 %v316
    %v318 = vperm.slane %v312, %v317
    %v320 = vunpack.c.l.s4 1934713408
    %v321 = vunpack.c.0.s8 %v320
    %v322 = vperm.slane %v314, %v321
    %v323 = vrot.slane %v306, 4
    %v324 = vsel %vm153, 0.0, %v323
    %v325 = vrot.slane %v310, 4
    %v326 = vsel %vm153, 0.0, %v325
    %v327 = vrot.slane %v318, 4
    %v328 = vsel %vm153, 0.0, %v327
    %v329 = vrot.slane %v322, 4
    %v330 = vsel %vm153, 0.0, %v329
    %v331 = vsel %vm153, %v325, %v306
    %v333 = vunpack.c.l.s4 1983009808
    %v334 = vunpack.c.0.s8 %v333
    %v335 = vperm.slane %v331, %v334
    %v336 = vrot.slane %v326, 4
    %v337 = vsel %vm153, %v336, %v324
    %v339 = vunpack.c.l.s4 1983009808
    %v340 = vunpack.c.0.s8 %v339
    %v341 = vperm.slane %v337, %v340
    %v342 = vsel %vm153, %v329, %v318
    %v344 = vunpack.c.l.s4 1983009808
    %v345 = vunpack.c.0.s8 %v344
    %v346 = vperm.slane %v342, %v345
    %v347 = vrot.slane %v330, 4
    %v348 = vsel %vm153, %v347, %v328
    %v350 = vunpack.c.l.s4 1983009808
    %v351 = vunpack.c.0.s8 %v350
    %v352 = vperm.slane %v348, %v351
    %v353 = vrot.slane %v341, 4
    %v354 = vsel %vm153, %v353, %v335
    %v355 = vrot.slane %v335, 4
    %v356 = vsel %vm153, %v341, %v355
    %v358 = vunpack.c.l.s4 1934713408
    %v359 = vunpack.c.0.s8 %v358
    %v360 = vperm.slane %v354, %v359
    %v362 = vunpack.c.l.s4 1934713408
    %v363 = vunpack.c.0.s8 %v362
    %v364 = vperm.slane %v356, %v363
    %v365 = vrot.slane %v352, 4
    %v366 = vsel %vm153, %v365, %v346
    %v367 = vrot.slane %v346, 4
    %v368 = vsel %vm153, %v352, %v367
    %v370 = vunpack.c.l.s4 1934713408
    %v371 = vunpack.c.0.s8 %v370
    %v372 = vperm.slane %v366, %v371
    %v374 = vunpack.c.l.s4 1934713408
    %v375 = vunpack.c.0.s8 %v374
    %v376 = vperm.slane %v368, %v375
    %v377 = vrot.slane %v372, 4
    %v378 = vsel %vm153, %v377, %v360
    %v379 = vrot.slane %v360, 4
    %v380 = vsel %vm153, %v372, %v379
    %v381 = vrot.slane %v376, 4
    %v382 = vsel %vm153, %v381, %v364
    %v383 = vrot.slane %v364, 4
    %v384 = vsel %vm153, %v376, %v383
    %385 = vrot.lane.b32.xlu0 %v137, 64
    %v386 = vpop.permute.xlu0 %385
    %387 = vrot.lane.b32.xlu0 %v144, 64
    %v388 = vpop.permute.xlu0 %387
    %389 = vrot.lane.b32.xlu0 %v147, 64
    %v390 = vpop.permute.xlu0 %389
    %391 = vrot.lane.b32.xlu0 %v150, 64
    %v392 = vpop.permute.xlu0 %391
    %v397 = vrot.slane %v390, 4
    %v398 = vsel %vm153, %v397, %v386
    %v399 = vrot.slane %v386, 4
    %v400 = vsel %vm153, %v390, %v399
    %v402 = vunpack.c.l.s4 1983009808
    %v403 = vunpack.c.0.s8 %v402
    %v404 = vperm.slane %v398, %v403
    %v406 = vunpack.c.l.s4 1983009808
    %v407 = vunpack.c.0.s8 %v406
    %v408 = vperm.slane %v400, %v407
    %v409 = vrot.slane %v392, 4
    %v410 = vsel %vm153, %v409, %v388
    %v411 = vrot.slane %v388, 4
    %v412 = vsel %vm153, %v392, %v411
    %v414 = vunpack.c.l.s4 1983009808
    %v415 = vunpack.c.0.s8 %v414
    %v416 = vperm.slane %v410, %v415
    %v418 = vunpack.c.l.s4 1983009808
    %v419 = vunpack.c.0.s8 %v418
    %v420 = vperm.slane %v412, %v419
    %v421 = vrot.slane %v416, 4
    %v422 = vsel %vm153, %v421, %v404
    %v423 = vrot.slane %v404, 4
    %v424 = vsel %vm153, %v416, %v423
    %v426 = vunpack.c.l.s4 1934713408
    %v427 = vunpack.c.0.s8 %v426
    %v428 = vperm.slane %v422, %v427
    %v430 = vunpack.c.l.s4 1934713408
    %v431 = vunpack.c.0.s8 %v430
    %v432 = vperm.slane %v424, %v431
    %v433 = vrot.slane %v420, 4
    %v434 = vsel %vm153, %v433, %v408
    %v435 = vrot.slane %v408, 4
    %v436 = vsel %vm153, %v420, %v435
    %v438 = vunpack.c.l.s4 1934713408
    %v439 = vunpack.c.0.s8 %v438
    %v440 = vperm.slane %v434, %v439
    %v442 = vunpack.c.l.s4 1934713408
    %v443 = vunpack.c.0.s8 %v442
    %v444 = vperm.slane %v436, %v443
    %v445 = vrot.slane %v428, 4
    %v446 = vsel %vm153, 0.0, %v445
    %v447 = vrot.slane %v432, 4
    %v448 = vsel %vm153, 0.0, %v447
    %v449 = vrot.slane %v440, 4
    %v450 = vsel %vm153, 0.0, %v449
    %v451 = vrot.slane %v444, 4
    %v452 = vsel %vm153, 0.0, %v451
    %v453 = vsel %vm153, %v447, %v428
    %v455 = vunpack.c.l.s4 1983009808
    %v456 = vunpack.c.0.s8 %v455
    %v457 = vperm.slane %v453, %v456
    %v458 = vrot.slane %v448, 4
    %v459 = vsel %vm153, %v458, %v446
    %v461 = vunpack.c.l.s4 1983009808
    %v462 = vunpack.c.0.s8 %v461
    %v463 = vperm.slane %v459, %v462
    %v464 = vsel %vm153, %v451, %v440
    %v466 = vunpack.c.l.s4 1983009808
    %v467 = vunpack.c.0.s8 %v466
    %v468 = vperm.slane %v464, %v467
    %v469 = vrot.slane %v452, 4
    %v470 = vsel %vm153, %v469, %v450
    %v472 = vunpack.c.l.s4 1983009808
    %v473 = vunpack.c.0.s8 %v472
    %v474 = vperm.slane %v470, %v473
    %v475 = vrot.slane %v463, 4
    %v476 = vsel %vm153, %v475, %v457
    %v477 = vrot.slane %v457, 4
    %v478 = vsel %vm153, %v463, %v477
    %v480 = vunpack.c.l.s4 1934713408
    %v481 = vunpack.c.0.s8 %v480
    %v482 = vperm.slane %v476, %v481
    %v484 = vunpack.c.l.s4 1934713408
    %v485 = vunpack.c.0.s8 %v484
    %v486 = vperm.slane %v478, %v485
    %v487 = vrot.slane %v474, 4
    %v488 = vsel %vm153, %v487, %v468
    %v489 = vrot.slane %v468, 4
    %v490 = vsel %vm153, %v474, %v489
    %v492 = vunpack.c.l.s4 1934713408
    %v493 = vunpack.c.0.s8 %v492
    %v494 = vperm.slane %v488, %v493
    %v496 = vunpack.c.l.s4 1934713408
    %v497 = vunpack.c.0.s8 %v496
    %v498 = vperm.slane %v490, %v497
    %v499 = vrot.slane %v494, 4
    %v500 = vsel %vm153, %v499, %v482
    %v501 = vrot.slane %v482, 4
    %v502 = vsel %vm153, %v494, %v501
    %v503 = vrot.slane %v498, 4
    %v504 = vsel %vm153, %v503, %v486
    %v505 = vrot.slane %v486, 4
    %v506 = vsel %vm153, %v498, %v505
    %vm507 = vcmask 64512
    %v509 = vsel %vm507, %v256, 0
    %v512 = vsel %vm507, %v378, 0
    %514 = vmatpush.xpose.msra.mxu0 0.0
    %515 = vmatpush.xpose.msra.mxu0 0.0
    %516 = vmatpush.xpose.msra.mxu0 0.0
    %517 = vmatpush.xpose.msra.mxu0 0.0
    %518 = vmatpush.xpose.msra.mxu0 0.0
    %519 = vmatpush.xpose.msra.mxu0 0.0
    %520 = vmatpush.xpose.msra.mxu0 0.0
    %521 = vmatpush.xpose.msra.mxu0 0.0
    %522 = vmatpush.xpose.msra.mxu0 0.0
    %523 = vmatpush.xpose.msra.mxu0 0.0
    %524 = vmatpush.xpose.msra.mxu0 0.0
    %525 = vmatpush.xpose.msra.mxu0 0.0
    %526 = vmatpush.xpose.msra.mxu0 0.0
    %527 = vmatpush.xpose.msra.mxu0 0.0
    %528 = vmatpush.xpose.msra.mxu0 0.0
    %529 = vmatpush.xpose.msra.mxu0 %v512
    %530 = vmatmul.f32.gmra.mxu0 %v509
    %v531 = vpop.f32.mrf.mxu0
    %v532 = vadd.f32 0.0, %v531
    %533 = vdwg.mxu0
    %v535 = vsel %vm507, %v258, 0
    %v538 = vsel %vm507, %v380, 0
    %540 = vmatpush.xpose.msra.mxu0 0.0
    %541 = vmatpush.xpose.msra.mxu0 0.0
    %542 = vmatpush.xpose.msra.mxu0 0.0
    %543 = vmatpush.xpose.msra.mxu0 0.0
    %544 = vmatpush.xpose.msra.mxu0 0.0
    %545 = vmatpush.xpose.msra.mxu0 0.0
    %546 = vmatpush.xpose.msra.mxu0 0.0
    %547 = vmatpush.xpose.msra.mxu0 0.0
    %548 = vmatpush.xpose.msra.mxu0 0.0
    %549 = vmatpush.xpose.msra.mxu0 0.0
    %550 = vmatpush.xpose.msra.mxu0 0.0
    %551 = vmatpush.xpose.msra.mxu0 0.0
    %552 = vmatpush.xpose.msra.mxu0 0.0
    %553 = vmatpush.xpose.msra.mxu0 0.0
    %554 = vmatpush.xpose.msra.mxu0 0.0
    %555 = vmatpush.xpose.msra.mxu0 %v538
    %556 = vmatmul.f32.gmra.mxu0 %v535
    %v557 = vpop.f32.mrf.mxu0
    %v558 = vadd.f32 0.0, %v557
    %559 = vdwg.mxu0
    %v561 = vsel %vm507, %v260, 0
    %v564 = vsel %vm507, %v382, 0
    %566 = vmatpush.xpose.msra.mxu0 0.0
    %567 = vmatpush.xpose.msra.mxu0 0.0
    %568 = vmatpush.xpose.msra.mxu0 0.0
    %569 = vmatpush.xpose.msra.mxu0 0.0
    %570 = vmatpush.xpose.msra.mxu0 0.0
    %571 = vmatpush.xpose.msra.mxu0 0.0
    %572 = vmatpush.xpose.msra.mxu0 0.0
    %573 = vmatpush.xpose.msra.mxu0 0.0
    %574 = vmatpush.xpose.msra.mxu0 0.0
    %575 = vmatpush.xpose.msra.mxu0 0.0
    %576 = vmatpush.xpose.msra.mxu0 0.0
    %577 = vmatpush.xpose.msra.mxu0 0.0
    %578 = vmatpush.xpose.msra.mxu0 0.0
    %579 = vmatpush.xpose.msra.mxu0 0.0
    %580 = vmatpush.xpose.msra.mxu0 0.0
    %581 = vmatpush.xpose.msra.mxu0 %v564
    %582 = vmatmul.f32.gmra.mxu0 %v561
    %v583 = vpop.f32.mrf.mxu0
    %v584 = vadd.f32 0.0, %v583
    %585 = vdwg.mxu0
    %v587 = vsel %vm507, %v262, 0
    %v590 = vsel %vm507, %v384, 0
    %592 = vmatpush.xpose.msra.mxu0 0.0
    %593 = vmatpush.xpose.msra.mxu0 0.0
    %594 = vmatpush.xpose.msra.mxu0 0.0
    %595 = vmatpush.xpose.msra.mxu0 0.0
    %596 = vmatpush.xpose.msra.mxu0 0.0
    %597 = vmatpush.xpose.msra.mxu0 0.0
    %598 = vmatpush.xpose.msra.mxu0 0.0
    %599 = vmatpush.xpose.msra.mxu0 0.0
    %600 = vmatpush.xpose.msra.mxu0 0.0
    %601 = vmatpush.xpose.msra.mxu0 0.0
    %602 = vmatpush.xpose.msra.mxu0 0.0
    %603 = vmatpush.xpose.msra.mxu0 0.0
    %604 = vmatpush.xpose.msra.mxu0 0.0
    %605 = vmatpush.xpose.msra.mxu0 0.0
    %606 = vmatpush.xpose.msra.mxu0 0.0
    %607 = vmatpush.xpose.msra.mxu0 %v590
    %608 = vmatmul.f32.gmra.mxu0 %v587
    %v609 = vpop.f32.mrf.mxu0
    %v610 = vadd.f32 0.0, %v609
    %611 = vdwg.mxu0
    %v612 = vsel %vm507, %v532, -inf
    %613 = vmax.xlane.f32.xlu0 %v612
    %v614 = vpop.xlane.xlu0 %613
    %v615 = vsel %vm507, %v558, -inf
    %616 = vmax.xlane.f32.xlu0 %v615
    %v617 = vpop.xlane.xlu0 %616
    %v618 = vsel %vm507, %v584, -inf
    %619 = vmax.xlane.f32.xlu0 %v618
    %v620 = vpop.xlane.xlu0 %619
    %v621 = vsel %vm507, %v610, -inf
    %622 = vmax.xlane.f32.xlu0 %v621
    %v623 = vpop.xlane.xlu0 %622
    %v624 = vsub.f32 %v532, %v614
    %v625 = vsub.f32 %v558, %v617
    %v626 = vsub.f32 %v584, %v620
    %v627 = vsub.f32 %v610, %v623
    %v628 = vmul.f32 %v624, 1.442695
    %v629 = vpow.pop %v628
    %v630 = vmul.f32 %v625, 1.442695
    %v631 = vpow.pop %v630
    %v632 = vmul.f32 %v626, 1.442695
    %v633 = vpow.pop %v632
    %v634 = vmul.f32 %v627, 1.442695
    %v635 = vpow.pop %v634
    %v636 = vsel %vm507, %v629, 0.0
    %637 = vadd.xlane.f32.xlu0 %v636
    %v638 = vpop.xlane.xlu0 %637
    %v639 = vsel %vm507, %v631, 0.0
    %640 = vadd.xlane.f32.xlu0 %v639
    %v641 = vpop.xlane.xlu0 %640
    %v642 = vsel %vm507, %v633, 0.0
    %643 = vadd.xlane.f32.xlu0 %v642
    %v644 = vpop.xlane.xlu0 %643
    %v645 = vsel %vm507, %v635, 0.0
    %646 = vadd.xlane.f32.xlu0 %v645
    %v647 = vpop.xlane.xlu0 %646
    %v648 = vrcp.pop %v638
    %v649 = vmul.f32 %v638, %v648
    %v650 = vsub.f32 1.0, %v649
    %v651 = vmul.f32 %v648, %v650
    %v652 = vadd.f32 %v648, %v651
    %vm653 = vweird.f32 %v638
    %vm654 = vweird.f32 %v648
    %vm655 = vmor %vm653, %vm654
    %v656 = vsel %vm655, %v648, %v652
    %v657 = vand.u32 2147483647, %v638
    %vm658 = vcmp.eq.f32.partialorder %v657, 8.507059e+37
    %v659 = vand.u32 %v638, 2147483648
    %v660 = vor.u32 1.1754944e-38, %v659
    %v661 = vsel %vm658, %v660, %v656
    %v662 = vmul.f32 %v629, %v661
    %v663 = vrcp.pop %v641
    %v664 = vmul.f32 %v641, %v663
    %v665 = vsub.f32 1.0, %v664
    %v666 = vmul.f32 %v663, %v665
    %v667 = vadd.f32 %v663, %v666
    %vm668 = vweird.f32 %v641
    %vm669 = vweird.f32 %v663
    %vm670 = vmor %vm668, %vm669
    %v671 = vsel %vm670, %v663, %v667
    %v672 = vand.u32 2147483647, %v641
    %vm673 = vcmp.eq.f32.partialorder %v672, 8.507059e+37
    %v674 = vand.u32 %v641, 2147483648
    %v675 = vor.u32 1.1754944e-38, %v674
    %v676 = vsel %vm673, %v675, %v671
    %v677 = vmul.f32 %v631, %v676
    %v678 = vrcp.pop %v644
    %v679 = vmul.f32 %v644, %v678
    %v680 = vsub.f32 1.0, %v679
    %v681 = vmul.f32 %v678, %v680
    %v682 = vadd.f32 %v678, %v681
    %vm683 = vweird.f32 %v644
    %vm684 = vweird.f32 %v678
    %vm685 = vmor %vm683, %vm684
    %v686 = vsel %vm685, %v678, %v682
    %v687 = vand.u32 2147483647, %v644
    %vm688 = vcmp.eq.f32.partialorder %v687, 8.507059e+37
    %v689 = vand.u32 %v644, 2147483648
    %v690 = vor.u32 1.1754944e-38, %v689
    %v691 = vsel %vm688, %v690, %v686
    %v692 = vmul.f32 %v633, %v691
    %v693 = vrcp.pop %v647
    %v694 = vmul.f32 %v647, %v693
    %v695 = vsub.f32 1.0, %v694
    %v696 = vmul.f32 %v693, %v695
    %v697 = vadd.f32 %v693, %v696
    %vm698 = vweird.f32 %v647
    %vm699 = vweird.f32 %v693
    %vm700 = vmor %vm698, %vm699
    %v701 = vsel %vm700, %v693, %v697
    %v702 = vand.u32 2147483647, %v647
    %vm703 = vcmp.eq.f32.partialorder %v702, 8.507059e+37
    %v704 = vand.u32 %v647, 2147483648
    %v705 = vor.u32 1.1754944e-38, %v704
    %v706 = vsel %vm703, %v705, %v701
    %v707 = vmul.f32 %v635, %v706
    %v709 = vsel %vm507, %v662, 0
    %711 = vmatpush.msra.mxu0 0.0
    %712 = vmatpush.msra.mxu0 0.0
    %713 = vmatpush.msra.mxu0 0.0
    %714 = vmatpush.msra.mxu0 0.0
    %715 = vmatpush.msra.mxu0 0.0
    %716 = vmatpush.msra.mxu0 0.0
    %717 = vmatpush.msra.mxu0 0.0
    %718 = vmatpush.msra.mxu0 0.0
    %719 = vmatpush.msra.mxu0 0.0
    %720 = vmatpush.msra.mxu0 0.0
    %721 = vmatpush.msra.mxu0 0.0
    %722 = vmatpush.msra.mxu0 0.0
    %723 = vmatpush.msra.mxu0 0.0
    %724 = vmatpush.msra.mxu0 0.0
    %725 = vmatpush.msra.mxu0 0.0
    %726 = vmatpush.msra.mxu0 %v500
    %727 = vmatmul.f32.gmra.mxu0 %v709
    %v728 = vpop.f32.mrf.mxu0
    %v729 = vadd.f32 0.0, %v728
    %730 = vdwg.mxu0
    %v732 = vsel %vm507, %v677, 0
    %734 = vmatpush.msra.mxu0 0.0
    %735 = vmatpush.msra.mxu0 0.0
    %736 = vmatpush.msra.mxu0 0.0
    %737 = vmatpush.msra.mxu0 0.0
    %738 = vmatpush.msra.mxu0 0.0
    %739 = vmatpush.msra.mxu0 0.0
    %740 = vmatpush.msra.mxu0 0.0
    %741 = vmatpush.msra.mxu0 0.0
    %742 = vmatpush.msra.mxu0 0.0
    %743 = vmatpush.msra.mxu0 0.0
    %744 = vmatpush.msra.mxu0 0.0
    %745 = vmatpush.msra.mxu0 0.0
    %746 = vmatpush.msra.mxu0 0.0
    %747 = vmatpush.msra.mxu0 0.0
    %748 = vmatpush.msra.mxu0 0.0
    %749 = vmatpush.msra.mxu0 %v502
    %750 = vmatmul.f32.gmra.mxu0 %v732
    %v751 = vpop.f32.mrf.mxu0
    %v752 = vadd.f32 0.0, %v751
    %753 = vdwg.mxu0
    %v755 = vsel %vm507, %v692, 0
    %757 = vmatpush.msra.mxu0 0.0
    %758 = vmatpush.msra.mxu0 0.0
    %759 = vmatpush.msra.mxu0 0.0
    %760 = vmatpush.msra.mxu0 0.0
    %761 = vmatpush.msra.mxu0 0.0
    %762 = vmatpush.msra.mxu0 0.0
    %763 = vmatpush.msra.mxu0 0.0
    %764 = vmatpush.msra.mxu0 0.0
    %765 = vmatpush.msra.mxu0 0.0
    %766 = vmatpush.msra.mxu0 0.0
    %767 = vmatpush.msra.mxu0 0.0
    %768 = vmatpush.msra.mxu0 0.0
    %769 = vmatpush.msra.mxu0 0.0
    %770 = vmatpush.msra.mxu0 0.0
    %771 = vmatpush.msra.mxu0 0.0
    %772 = vmatpush.msra.mxu0 %v504
    %773 = vmatmul.f32.gmra.mxu0 %v755
    %v774 = vpop.f32.mrf.mxu0
    %v775 = vadd.f32 0.0, %v774
    %776 = vdwg.mxu0
    %v778 = vsel %vm507, %v707, 0
    %780 = vmatpush.msra.mxu0 0.0
    %781 = vmatpush.msra.mxu0 0.0
    %782 = vmatpush.msra.mxu0 0.0
    %783 = vmatpush.msra.mxu0 0.0
    %784 = vmatpush.msra.mxu0 0.0
    %785 = vmatpush.msra.mxu0 0.0
    %786 = vmatpush.msra.mxu0 0.0
    %787 = vmatpush.msra.mxu0 0.0
    %788 = vmatpush.msra.mxu0 0.0
    %789 = vmatpush.msra.mxu0 0.0
    %790 = vmatpush.msra.mxu0 0.0
    %791 = vmatpush.msra.mxu0 0.0
    %792 = vmatpush.msra.mxu0 0.0
    %793 = vmatpush.msra.mxu0 0.0
    %794 = vmatpush.msra.mxu0 0.0
    %795 = vmatpush.msra.mxu0 %v506
    %796 = vmatmul.f32.gmra.mxu0 %v778
    %v797 = vpop.f32.mrf.mxu0
    %v798 = vadd.f32 0.0, %v797
    %799 = vdwg.mxu0
    %v800 = vrot.slane %v775, 4
    %v801 = vsel %vm153, %v800, %v729
    %v802 = vrot.slane %v729, 4
    %v803 = vsel %vm153, %v775, %v802
    %v805 = vunpack.c.l.s4 1983009808
    %v806 = vunpack.c.0.s8 %v805
    %v807 = vperm.slane %v801, %v806
    %v809 = vunpack.c.l.s4 1983009808
    %v810 = vunpack.c.0.s8 %v809
    %v811 = vperm.slane %v803, %v810
    %v812 = vrot.slane %v798, 4
    %v813 = vsel %vm153, %v812, %v752
    %v814 = vrot.slane %v752, 4
    %v815 = vsel %vm153, %v798, %v814
    %v817 = vunpack.c.l.s4 1983009808
    %v818 = vunpack.c.0.s8 %v817
    %v819 = vperm.slane %v813, %v818
    %v821 = vunpack.c.l.s4 1983009808
    %v822 = vunpack.c.0.s8 %v821
    %v823 = vperm.slane %v815, %v822
    %v824 = vrot.slane %v819, 4
    %v825 = vsel %vm153, %v824, %v807
    %v826 = vrot.slane %v807, 4
    %v827 = vsel %vm153, %v819, %v826
    %v829 = vunpack.c.l.s4 1934713408
    %v830 = vunpack.c.0.s8 %v829
    %v831 = vperm.slane %v825, %v830
    %v833 = vunpack.c.l.s4 1934713408
    %v834 = vunpack.c.0.s8 %v833
    %v835 = vperm.slane %v827, %v834
    %v836 = vrot.slane %v823, 4
    %v837 = vsel %vm153, %v836, %v811
    %v838 = vrot.slane %v811, 4
    %v839 = vsel %vm153, %v823, %v838
    %v841 = vunpack.c.l.s4 1934713408
    %v842 = vunpack.c.0.s8 %v841
    %v843 = vperm.slane %v837, %v842
    %v845 = vunpack.c.l.s4 1934713408
    %v846 = vunpack.c.0.s8 %v845
    %v847 = vperm.slane %v839, %v846
    %v848 = vrot.slane %v831, 4
    %v849 = vsel %vm153, 0.0, %v848
    %v850 = vrot.slane %v835, 4
    %v851 = vsel %vm153, 0.0, %v850
    %v852 = vrot.slane %v843, 4
    %v853 = vsel %vm153, 0.0, %v852
    %v854 = vrot.slane %v847, 4
    %v855 = vsel %vm153, 0.0, %v854
    %v856 = vsel %vm153, %v850, %v831
    %v858 = vunpack.c.l.s4 1983009808
    %v859 = vunpack.c.0.s8 %v858
    %v860 = vperm.slane %v856, %v859
    %v861 = vrot.slane %v851, 4
    %v862 = vsel %vm153, %v861, %v849
    %v864 = vunpack.c.l.s4 1983009808
    %v865 = vunpack.c.0.s8 %v864
    %v866 = vperm.slane %v862, %v865
    %v867 = vsel %vm153, %v854, %v843
    %v869 = vunpack.c.l.s4 1983009808
    %v870 = vunpack.c.0.s8 %v869
    %v871 = vperm.slane %v867, %v870
    %v872 = vrot.slane %v855, 4
    %v873 = vsel %vm153, %v872, %v853
    %v875 = vunpack.c.l.s4 1983009808
    %v876 = vunpack.c.0.s8 %v875
    %v877 = vperm.slane %v873, %v876
    %v878 = vrot.slane %v866, 4
    %v879 = vsel %vm153, %v878, %v860
    %v880 = vrot.slane %v860, 4
    %v881 = vsel %vm153, %v866, %v880
    %v883 = vunpack.c.l.s4 1934713408
    %v884 = vunpack.c.0.s8 %v883
    %v885 = vperm.slane %v879, %v884
    %v887 = vunpack.c.l.s4 1934713408
    %v888 = vunpack.c.0.s8 %v887
    %v889 = vperm.slane %v881, %v888
    %v890 = vrot.slane %v877, 4
    %v891 = vsel %vm153, %v890, %v871
    %v892 = vrot.slane %v871, 4
    %v893 = vsel %vm153, %v877, %v892
    %v895 = vunpack.c.l.s4 1934713408
    %v896 = vunpack.c.0.s8 %v895
    %v897 = vperm.slane %v891, %v896
    %v899 = vunpack.c.l.s4 1934713408
    %v900 = vunpack.c.0.s8 %v899
    %v901 = vperm.slane %v893, %v900
    %v902 = vrot.slane %v897, 4
    %v903 = vsel %vm153, %v902, %v885
    %v904 = vrot.slane %v885, 4
    %v905 = vsel %vm153, %v897, %v904
    %v906 = vrot.slane %v901, 4
    %v907 = vsel %vm153, %v906, %v889
    %v908 = vrot.slane %v889, 4
    %v909 = vsel %vm153, %v901, %v908
    %911 = vrot.lane.b32.xlu0 %v905, 8
    %v912 = vpop.permute.xlu0 %911
    %915 = vrot.lane.b32.xlu0 %v907, 16
    %v916 = vpop.permute.xlu0 %915
    %919 = vrot.lane.b32.xlu0 %v909, 24
    %v920 = vpop.permute.xlu0 %919
    %v922 = vsel %vm507, %v903, %v912
    %vm923 = vcmask 130048
    %v924 = vsel %vm923, %v922, %v916
    %vm925 = vcmask 195584
    %v926 = vsel %vm925, %v924, %v920
    %928 = vrot.lane.b32.xlu0 %v140, 120
    %v929 = vpop.permute.xlu0 %928
    %931 = vrot.lane.b32.xlu0 %v140, 112
    %v932 = vpop.permute.xlu0 %931
    %934 = vrot.lane.b32.xlu0 %v140, 104
    %v935 = vpop.permute.xlu0 %934
    %v937 = vrot.slane %v932, 4
    %v938 = vsel %vm153, %v937, %v140
    %v939 = vrot.slane %v140, 4
    %v940 = vsel %vm153, %v932, %v939
    %v942 = vunpack.c.l.s4 1983009808
    %v943 = vunpack.c.0.s8 %v942
    %v944 = vperm.slane %v938, %v943
    %v946 = vunpack.c.l.s4 1983009808
    %v947 = vunpack.c.0.s8 %v946
    %v948 = vperm.slane %v940, %v947
    %v949 = vrot.slane %v935, 4
    %v950 = vsel %vm153, %v949, %v929
    %v951 = vrot.slane %v929, 4
    %v952 = vsel %vm153, %v935, %v951
    %v954 = vunpack.c.l.s4 1983009808
    %v955 = vunpack.c.0.s8 %v954
    %v956 = vperm.slane %v950, %v955
    %v958 = vunpack.c.l.s4 1983009808
    %v959 = vunpack.c.0.s8 %v958
    %v960 = vperm.slane %v952, %v959
    %v961 = vrot.slane %v956, 4
    %v962 = vsel %vm153, %v961, %v944
    %v963 = vrot.slane %v944, 4
    %v964 = vsel %vm153, %v956, %v963
    %v966 = vunpack.c.l.s4 1934713408
    %v967 = vunpack.c.0.s8 %v966
    %v968 = vperm.slane %v962, %v967
    %v970 = vunpack.c.l.s4 1934713408
    %v971 = vunpack.c.0.s8 %v970
    %v972 = vperm.slane %v964, %v971
    %v973 = vrot.slane %v960, 4
    %v974 = vsel %vm153, %v973, %v948
    %v975 = vrot.slane %v948, 4
    %v976 = vsel %vm153, %v960, %v975
    %v978 = vunpack.c.l.s4 1934713408
    %v979 = vunpack.c.0.s8 %v978
    %v980 = vperm.slane %v974, %v979
    %v982 = vunpack.c.l.s4 1934713408
    %v983 = vunpack.c.0.s8 %v982
    %v984 = vperm.slane %v976, %v983
    %v985 = vrot.slane %v968, 4
    %v986 = vsel %vm153, 0.0, %v985
    %v987 = vrot.slane %v972, 4
    %v988 = vsel %vm153, 0.0, %v987
    %v989 = vrot.slane %v980, 4
    %v990 = vsel %vm153, 0.0, %v989
    %v991 = vrot.slane %v984, 4
    %v992 = vsel %vm153, 0.0, %v991
    %v993 = vsel %vm153, %v987, %v968
    %v995 = vunpack.c.l.s4 1983009808
    %v996 = vunpack.c.0.s8 %v995
    %v997 = vperm.slane %v993, %v996
    %v998 = vrot.slane %v988, 4
    %v999 = vsel %vm153, %v998, %v986
    %v1001 = vunpack.c.l.s4 1983009808
    %v1002 = vunpack.c.0.s8 %v1001
    %v1003 = vperm.slane %v999, %v1002
    %v1004 = vsel %vm153, %v991, %v980
    %v1006 = vunpack.c.l.s4 1983009808
    %v1007 = vunpack.c.0.s8 %v1006
    %v1008 = vperm.slane %v1004, %v1007
    %v1009 = vrot.slane %v992, 4
    %v1010 = vsel %vm153, %v1009, %v990
    %v1012 = vunpack.c.l.s4 1983009808
    %v1013 = vunpack.c.0.s8 %v1012
    %v1014 = vperm.slane %v1010, %v1013
    %v1015 = vrot.slane %v1003, 4
    %v1016 = vsel %vm153, %v1015, %v997
    %v1017 = vrot.slane %v997, 4
    %v1018 = vsel %vm153, %v1003, %v1017
    %v1020 = vunpack.c.l.s4 1934713408
    %v1021 = vunpack.c.0.s8 %v1020
    %v1022 = vperm.slane %v1016, %v1021
    %v1024 = vunpack.c.l.s4 1934713408
    %v1025 = vunpack.c.0.s8 %v1024
    %v1026 = vperm.slane %v1018, %v1025
    %v1027 = vrot.slane %v1014, 4
    %v1028 = vsel %vm153, %v1027, %v1008
    %v1029 = vrot.slane %v1008, 4
    %v1030 = vsel %vm153, %v1014, %v1029
    %v1032 = vunpack.c.l.s4 1934713408
    %v1033 = vunpack.c.0.s8 %v1032
    %v1034 = vperm.slane %v1028, %v1033
    %v1036 = vunpack.c.l.s4 1934713408
    %v1037 = vunpack.c.0.s8 %v1036
    %v1038 = vperm.slane %v1030, %v1037
    %v1039 = vrot.slane %v1034, 4
    %v1040 = vsel %vm153, %v1039, %v1022
    %v1041 = vrot.slane %v1022, 4
    %v1042 = vsel %vm153, %v1034, %v1041
    %v1043 = vrot.slane %v1038, 4
    %v1044 = vsel %vm153, %v1043, %v1026
    %v1045 = vrot.slane %v1026, 4
    %v1046 = vsel %vm153, %v1038, %v1045
    %1047 = vrot.lane.b32.xlu0 %v140, 96
    %v1048 = vpop.permute.xlu0 %1047
    %1049 = vrot.lane.b32.xlu0 %v929, 96
    %v1050 = vpop.permute.xlu0 %1049
    %1051 = vrot.lane.b32.xlu0 %v932, 96
    %v1052 = vpop.permute.xlu0 %1051
    %1053 = vrot.lane.b32.xlu0 %v935, 96
    %v1054 = vpop.permute.xlu0 %1053
    %v1059 = vrot.slane %v1052, 4
    %v1060 = vsel %vm153, %v1059, %v1048
    %v1061 = vrot.slane %v1048, 4
    %v1062 = vsel %vm153, %v1052, %v1061
    %v1064 = vunpack.c.l.s4 1983009808
    %v1065 = vunpack.c.0.s8 %v1064
    %v1066 = vperm.slane %v1060, %v1065
    %v1068 = vunpack.c.l.s4 1983009808
    %v1069 = vunpack.c.0.s8 %v1068
    %v1070 = vperm.slane %v1062, %v1069
    %v1071 = vrot.slane %v1054, 4
    %v1072 = vsel %vm153, %v1071, %v1050
    %v1073 = vrot.slane %v1050, 4
    %v1074 = vsel %vm153, %v1054, %v1073
    %v1076 = vunpack.c.l.s4 1983009808
    %v1077 = vunpack.c.0.s8 %v1076
    %v1078 = vperm.slane %v1072, %v1077
    %v1080 = vunpack.c.l.s4 1983009808
    %v1081 = vunpack.c.0.s8 %v1080
    %v1082 = vperm.slane %v1074, %v1081
    %v1083 = vrot.slane %v1078, 4
    %v1084 = vsel %vm153, %v1083, %v1066
    %v1085 = vrot.slane %v1066, 4
    %v1086 = vsel %vm153, %v1078, %v1085
    %v1088 = vunpack.c.l.s4 1934713408
    %v1089 = vunpack.c.0.s8 %v1088
    %v1090 = vperm.slane %v1084, %v1089
    %v1092 = vunpack.c.l.s4 1934713408
    %v1093 = vunpack.c.0.s8 %v1092
    %v1094 = vperm.slane %v1086, %v1093
    %v1095 = vrot.slane %v1082, 4
    %v1096 = vsel %vm153, %v1095, %v1070
    %v1097 = vrot.slane %v1070, 4
    %v1098 = vsel %vm153, %v1082, %v1097
    %v1100 = vunpack.c.l.s4 1934713408
    %v1101 = vunpack.c.0.s8 %v1100
    %v1102 = vperm.slane %v1096, %v1101
    %v1104 = vunpack.c.l.s4 1934713408
    %v1105 = vunpack.c.0.s8 %v1104
    %v1106 = vperm.slane %v1098, %v1105
    %v1107 = vrot.slane %v1090, 4
    %v1108 = vsel %vm153, 0.0, %v1107
    %v1109 = vrot.slane %v1094, 4
    %v1110 = vsel %vm153, 0.0, %v1109
    %v1111 = vrot.slane %v1102, 4
    %v1112 = vsel %vm153, 0.0, %v1111
    %v1113 = vrot.slane %v1106, 4
    %v1114 = vsel %vm153, 0.0, %v1113
    %v1115 = vsel %vm153, %v1109, %v1090
    %v1117 = vunpack.c.l.s4 1983009808
    %v1118 = vunpack.c.0.s8 %v1117
    %v1119 = vperm.slane %v1115, %v1118
    %v1120 = vrot.slane %v1110, 4
    %v1121 = vsel %vm153, %v1120, %v1108
    %v1123 = vunpack.c.l.s4 1983009808
    %v1124 = vunpack.c.0.s8 %v1123
    %v1125 = vperm.slane %v1121, %v1124
    %v1126 = vsel %vm153, %v1113, %v1102
    %v1128 = vunpack.c.l.s4 1983009808
    %v1129 = vunpack.c.0.s8 %v1128
    %v1130 = vperm.slane %v1126, %v1129
    %v1131 = vrot.slane %v1114, 4
    %v1132 = vsel %vm153, %v1131, %v1112
    %v1134 = vunpack.c.l.s4 1983009808
    %v1135 = vunpack.c.0.s8 %v1134
    %v1136 = vperm.slane %v1132, %v1135
    %v1137 = vrot.slane %v1125, 4
    %v1138 = vsel %vm153, %v1137, %v1119
    %v1139 = vrot.slane %v1119, 4
    %v1140 = vsel %vm153, %v1125, %v1139
    %v1142 = vunpack.c.l.s4 1934713408
    %v1143 = vunpack.c.0.s8 %v1142
    %v1144 = vperm.slane %v1138, %v1143
    %v1146 = vunpack.c.l.s4 1934713408
    %v1147 = vunpack.c.0.s8 %v1146
    %v1148 = vperm.slane %v1140, %v1147
    %v1149 = vrot.slane %v1136, 4
    %v1150 = vsel %vm153, %v1149, %v1130
    %v1151 = vrot.slane %v1130, 4
    %v1152 = vsel %vm153, %v1136, %v1151
    %v1154 = vunpack.c.l.s4 1934713408
    %v1155 = vunpack.c.0.s8 %v1154
    %v1156 = vperm.slane %v1150, %v1155
    %v1158 = vunpack.c.l.s4 1934713408
    %v1159 = vunpack.c.0.s8 %v1158
    %v1160 = vperm.slane %v1152, %v1159
    %v1161 = vrot.slane %v1156, 4
    %v1162 = vsel %vm153, %v1161, %v1144
    %v1163 = vrot.slane %v1144, 4
    %v1164 = vsel %vm153, %v1156, %v1163
    %v1165 = vrot.slane %v1160, 4
    %v1166 = vsel %vm153, %v1165, %v1148
    %v1167 = vrot.slane %v1148, 4
    %v1168 = vsel %vm153, %v1160, %v1167
    %1169 = vrot.lane.b32.xlu0 %v140, 64
    %v1170 = vpop.permute.xlu0 %1169
    %1171 = vrot.lane.b32.xlu0 %v929, 64
    %v1172 = vpop.permute.xlu0 %1171
    %1173 = vrot.lane.b32.xlu0 %v932, 64
    %v1174 = vpop.permute.xlu0 %1173
    %1175 = vrot.lane.b32.xlu0 %v935, 64
    %v1176 = vpop.permute.xlu0 %1175
    %v1181 = vrot.slane %v1174, 4
    %v1182 = vsel %vm153, %v1181, %v1170
    %v1183 = vrot.slane %v1170, 4
    %v1184 = vsel %vm153, %v1174, %v1183
    %v1186 = vunpack.c.l.s4 1983009808
    %v1187 = vunpack.c.0.s8 %v1186
    %v1188 = vperm.slane %v1182, %v1187
    %v1190 = vunpack.c.l.s4 1983009808
    %v1191 = vunpack.c.0.s8 %v1190
    %v1192 = vperm.slane %v1184, %v1191
    %v1193 = vrot.slane %v1176, 4
    %v1194 = vsel %vm153, %v1193, %v1172
    %v1195 = vrot.slane %v1172, 4
    %v1196 = vsel %vm153, %v1176, %v1195
    %v1198 = vunpack.c.l.s4 1983009808
    %v1199 = vunpack.c.0.s8 %v1198
    %v1200 = vperm.slane %v1194, %v1199
    %v1202 = vunpack.c.l.s4 1983009808
    %v1203 = vunpack.c.0.s8 %v1202
    %v1204 = vperm.slane %v1196, %v1203
    %v1205 = vrot.slane %v1200, 4
    %v1206 = vsel %vm153, %v1205, %v1188
    %v1207 = vrot.slane %v1188, 4
    %v1208 = vsel %vm153, %v1200, %v1207
    %v1210 = vunpack.c.l.s4 1934713408
    %v1211 = vunpack.c.0.s8 %v1210
    %v1212 = vperm.slane %v1206, %v1211
    %v1214 = vunpack.c.l.s4 1934713408
    %v1215 = vunpack.c.0.s8 %v1214
    %v1216 = vperm.slane %v1208, %v1215
    %v1217 = vrot.slane %v1204, 4
    %v1218 = vsel %vm153, %v1217, %v1192
    %v1219 = vrot.slane %v1192, 4
    %v1220 = vsel %vm153, %v1204, %v1219
    %v1222 = vunpack.c.l.s4 1934713408
    %v1223 = vunpack.c.0.s8 %v1222
    %v1224 = vperm.slane %v1218, %v1223
    %v1226 = vunpack.c.l.s4 1934713408
    %v1227 = vunpack.c.0.s8 %v1226
    %v1228 = vperm.slane %v1220, %v1227
    %v1229 = vrot.slane %v1212, 4
    %v1230 = vsel %vm153, 0.0, %v1229
    %v1231 = vrot.slane %v1216, 4
    %v1232 = vsel %vm153, 0.0, %v1231
    %v1233 = vrot.slane %v1224, 4
    %v1234 = vsel %vm153, 0.0, %v1233
    %v1235 = vrot.slane %v1228, 4
    %v1236 = vsel %vm153, 0.0, %v1235
    %v1237 = vsel %vm153, %v1231, %v1212
    %v1239 = vunpack.c.l.s4 1983009808
    %v1240 = vunpack.c.0.s8 %v1239
    %v1241 = vperm.slane %v1237, %v1240
    %v1242 = vrot.slane %v1232, 4
    %v1243 = vsel %vm153, %v1242, %v1230
    %v1245 = vunpack.c.l.s4 1983009808
    %v1246 = vunpack.c.0.s8 %v1245
    %v1247 = vperm.slane %v1243, %v1246
    %v1248 = vsel %vm153, %v1235, %v1224
    %v1250 = vunpack.c.l.s4 1983009808
    %v1251 = vunpack.c.0.s8 %v1250
    %v1252 = vperm.slane %v1248, %v1251
    %v1253 = vrot.slane %v1236, 4
    %v1254 = vsel %vm153, %v1253, %v1234
    %v1256 = vunpack.c.l.s4 1983009808
    %v1257 = vunpack.c.0.s8 %v1256
    %v1258 = vperm.slane %v1254, %v1257
    %v1259 = vrot.slane %v1247, 4
    %v1260 = vsel %vm153, %v1259, %v1241
    %v1261 = vrot.slane %v1241, 4
    %v1262 = vsel %vm153, %v1247, %v1261
    %v1264 = vunpack.c.l.s4 1934713408
    %v1265 = vunpack.c.0.s8 %v1264
    %v1266 = vperm.slane %v1260, %v1265
    %v1268 = vunpack.c.l.s4 1934713408
    %v1269 = vunpack.c.0.s8 %v1268
    %v1270 = vperm.slane %v1262, %v1269
    %v1271 = vrot.slane %v1258, 4
    %v1272 = vsel %vm153, %v1271, %v1252
    %v1273 = vrot.slane %v1252, 4
    %v1274 = vsel %vm153, %v1258, %v1273
    %v1276 = vunpack.c.l.s4 1934713408
    %v1277 = vunpack.c.0.s8 %v1276
    %v1278 = vperm.slane %v1272, %v1277
    %v1280 = vunpack.c.l.s4 1934713408
    %v1281 = vunpack.c.0.s8 %v1280
    %v1282 = vperm.slane %v1274, %v1281
    %v1283 = vrot.slane %v1278, 4
    %v1284 = vsel %vm153, %v1283, %v1266
    %v1285 = vrot.slane %v1266, 4
    %v1286 = vsel %vm153, %v1278, %v1285
    %v1287 = vrot.slane %v1282, 4
    %v1288 = vsel %vm153, %v1287, %v1270
    %v1289 = vrot.slane %v1270, 4
    %v1290 = vsel %vm153, %v1282, %v1289
    %v1292 = vsel %vm507, %v1040, 0
    %v1295 = vsel %vm507, %v1162, 0
    %1297 = vmatpush.xpose.msra.mxu0 0.0
    %1298 = vmatpush.xpose.msra.mxu0 0.0
    %1299 = vmatpush.xpose.msra.mxu0 0.0
    %1300 = vmatpush.xpose.msra.mxu0 0.0
    %1301 = vmatpush.xpose.msra.mxu0 0.0
    %1302 = vmatpush.xpose.msra.mxu0 0.0
    %1303 = vmatpush.xpose.msra.mxu0 0.0
    %1304 = vmatpush.xpose.msra.mxu0 0.0
    %1305 = vmatpush.xpose.msra.mxu0 0.0
    %1306 = vmatpush.xpose.msra.mxu0 0.0
    %1307 = vmatpush.xpose.msra.mxu0 0.0
    %1308 = vmatpush.xpose.msra.mxu0 0.0
    %1309 = vmatpush.xpose.msra.mxu0 0.0
    %1310 = vmatpush.xpose.msra.mxu0 0.0
    %1311 = vmatpush.xpose.msra.mxu0 0.0
    %1312 = vmatpush.xpose.msra.mxu0 %v1295
    %1313 = vmatmul.f32.gmra.mxu0 %v1292
    %v1314 = vpop.f32.mrf.mxu0
    %v1315 = vadd.f32 0.0, %v1314
    %1316 = vdwg.mxu0
    %v1318 = vsel %vm507, %v1042, 0
    %v1321 = vsel %vm507, %v1164, 0
    %1323 = vmatpush.xpose.msra.mxu0 0.0
    %1324 = vmatpush.xpose.msra.mxu0 0.0
    %1325 = vmatpush.xpose.msra.mxu0 0.0
    %1326 = vmatpush.xpose.msra.mxu0 0.0
    %1327 = vmatpush.xpose.msra.mxu0 0.0
    %1328 = vmatpush.xpose.msra.mxu0 0.0
    %1329 = vmatpush.xpose.msra.mxu0 0.0
    %1330 = vmatpush.xpose.msra.mxu0 0.0
    %1331 = vmatpush.xpose.msra.mxu0 0.0
    %1332 = vmatpush.xpose.msra.mxu0 0.0
    %1333 = vmatpush.xpose.msra.mxu0 0.0
    %1334 = vmatpush.xpose.msra.mxu0 0.0
    %1335 = vmatpush.xpose.msra.mxu0 0.0
    %1336 = vmatpush.xpose.msra.mxu0 0.0
    %1337 = vmatpush.xpose.msra.mxu0 0.0
    %1338 = vmatpush.xpose.msra.mxu0 %v1321
    %1339 = vmatmul.f32.gmra.mxu0 %v1318
    %v1340 = vpop.f32.mrf.mxu0
    %v1341 = vadd.f32 0.0, %v1340
    %1342 = vdwg.mxu0
    %v1344 = vsel %vm507, %v1044, 0
    %v1347 = vsel %vm507, %v1166, 0
    %1349 = vmatpush.xpose.msra.mxu0 0.0
    %1350 = vmatpush.xpose.msra.mxu0 0.0
    %1351 = vmatpush.xpose.msra.mxu0 0.0
    %1352 = vmatpush.xpose.msra.mxu0 0.0
    %1353 = vmatpush.xpose.msra.mxu0 0.0
    %1354 = vmatpush.xpose.msra.mxu0 0.0
    %1355 = vmatpush.xpose.msra.mxu0 0.0
    %1356 = vmatpush.xpose.msra.mxu0 0.0
    %1357 = vmatpush.xpose.msra.mxu0 0.0
    %1358 = vmatpush.xpose.msra.mxu0 0.0
    %1359 = vmatpush.xpose.msra.mxu0 0.0
    %1360 = vmatpush.xpose.msra.mxu0 0.0
    %1361 = vmatpush.xpose.msra.mxu0 0.0
    %1362 = vmatpush.xpose.msra.mxu0 0.0
    %1363 = vmatpush.xpose.msra.mxu0 0.0
    %1364 = vmatpush.xpose.msra.mxu0 %v1347
    %1365 = vmatmul.f32.gmra.mxu0 %v1344
    %v1366 = vpop.f32.mrf.mxu0
    %v1367 = vadd.f32 0.0, %v1366
    %1368 = vdwg.mxu0
    %v1370 = vsel %vm507, %v1046, 0
    %v1373 = vsel %vm507, %v1168, 0
    %1375 = vmatpush.xpose.msra.mxu0 0.0
    %1376 = vmatpush.xpose.msra.mxu0 0.0
    %1377 = vmatpush.xpose.msra.mxu0 0.0
    %1378 = vmatpush.xpose.msra.mxu0 0.0
    %1379 = vmatpush.xpose.msra.mxu0 0.0
    %1380 = vmatpush.xpose.msra.mxu0 0.0
    %1381 = vmatpush.xpose.msra.mxu0 0.0
    %1382 = vmatpush.xpose.msra.mxu0 0.0
    %1383 = vmatpush.xpose.msra.mxu0 0.0
    %1384 = vmatpush.xpose.msra.mxu0 0.0
    %1385 = vmatpush.xpose.msra.mxu0 0.0
    %1386 = vmatpush.xpose.msra.mxu0 0.0
    %1387 = vmatpush.xpose.msra.mxu0 0.0
    %1388 = vmatpush.xpose.msra.mxu0 0.0
    %1389 = vmatpush.xpose.msra.mxu0 0.0
    %1390 = vmatpush.xpose.msra.mxu0 %v1373
    %1391 = vmatmul.f32.gmra.mxu0 %v1370
    %v1392 = vpop.f32.mrf.mxu0
    %v1393 = vadd.f32 0.0, %v1392
    %1394 = vdwg.mxu0
    %v1395 = vsel %vm507, %v1315, -inf
    %1396 = vmax.xlane.f32.xlu0 %v1395
    %v1397 = vpop.xlane.xlu0 %1396
    %v1398 = vsel %vm507, %v1341, -inf
    %1399 = vmax.xlane.f32.xlu0 %v1398
    %v1400 = vpop.xlane.xlu0 %1399
    %v1401 = vsel %vm507, %v1367, -inf
    %1402 = vmax.xlane.f32.xlu0 %v1401
    %v1403 = vpop.xlane.xlu0 %1402
    %v1404 = vsel %vm507, %v1393, -inf
    %1405 = vmax.xlane.f32.xlu0 %v1404
    %v1406 = vpop.xlane.xlu0 %1405
    %v1407 = vsub.f32 %v1315, %v1397
    %v1408 = vsub.f32 %v1341, %v1400
    %v1409 = vsub.f32 %v1367, %v1403
    %v1410 = vsub.f32 %v1393, %v1406
    %v1411 = vmul.f32 %v1407, 1.442695
    %v1412 = vpow.pop %v1411
    %v1413 = vmul.f32 %v1408, 1.442695
    %v1414 = vpow.pop %v1413
    %v1415 = vmul.f32 %v1409, 1.442695
    %v1416 = vpow.pop %v1415
    %v1417 = vmul.f32 %v1410, 1.442695
    %v1418 = vpow.pop %v1417
    %v1419 = vsel %vm507, %v1412, 0.0
    %1420 = vadd.xlane.f32.xlu0 %v1419
    %v1421 = vpop.xlane.xlu0 %1420
    %v1422 = vsel %vm507, %v1414, 0.0
    %1423 = vadd.xlane.f32.xlu0 %v1422
    %v1424 = vpop.xlane.xlu0 %1423
    %v1425 = vsel %vm507, %v1416, 0.0
    %1426 = vadd.xlane.f32.xlu0 %v1425
    %v1427 = vpop.xlane.xlu0 %1426
    %v1428 = vsel %vm507, %v1418, 0.0
    %1429 = vadd.xlane.f32.xlu0 %v1428
    %v1430 = vpop.xlane.xlu0 %1429
    %v1431 = vrcp.pop %v1421
    %v1432 = vmul.f32 %v1421, %v1431
    %v1433 = vsub.f32 1.0, %v1432
    %v1434 = vmul.f32 %v1431, %v1433
    %v1435 = vadd.f32 %v1431, %v1434
    %vm1436 = vweird.f32 %v1421
    %vm1437 = vweird.f32 %v1431
    %vm1438 = vmor %vm1436, %vm1437
    %v1439 = vsel %vm1438, %v1431, %v1435
    %v1440 = vand.u32 2147483647, %v1421
    %vm1441 = vcmp.eq.f32.partialorder %v1440, 8.507059e+37
    %v1442 = vand.u32 %v1421, 2147483648
    %v1443 = vor.u32 1.1754944e-38, %v1442
    %v1444 = vsel %vm1441, %v1443, %v1439
    %v1445 = vmul.f32 %v1412, %v1444
    %v1446 = vrcp.pop %v1424
    %v1447 = vmul.f32 %v1424, %v1446
    %v1448 = vsub.f32 1.0, %v1447
    %v1449 = vmul.f32 %v1446, %v1448
    %v1450 = vadd.f32 %v1446, %v1449
    %vm1451 = vweird.f32 %v1424
    %vm1452 = vweird.f32 %v1446
    %vm1453 = vmor %vm1451, %vm1452
    %v1454 = vsel %vm1453, %v1446, %v1450
    %v1455 = vand.u32 2147483647, %v1424
    %vm1456 = vcmp.eq.f32.partialorder %v1455, 8.507059e+37
    %v1457 = vand.u32 %v1424, 2147483648
    %v1458 = vor.u32 1.1754944e-38, %v1457
    %v1459 = vsel %vm1456, %v1458, %v1454
    %v1460 = vmul.f32 %v1414, %v1459
    %v1461 = vrcp.pop %v1427
    %v1462 = vmul.f32 %v1427, %v1461
    %v1463 = vsub.f32 1.0, %v1462
    %v1464 = vmul.f32 %v1461, %v1463
    %v1465 = vadd.f32 %v1461, %v1464
    %vm1466 = vweird.f32 %v1427
    %vm1467 = vweird.f32 %v1461
    %vm1468 = vmor %vm1466, %vm1467
    %v1469 = vsel %vm1468, %v1461, %v1465
    %v1470 = vand.u32 2147483647, %v1427
    %vm1471 = vcmp.eq.f32.partialorder %v1470, 8.507059e+37
    %v1472 = vand.u32 %v1427, 2147483648
    %v1473 = vor.u32 1.1754944e-38, %v1472
    %v1474 = vsel %vm1471, %v1473, %v1469
    %v1475 = vmul.f32 %v1416, %v1474
    %v1476 = vrcp.pop %v1430
    %v1477 = vmul.f32 %v1430, %v1476
    %v1478 = vsub.f32 1.0, %v1477
    %v1479 = vmul.f32 %v1476, %v1478
    %v1480 = vadd.f32 %v1476, %v1479
    %vm1481 = vweird.f32 %v1430
    %vm1482 = vweird.f32 %v1476
    %vm1483 = vmor %vm1481, %vm1482
    %v1484 = vsel %vm1483, %v1476, %v1480
    %v1485 = vand.u32 2147483647, %v1430
    %vm1486 = vcmp.eq.f32.partialorder %v1485, 8.507059e+37
    %v1487 = vand.u32 %v1430, 2147483648
    %v1488 = vor.u32 1.1754944e-38, %v1487
    %v1489 = vsel %vm1486, %v1488, %v1484
    %v1490 = vmul.f32 %v1418, %v1489
    %v1492 = vsel %vm507, %v1445, 0
    %1494 = vmatpush.msra.mxu0 0.0
    %1495 = vmatpush.msra.mxu0 0.0
    %1496 = vmatpush.msra.mxu0 0.0
    %1497 = vmatpush.msra.mxu0 0.0
    %1498 = vmatpush.msra.mxu0 0.0
    %1499 = vmatpush.msra.mxu0 0.0
    %1500 = vmatpush.msra.mxu0 0.0
    %1501 = vmatpush.msra.mxu0 0.0
    %1502 = vmatpush.msra.mxu0 0.0
    %1503 = vmatpush.msra.mxu0 0.0
    %1504 = vmatpush.msra.mxu0 0.0
    %1505 = vmatpush.msra.mxu0 0.0
    %1506 = vmatpush.msra.mxu0 0.0
    %1507 = vmatpush.msra.mxu0 0.0
    %1508 = vmatpush.msra.mxu0 0.0
    %1509 = vmatpush.msra.mxu0 %v1284
    %1510 = vmatmul.f32.gmra.mxu0 %v1492
    %v1511 = vpop.f32.mrf.mxu0
    %v1512 = vadd.f32 0.0, %v1511
    %1513 = vdwg.mxu0
    %v1515 = vsel %vm507, %v1460, 0
    %1517 = vmatpush.msra.mxu0 0.0
    %1518 = vmatpush.msra.mxu0 0.0
    %1519 = vmatpush.msra.mxu0 0.0
    %1520 = vmatpush.msra.mxu0 0.0
    %1521 = vmatpush.msra.mxu0 0.0
    %1522 = vmatpush.msra.mxu0 0.0
    %1523 = vmatpush.msra.mxu0 0.0
    %1524 = vmatpush.msra.mxu0 0.0
    %1525 = vmatpush.msra.mxu0 0.0
    %1526 = vmatpush.msra.mxu0 0.0
    %1527 = vmatpush.msra.mxu0 0.0
    %1528 = vmatpush.msra.mxu0 0.0
    %1529 = vmatpush.msra.mxu0 0.0
    %1530 = vmatpush.msra.mxu0 0.0
    %1531 = vmatpush.msra.mxu0 0.0
    %1532 = vmatpush.msra.mxu0 %v1286
    %1533 = vmatmul.f32.gmra.mxu0 %v1515
    %v1534 = vpop.f32.mrf.mxu0
    %v1535 = vadd.f32 0.0, %v1534
    %1536 = vdwg.mxu0
    %v1538 = vsel %vm507, %v1475, 0
    %1540 = vmatpush.msra.mxu0 0.0
    %1541 = vmatpush.msra.mxu0 0.0
    %1542 = vmatpush.msra.mxu0 0.0
    %1543 = vmatpush.msra.mxu0 0.0
    %1544 = vmatpush.msra.mxu0 0.0
    %1545 = vmatpush.msra.mxu0 0.0
    %1546 = vmatpush.msra.mxu0 0.0
    %1547 = vmatpush.msra.mxu0 0.0
    %1548 = vmatpush.msra.mxu0 0.0
    %1549 = vmatpush.msra.mxu0 0.0
    %1550 = vmatpush.msra.mxu0 0.0
    %1551 = vmatpush.msra.mxu0 0.0
    %1552 = vmatpush.msra.mxu0 0.0
    %1553 = vmatpush.msra.mxu0 0.0
    %1554 = vmatpush.msra.mxu0 0.0
    %1555 = vmatpush.msra.mxu0 %v1288
    %1556 = vmatmul.f32.gmra.mxu0 %v1538
    %v1557 = vpop.f32.mrf.mxu0
    %v1558 = vadd.f32 0.0, %v1557
    %1559 = vdwg.mxu0
    %v1561 = vsel %vm507, %v1490, 0
    %1563 = vmatpush.msra.mxu0 0.0
    %1564 = vmatpush.msra.mxu0 0.0
    %1565 = vmatpush.msra.mxu0 0.0
    %1566 = vmatpush.msra.mxu0 0.0
    %1567 = vmatpush.msra.mxu0 0.0
    %1568 = vmatpush.msra.mxu0 0.0
    %1569 = vmatpush.msra.mxu0 0.0
    %1570 = vmatpush.msra.mxu0 0.0
    %1571 = vmatpush.msra.mxu0 0.0
    %1572 = vmatpush.msra.mxu0 0.0
    %1573 = vmatpush.msra.mxu0 0.0
    %1574 = vmatpush.msra.mxu0 0.0
    %1575 = vmatpush.msra.mxu0 0.0
    %1576 = vmatpush.msra.mxu0 0.0
    %1577 = vmatpush.msra.mxu0 0.0
    %1578 = vmatpush.msra.mxu0 %v1290
    %1579 = vmatmul.f32.gmra.mxu0 %v1561
    %v1580 = vpop.f32.mrf.mxu0
    %v1581 = vadd.f32 0.0, %v1580
    %1582 = vdwg.mxu0
    %v1583 = vrot.slane %v1558, 4
    %v1584 = vsel %vm153, %v1583, %v1512
    %v1585 = vrot.slane %v1512, 4
    %v1586 = vsel %vm153, %v1558, %v1585
    %v1588 = vunpack.c.l.s4 1983009808
    %v1589 = vunpack.c.0.s8 %v1588
    %v1590 = vperm.slane %v1584, %v1589
    %v1592 = vunpack.c.l.s4 1983009808
    %v1593 = vunpack.c.0.s8 %v1592
    %v1594 = vperm.slane %v1586, %v1593
    %v1595 = vrot.slane %v1581, 4
    %v1596 = vsel %vm153, %v1595, %v1535
    %v1597 = vrot.slane %v1535, 4
    %v1598 = vsel %vm153, %v1581, %v1597
    %v1600 = vunpack.c.l.s4 1983009808
    %v1601 = vunpack.c.0.s8 %v1600
    %v1602 = vperm.slane %v1596, %v1601
    %v1604 = vunpack.c.l.s4 1983009808
    %v1605 = vunpack.c.0.s8 %v1604
    %v1606 = vperm.slane %v1598, %v1605
    %v1607 = vrot.slane %v1602, 4
    %v1608 = vsel %vm153, %v1607, %v1590
    %v1609 = vrot.slane %v1590, 4
    %v1610 = vsel %vm153, %v1602, %v1609
    %v1612 = vunpack.c.l.s4 1934713408
    %v1613 = vunpack.c.0.s8 %v1612
    %v1614 = vperm.slane %v1608, %v1613
    %v1616 = vunpack.c.l.s4 1934713408
    %v1617 = vunpack.c.0.s8 %v1616
    %v1618 = vperm.slane %v1610, %v1617
    %v1619 = vrot.slane %v1606, 4
    %v1620 = vsel %vm153, %v1619, %v1594
    %v1621 = vrot.slane %v1594, 4
    %v1622 = vsel %vm153, %v1606, %v1621
    %v1624 = vunpack.c.l.s4 1934713408
    %v1625 = vunpack.c.0.s8 %v1624
    %v1626 = vperm.slane %v1620, %v1625
    %v1628 = vunpack.c.l.s4 1934713408
    %v1629 = vunpack.c.0.s8 %v1628
    %v1630 = vperm.slane %v1622, %v1629
    %v1631 = vrot.slane %v1614, 4
    %v1632 = vsel %vm153, 0.0, %v1631
    %v1633 = vrot.slane %v1618, 4
    %v1634 = vsel %vm153, 0.0, %v1633
    %v1635 = vrot.slane %v1626, 4
    %v1636 = vsel %vm153, 0.0, %v1635
    %v1637 = vrot.slane %v1630, 4
    %v1638 = vsel %vm153, 0.0, %v1637
    %v1639 = vsel %vm153, %v1633, %v1614
    %v1641 = vunpack.c.l.s4 1983009808
    %v1642 = vunpack.c.0.s8 %v1641
    %v1643 = vperm.slane %v1639, %v1642
    %v1644 = vrot.slane %v1634, 4
    %v1645 = vsel %vm153, %v1644, %v1632
    %v1647 = vunpack.c.l.s4 1983009808
    %v1648 = vunpack.c.0.s8 %v1647
    %v1649 = vperm.slane %v1645, %v1648
    %v1650 = vsel %vm153, %v1637, %v1626
    %v1652 = vunpack.c.l.s4 1983009808
    %v1653 = vunpack.c.0.s8 %v1652
    %v1654 = vperm.slane %v1650, %v1653
    %v1655 = vrot.slane %v1638, 4
    %v1656 = vsel %vm153, %v1655, %v1636
    %v1658 = vunpack.c.l.s4 1983009808
    %v1659 = vunpack.c.0.s8 %v1658
    %v1660 = vperm.slane %v1656, %v1659
    %v1661 = vrot.slane %v1649, 4
    %v1662 = vsel %vm153, %v1661, %v1643
    %v1663 = vrot.slane %v1643, 4
    %v1664 = vsel %vm153, %v1649, %v1663
    %v1666 = vunpack.c.l.s4 1934713408
    %v1667 = vunpack.c.0.s8 %v1666
    %v1668 = vperm.slane %v1662, %v1667
    %v1670 = vunpack.c.l.s4 1934713408
    %v1671 = vunpack.c.0.s8 %v1670
    %v1672 = vperm.slane %v1664, %v1671
    %v1673 = vrot.slane %v1660, 4
    %v1674 = vsel %vm153, %v1673, %v1654
    %v1675 = vrot.slane %v1654, 4
    %v1676 = vsel %vm153, %v1660, %v1675
    %v1678 = vunpack.c.l.s4 1934713408
    %v1679 = vunpack.c.0.s8 %v1678
    %v1680 = vperm.slane %v1674, %v1679
    %v1682 = vunpack.c.l.s4 1934713408
    %v1683 = vunpack.c.0.s8 %v1682
    %v1684 = vperm.slane %v1676, %v1683
    %v1685 = vrot.slane %v1680, 4
    %v1686 = vsel %vm153, %v1685, %v1668
    %v1687 = vrot.slane %v1668, 4
    %v1688 = vsel %vm153, %v1680, %v1687
    %v1689 = vrot.slane %v1684, 4
    %v1690 = vsel %vm153, %v1689, %v1672
    %v1691 = vrot.slane %v1672, 4
    %v1692 = vsel %vm153, %v1684, %v1691
    %1694 = vrot.lane.b32.xlu0 %v1688, 8
    %v1695 = vpop.permute.xlu0 %1694
    %1698 = vrot.lane.b32.xlu0 %v1690, 16
    %v1699 = vpop.permute.xlu0 %1698
    %1702 = vrot.lane.b32.xlu0 %v1692, 24
    %v1703 = vpop.permute.xlu0 %1702
    %v1705 = vsel %vm507, %v1686, %v1695
    %v1706 = vsel %vm923, %v1705, %v1699
    %v1707 = vsel %vm925, %v1706, %v1703
    %v1708 = vld [vmem:[%s4] sm:$0xff]
    %v1709 = vld [vmem:[%s4 + $0x8] sm:$0xff]
    %v1710 = vld [vmem:[%s4 + $0x10] sm:$0xff]
    %v1711 = vld [vmem:[%s4 + $0x18] sm:$0xff]
    %v1713 = vsel %vm112, %v926, 0
    %v1716 = vsel %vm112, %v1707, 0
    %1718 = vmatpush.msra.mxu0 0.0
    %1719 = vmatpush.msra.mxu0 0.0
    %1720 = vmatpush.msra.mxu0 0.0
    %1721 = vmatpush.msra.mxu0 0.0
    %1722 = vmatpush.msra.mxu0 0.0
    %1723 = vmatpush.msra.mxu0 0.0
    %1724 = vmatpush.msra.mxu0 0.0
    %1725 = vmatpush.msra.mxu0 0.0
    %1726 = vmatpush.msra.mxu0 0.0
    %1727 = vmatpush.msra.mxu0 0.0
    %1728 = vmatpush.msra.mxu0 0.0
    %1729 = vmatpush.msra.mxu0 0.0
    %1730 = vmatpush.msra.mxu0 %v1711
    %1731 = vmatpush.msra.mxu0 %v1710
    %1732 = vmatpush.msra.mxu0 %v1709
    %1733 = vmatpush.msra.mxu0 %v1708
    %1734 = vmatmul.f32.gmra.mxu0 %v1713
    %v1735 = vpop.f32.mrf.mxu0
    %v1736 = vadd.f32 %v103, %v1735
    %1737 = vmatmul.f32.gmra.mxu0 %v1716
    %v1738 = vpop.f32.mrf.mxu0
    %v1739 = vadd.f32 %v106, %v1738
    %1740 = vdwg.mxu0
    %v1741 = vld [vmem:[%s5] sm:$0x1]
    %v1742 = vld [vmem:[%s6] sm:$0x1]
    %v1743 = vsel %vm112, %v1736, 0.0
    %1744 = vadd.xlane.f32.xlu0 %v1743
    %v1745 = vpop.xlane.xlu0 %1744
    %v1746 = vsel %vm112, %v1739, 0.0
    %1747 = vadd.xlane.f32.xlu0 %v1746
    %v1748 = vpop.xlane.xlu0 %1747
    %v1749 = vrcp.pop 32.0
    %v1750 = vmul.f32 32.0, %v1749
    %v1751 = vsub.f32 1.0, %v1750
    %v1752 = vmul.f32 %v1749, %v1751
    %v1753 = vadd.f32 %v1749, %v1752
    %vm1754 = vweird.f32 %v1749
    %v1755 = vsel %vm1754, %v1749, %v1753
    %v1756 = vmul.f32 %v1745, %v1755
    %v1757 = vmul.f32 %v1748, %v1755
    %v1758 = vmul.f32 %v1736, %v1736
    %v1759 = vmul.f32 %v1739, %v1739
    %v1760 = vsel %vm112, %v1758, 0.0
    %1761 = vadd.xlane.f32.xlu0 %v1760
    %v1762 = vpop.xlane.xlu0 %1761
    %v1763 = vsel %vm112, %v1759, 0.0
    %1764 = vadd.xlane.f32.xlu0 %v1763
    %v1765 = vpop.xlane.xlu0 %1764
    %v1766 = vmul.f32 %v1762, %v1755
    %v1767 = vmul.f32 %v1765, %v1755
    %v1768 = vmul.f32 %v1756, %v1756
    %v1769 = vmul.f32 %v1757, %v1757
    %v1770 = vsub.f32 %v1766, %v1768
    %v1771 = vsub.f32 %v1767, %v1769
    %v1772 = vsub.f32 %v1736, %v1756
    %v1773 = vsub.f32 %v1739, %v1757
    %v1774 = vadd.f32 %v1770, 1e-05
    %v1775 = vadd.f32 %v1771, 1e-05
    %v1776 = vrsqrt.pop %v1774
    %v1777 = vmul.f32 %v1776, %v1774
    %v1778 = vmul.f32 %v1777, %v1776
    %v1779 = vmul.f32 0.5, %v1778
    %v1780 = vsub.f32 1.5, %v1779
    %v1781 = vmul.f32 %v1776, %v1780
    %vm1782 = vweird.f32 %v1774
    %vm1783 = vweird.f32 %v1776
    %vm1784 = vmor %vm1782, %vm1783
    %v1785 = vsel %vm1784, %v1776, %v1781
    %v1786 = vrsqrt.pop %v1775
    %v1787 = vmul.f32 %v1786, %v1775
    %v1788 = vmul.f32 %v1787, %v1786
    %v1789 = vmul.f32 0.5, %v1788
    %v1790 = vsub.f32 1.5, %v1789
    %v1791 = vmul.f32 %v1786, %v1790
    %vm1792 = vweird.f32 %v1775
    %vm1793 = vweird.f32 %v1786
    %vm1794 = vmor %vm1792, %vm1793
    %v1795 = vsel %vm1794, %v1786, %v1791
    %v1796 = vmul.f32 %v1772, %v1785
    %v1797 = vmul.f32 %v1773, %v1795
    %v1799 = vperm.slane %v1741, 0
    %v1801 = vmul.f32 %v1796, %v1799
    %v1802 = vmul.f32 %v1797, %v1799
    %v1804 = vperm.slane %v1742, 0
    %v1806 = vadd.f32 %v1801, %v1804
    %v1807 = vadd.f32 %v1802, %v1804
    %v1808 = vld [vmem:[%s9] sm:$0xff]
    %v1809 = vld [vmem:[%s9 + $0x8] sm:$0xff]
    %v1810 = vld [vmem:[%s9 + $0x10] sm:$0xff]
    %v1811 = vld [vmem:[%s9 + $0x18] sm:$0xff]
    %v1812 = vld [vmem:[%s10] sm:$0x1]
    %v1814 = vperm.slane %v1812, 0
    %v1817 = vsel %vm112, %v1806, 0
    %v1820 = vsel %vm112, %v1807, 0
    %1822 = vmatpush.msra.mxu0 0.0
    %1823 = vmatpush.msra.mxu0 0.0
    %1824 = vmatpush.msra.mxu0 0.0
    %1825 = vmatpush.msra.mxu0 0.0
    %1826 = vmatpush.msra.mxu0 0.0
    %1827 = vmatpush.msra.mxu0 0.0
    %1828 = vmatpush.msra.mxu0 0.0
    %1829 = vmatpush.msra.mxu0 0.0
    %1830 = vmatpush.msra.mxu0 0.0
    %1831 = vmatpush.msra.mxu0 0.0
    %1832 = vmatpush.msra.mxu0 0.0
    %1833 = vmatpush.msra.mxu0 0.0
    %1834 = vmatpush.msra.mxu0 %v1811
    %1835 = vmatpush.msra.mxu0 %v1810
    %1836 = vmatpush.msra.mxu0 %v1809
    %1837 = vmatpush.msra.mxu0 %v1808
    %1838 = vmatmul.f32.gmra.mxu0 %v1817
    %v1839 = vpop.f32.mrf.mxu0
    %v1840 = vadd.f32 %v1814, %v1839
    %1841 = vmatmul.f32.gmra.mxu0 %v1820
    %v1842 = vpop.f32.mrf.mxu0
    %v1843 = vadd.f32 %v1814, %v1842
    %1844 = vdwg.mxu0
    %v1845 = vmax.f32 %v1840, 0.0
    %v1846 = vmax.f32 %v1843, 0.0
    %v1847 = vld [vmem:[%s11] sm:$0xff]
    %v1848 = vld [vmem:[%s11 + $0x8] sm:$0xff]
    %v1849 = vld [vmem:[%s11 + $0x10] sm:$0xff]
    %v1850 = vld [vmem:[%s11 + $0x18] sm:$0xff]
    %v1851 = vld [vmem:[%s11 + $0x20] sm:$0xff]
    %v1852 = vld [vmem:[%s11 + $0x28] sm:$0xff]
    %v1853 = vld [vmem:[%s11 + $0x30] sm:$0xff]
    %v1854 = vld [vmem:[%s11 + $0x38] sm:$0xff]
    %v1855 = vld [vmem:[%s12] sm:$0x1]
    %v1857 = vperm.slane %v1855, 0
    %vm1859 = vcmask 523264
    %v1861 = vsel %vm1859, %v1845, 0
    %v1864 = vsel %vm1859, %v1846, 0
    %1866 = vmatpush.msra.mxu0 0.0
    %1867 = vmatpush.msra.mxu0 0.0
    %1868 = vmatpush.msra.mxu0 0.0
    %1869 = vmatpush.msra.mxu0 0.0
    %1870 = vmatpush.msra.mxu0 0.0
    %1871 = vmatpush.msra.mxu0 0.0
    %1872 = vmatpush.msra.mxu0 0.0
    %1873 = vmatpush.msra.mxu0 0.0
    %1874 = vmatpush.msra.mxu0 %v1854
    %1875 = vmatpush.msra.mxu0 %v1853
    %1876 = vmatpush.msra.mxu0 %v1852
    %1877 = vmatpush.msra.mxu0 %v1851
    %1878 = vmatpush.msra.mxu0 %v1850
    %1879 = vmatpush.msra.mxu0 %v1849
    %1880 = vmatpush.msra.mxu0 %v1848
    %1881 = vmatpush.msra.mxu0 %v1847
    %1882 = vmatmul.f32.gmra.mxu0 %v1861
    %v1883 = vpop.f32.mrf.mxu0
    %v1884 = vadd.f32 %v1857, %v1883
    %1885 = vmatmul.f32.gmra.mxu0 %v1864
    %v1886 = vpop.f32.mrf.mxu0
    %v1887 = vadd.f32 %v1857, %v1886
    %1888 = vdwg.mxu0
    %v1889 = vadd.f32 %v1884, %v1806
    %v1890 = vadd.f32 %v1887, %v1807
    %v1891 = vld [vmem:[%s7] sm:$0x1]
    %v1892 = vld [vmem:[%s8] sm:$0x1]
    %v1893 = vsel %vm112, %v1889, 0.0
    %1894 = vadd.xlane.f32.xlu0 %v1893
    %v1895 = vpop.xlane.xlu0 %1894
    %v1896 = vsel %vm112, %v1890, 0.0
    %1897 = vadd.xlane.f32.xlu0 %v1896
    %v1898 = vpop.xlane.xlu0 %1897
    %v1899 = vmul.f32 %v1895, %v1755
    %v1900 = vmul.f32 %v1898, %v1755
    %v1901 = vmul.f32 %v1889, %v1889
    %v1902 = vmul.f32 %v1890, %v1890
    %v1903 = vsel %vm112, %v1901, 0.0
    %1904 = vadd.xlane.f32.xlu0 %v1903
    %v1905 = vpop.xlane.xlu0 %1904
    %v1906 = vsel %vm112, %v1902, 0.0
    %1907 = vadd.xlane.f32.xlu0 %v1906
    %v1908 = vpop.xlane.xlu0 %1907
    %v1909 = vmul.f32 %v1905, %v1755
    %v1910 = vmul.f32 %v1908, %v1755
    %v1911 = vmul.f32 %v1899, %v1899
    %v1912 = vmul.f32 %v1900, %v1900
    %v1913 = vsub.f32 %v1909, %v1911
    %v1914 = vsub.f32 %v1910, %v1912
    %v1915 = vsub.f32 %v1889, %v1899
    %v1916 = vsub.f32 %v1890, %v1900
    %v1917 = vadd.f32 %v1913, 1e-05
    %v1918 = vadd.f32 %v1914, 1e-05
    %v1919 = vrsqrt.pop %v1917
    %v1920 = vmul.f32 %v1919, %v1917
    %v1921 = vmul.f32 %v1920, %v1919
    %v1922 = vmul.f32 0.5, %v1921
    %v1923 = vsub.f32 1.5, %v1922
    %v1924 = vmul.f32 %v1919, %v1923
    %vm1925 = vweird.f32 %v1917
    %vm1926 = vweird.f32 %v1919
    %vm1927 = vmor %vm1925, %vm1926
    %v1928 = vsel %vm1927, %v1919, %v1924
    %v1929 = vrsqrt.pop %v1918
    %v1930 = vmul.f32 %v1929, %v1918
    %v1931 = vmul.f32 %v1930, %v1929
    %v1932 = vmul.f32 0.5, %v1931
    %v1933 = vsub.f32 1.5, %v1932
    %v1934 = vmul.f32 %v1929, %v1933
    %vm1935 = vweird.f32 %v1918
    %vm1936 = vweird.f32 %v1929
    %vm1937 = vmor %vm1935, %vm1936
    %v1938 = vsel %vm1937, %v1929, %v1934
    %v1939 = vmul.f32 %v1915, %v1928
    %v1940 = vmul.f32 %v1916, %v1938
    %v1942 = vperm.slane %v1891, 0
    %v1944 = vmul.f32 %v1939, %v1942
    %v1945 = vmul.f32 %v1940, %v1942
    %v1947 = vperm.slane %v1892, 0
    %v1949 = vadd.f32 %v1944, %v1947
    %v1950 = vadd.f32 %v1945, %v1947
    %s1951 = scalar_lea.vmem %s3, 32
    %v1952 = vld [vmem:[%s1951] sm:$0xff]
    %v1953 = vld [vmem:[%s1951 + $0x8] sm:$0xff]
    %v1954 = vld [vmem:[%s1951 + $0x10] sm:$0xff]
    %v1955 = vld [vmem:[%s1951 + $0x18] sm:$0xff]
    %v1957 = vsel %vm112, %v1949, 0
    %v1960 = vsel %vm112, %v1950, 0
    %1962 = vmatpush.msra.mxu0 0.0
    %1963 = vmatpush.msra.mxu0 0.0
    %1964 = vmatpush.msra.mxu0 0.0
    %1965 = vmatpush.msra.mxu0 0.0
    %1966 = vmatpush.msra.mxu0 0.0
    %1967 = vmatpush.msra.mxu0 0.0
    %1968 = vmatpush.msra.mxu0 0.0
    %1969 = vmatpush.msra.mxu0 0.0
    %1970 = vmatpush.msra.mxu0 0.0
    %1971 = vmatpush.msra.mxu0 0.0
    %1972 = vmatpush.msra.mxu0 0.0
    %1973 = vmatpush.msra.mxu0 0.0
    %1974 = vmatpush.msra.mxu0 %v1955
    %1975 = vmatpush.msra.mxu0 %v1954
    %1976 = vmatpush.msra.mxu0 %v1953
    %1977 = vmatpush.msra.mxu0 %v1952
    %1978 = vmatmul.f32.gmra.mxu0 %v1957
    %v1979 = vpop.f32.mrf.mxu0
    %v1980 = vadd.f32 0.0, %v1979
    %1981 = vmatmul.f32.gmra.mxu0 %v1960
    %v1982 = vpop.f32.mrf.mxu0
    %v1983 = vadd.f32 0.0, %v1982
    %1984 = vdwg.mxu0
    %1986 = vrot.lane.b32.xlu0 %v1980, 120
    %v1987 = vpop.permute.xlu0 %1986
    %1989 = vrot.lane.b32.xlu0 %v1980, 112
    %v1990 = vpop.permute.xlu0 %1989
    %1992 = vrot.lane.b32.xlu0 %v1980, 104
    %v1993 = vpop.permute.xlu0 %1992
    %v1995 = vrot.slane %v1990, 4
    %v1996 = vsel %vm153, %v1995, %v1980
    %v1997 = vrot.slane %v1980, 4
    %v1998 = vsel %vm153, %v1990, %v1997
    %v2000 = vunpack.c.l.s4 1983009808
    %v2001 = vunpack.c.0.s8 %v2000
    %v2002 = vperm.slane %v1996, %v2001
    %v2004 = vunpack.c.l.s4 1983009808
    %v2005 = vunpack.c.0.s8 %v2004
    %v2006 = vperm.slane %v1998, %v2005
    %v2007 = vrot.slane %v1993, 4
    %v2008 = vsel %vm153, %v2007, %v1987
    %v2009 = vrot.slane %v1987, 4
    %v2010 = vsel %vm153, %v1993, %v2009
    %v2012 = vunpack.c.l.s4 1983009808
    %v2013 = vunpack.c.0.s8 %v2012
    %v2014 = vperm.slane %v2008, %v2013
    %v2016 = vunpack.c.l.s4 1983009808
    %v2017 = vunpack.c.0.s8 %v2016
    %v2018 = vperm.slane %v2010, %v2017
    %v2019 = vrot.slane %v2014, 4
    %v2020 = vsel %vm153, %v2019, %v2002
    %v2021 = vrot.slane %v2002, 4
    %v2022 = vsel %vm153, %v2014, %v2021
    %v2024 = vunpack.c.l.s4 1934713408
    %v2025 = vunpack.c.0.s8 %v2024
    %v2026 = vperm.slane %v2020, %v2025
    %v2028 = vunpack.c.l.s4 1934713408
    %v2029 = vunpack.c.0.s8 %v2028
    %v2030 = vperm.slane %v2022, %v2029
    %v2031 = vrot.slane %v2018, 4
    %v2032 = vsel %vm153, %v2031, %v2006
    %v2033 = vrot.slane %v2006, 4
    %v2034 = vsel %vm153, %v2018, %v2033
    %v2036 = vunpack.c.l.s4 1934713408
    %v2037 = vunpack.c.0.s8 %v2036
    %v2038 = vperm.slane %v2032, %v2037
    %v2040 = vunpack.c.l.s4 1934713408
    %v2041 = vunpack.c.0.s8 %v2040
    %v2042 = vperm.slane %v2034, %v2041
    %v2043 = vrot.slane %v2026, 4
    %v2044 = vsel %vm153, 0.0, %v2043
    %v2045 = vrot.slane %v2030, 4
    %v2046 = vsel %vm153, 0.0, %v2045
    %v2047 = vrot.slane %v2038, 4
    %v2048 = vsel %vm153, 0.0, %v2047
    %v2049 = vrot.slane %v2042, 4
    %v2050 = vsel %vm153, 0.0, %v2049
    %v2051 = vsel %vm153, %v2045, %v2026
    %v2053 = vunpack.c.l.s4 1983009808
    %v2054 = vunpack.c.0.s8 %v2053
    %v2055 = vperm.slane %v2051, %v2054
    %v2056 = vrot.slane %v2046, 4
    %v2057 = vsel %vm153, %v2056, %v2044
    %v2059 = vunpack.c.l.s4 1983009808
    %v2060 = vunpack.c.0.s8 %v2059
    %v2061 = vperm.slane %v2057, %v2060
    %v2062 = vsel %vm153, %v2049, %v2038
    %v2064 = vunpack.c.l.s4 1983009808
    %v2065 = vunpack.c.0.s8 %v2064
    %v2066 = vperm.slane %v2062, %v2065
    %v2067 = vrot.slane %v2050, 4
    %v2068 = vsel %vm153, %v2067, %v2048
    %v2070 = vunpack.c.l.s4 1983009808
    %v2071 = vunpack.c.0.s8 %v2070
    %v2072 = vperm.slane %v2068, %v2071
    %v2073 = vrot.slane %v2061, 4
    %v2074 = vsel %vm153, %v2073, %v2055
    %v2075 = vrot.slane %v2055, 4
    %v2076 = vsel %vm153, %v2061, %v2075
    %v2078 = vunpack.c.l.s4 1934713408
    %v2079 = vunpack.c.0.s8 %v2078
    %v2080 = vperm.slane %v2074, %v2079
    %v2082 = vunpack.c.l.s4 1934713408
    %v2083 = vunpack.c.0.s8 %v2082
    %v2084 = vperm.slane %v2076, %v2083
    %v2085 = vrot.slane %v2072, 4
    %v2086 = vsel %vm153, %v2085, %v2066
    %v2087 = vrot.slane %v2066, 4
    %v2088 = vsel %vm153, %v2072, %v2087
    %v2090 = vunpack.c.l.s4 1934713408
    %v2091 = vunpack.c.0.s8 %v2090
    %v2092 = vperm.slane %v2086, %v2091
    %v2094 = vunpack.c.l.s4 1934713408
    %v2095 = vunpack.c.0.s8 %v2094
    %v2096 = vperm.slane %v2088, %v2095
    %v2097 = vrot.slane %v2092, 4
    %v2098 = vsel %vm153, %v2097, %v2080
    %v2099 = vrot.slane %v2080, 4
    %v2100 = vsel %vm153, %v2092, %v2099
    %v2101 = vrot.slane %v2096, 4
    %v2102 = vsel %vm153, %v2101, %v2084
    %v2103 = vrot.slane %v2084, 4
    %v2104 = vsel %vm153, %v2096, %v2103
    %2105 = vrot.lane.b32.xlu0 %v1980, 96
    %v2106 = vpop.permute.xlu0 %2105
    %2107 = vrot.lane.b32.xlu0 %v1987, 96
    %v2108 = vpop.permute.xlu0 %2107
    %2109 = vrot.lane.b32.xlu0 %v1990, 96
    %v2110 = vpop.permute.xlu0 %2109
    %2111 = vrot.lane.b32.xlu0 %v1993, 96
    %v2112 = vpop.permute.xlu0 %2111
    %v2117 = vrot.slane %v2110, 4
    %v2118 = vsel %vm153, %v2117, %v2106
    %v2119 = vrot.slane %v2106, 4
    %v2120 = vsel %vm153, %v2110, %v2119
    %v2122 = vunpack.c.l.s4 1983009808
    %v2123 = vunpack.c.0.s8 %v2122
    %v2124 = vperm.slane %v2118, %v2123
    %v2126 = vunpack.c.l.s4 1983009808
    %v2127 = vunpack.c.0.s8 %v2126
    %v2128 = vperm.slane %v2120, %v2127
    %v2129 = vrot.slane %v2112, 4
    %v2130 = vsel %vm153, %v2129, %v2108
    %v2131 = vrot.slane %v2108, 4
    %v2132 = vsel %vm153, %v2112, %v2131
    %v2134 = vunpack.c.l.s4 1983009808
    %v2135 = vunpack.c.0.s8 %v2134
    %v2136 = vperm.slane %v2130, %v2135
    %v2138 = vunpack.c.l.s4 1983009808
    %v2139 = vunpack.c.0.s8 %v2138
    %v2140 = vperm.slane %v2132, %v2139
    %v2141 = vrot.slane %v2136, 4
    %v2142 = vsel %vm153, %v2141, %v2124
    %v2143 = vrot.slane %v2124, 4
    %v2144 = vsel %vm153, %v2136, %v2143
    %v2146 = vunpack.c.l.s4 1934713408
    %v2147 = vunpack.c.0.s8 %v2146
    %v2148 = vperm.slane %v2142, %v2147
    %v2150 = vunpack.c.l.s4 1934713408
    %v2151 = vunpack.c.0.s8 %v2150
    %v2152 = vperm.slane %v2144, %v2151
    %v2153 = vrot.slane %v2140, 4
    %v2154 = vsel %vm153, %v2153, %v2128
    %v2155 = vrot.slane %v2128, 4
    %v2156 = vsel %vm153, %v2140, %v2155
    %v2158 = vunpack.c.l.s4 1934713408
    %v2159 = vunpack.c.0.s8 %v2158
    %v2160 = vperm.slane %v2154, %v2159
    %v2162 = vunpack.c.l.s4 1934713408
    %v2163 = vunpack.c.0.s8 %v2162
    %v2164 = vperm.slane %v2156, %v2163
    %v2165 = vrot.slane %v2148, 4
    %v2166 = vsel %vm153, 0.0, %v2165
    %v2167 = vrot.slane %v2152, 4
    %v2168 = vsel %vm153, 0.0, %v2167
    %v2169 = vrot.slane %v2160, 4
    %v2170 = vsel %vm153, 0.0, %v2169
    %v2171 = vrot.slane %v2164, 4
    %v2172 = vsel %vm153, 0.0, %v2171
    %v2173 = vsel %vm153, %v2167, %v2148
    %v2175 = vunpack.c.l.s4 1983009808
    %v2176 = vunpack.c.0.s8 %v2175
    %v2177 = vperm.slane %v2173, %v2176
    %v2178 = vrot.slane %v2168, 4
    %v2179 = vsel %vm153, %v2178, %v2166
    %v2181 = vunpack.c.l.s4 1983009808
    %v2182 = vunpack.c.0.s8 %v2181
    %v2183 = vperm.slane %v2179, %v2182
    %v2184 = vsel %vm153, %v2171, %v2160
    %v2186 = vunpack.c.l.s4 1983009808
    %v2187 = vunpack.c.0.s8 %v2186
    %v2188 = vperm.slane %v2184, %v2187
    %v2189 = vrot.slane %v2172, 4
    %v2190 = vsel %vm153, %v2189, %v2170
    %v2192 = vunpack.c.l.s4 1983009808
    %v2193 = vunpack.c.0.s8 %v2192
    %v2194 = vperm.slane %v2190, %v2193
    %v2195 = vrot.slane %v2183, 4
    %v2196 = vsel %vm153, %v2195, %v2177
    %v2197 = vrot.slane %v2177, 4
    %v2198 = vsel %vm153, %v2183, %v2197
    %v2200 = vunpack.c.l.s4 1934713408
    %v2201 = vunpack.c.0.s8 %v2200
    %v2202 = vperm.slane %v2196, %v2201
    %v2204 = vunpack.c.l.s4 1934713408
    %v2205 = vunpack.c.0.s8 %v2204
    %v2206 = vperm.slane %v2198, %v2205
    %v2207 = vrot.slane %v2194, 4
    %v2208 = vsel %vm153, %v2207, %v2188
    %v2209 = vrot.slane %v2188, 4
    %v2210 = vsel %vm153, %v2194, %v2209
    %v2212 = vunpack.c.l.s4 1934713408
    %v2213 = vunpack.c.0.s8 %v2212
    %v2214 = vperm.slane %v2208, %v2213
    %v2216 = vunpack.c.l.s4 1934713408
    %v2217 = vunpack.c.0.s8 %v2216
    %v2218 = vperm.slane %v2210, %v2217
    %v2219 = vrot.slane %v2214, 4
    %v2220 = vsel %vm153, %v2219, %v2202
    %v2221 = vrot.slane %v2202, 4
    %v2222 = vsel %vm153, %v2214, %v2221
    %v2223 = vrot.slane %v2218, 4
    %v2224 = vsel %vm153, %v2223, %v2206
    %v2225 = vrot.slane %v2206, 4
    %v2226 = vsel %vm153, %v2218, %v2225
    %2227 = vrot.lane.b32.xlu0 %v1980, 64
    %v2228 = vpop.permute.xlu0 %2227
    %2229 = vrot.lane.b32.xlu0 %v1987, 64
    %v2230 = vpop.permute.xlu0 %2229
    %2231 = vrot.lane.b32.xlu0 %v1990, 64
    %v2232 = vpop.permute.xlu0 %2231
    %2233 = vrot.lane.b32.xlu0 %v1993, 64
    %v2234 = vpop.permute.xlu0 %2233
    %v2239 = vrot.slane %v2232, 4
    %v2240 = vsel %vm153, %v2239, %v2228
    %v2241 = vrot.slane %v2228, 4
    %v2242 = vsel %vm153, %v2232, %v2241
    %v2244 = vunpack.c.l.s4 1983009808
    %v2245 = vunpack.c.0.s8 %v2244
    %v2246 = vperm.slane %v2240, %v2245
    %v2248 = vunpack.c.l.s4 1983009808
    %v2249 = vunpack.c.0.s8 %v2248
    %v2250 = vperm.slane %v2242, %v2249
    %v2251 = vrot.slane %v2234, 4
    %v2252 = vsel %vm153, %v2251, %v2230
    %v2253 = vrot.slane %v2230, 4
    %v2254 = vsel %vm153, %v2234, %v2253
    %v2256 = vunpack.c.l.s4 1983009808
    %v2257 = vunpack.c.0.s8 %v2256
    %v2258 = vperm.slane %v2252, %v2257
    %v2260 = vunpack.c.l.s4 1983009808
    %v2261 = vunpack.c.0.s8 %v2260
    %v2262 = vperm.slane %v2254, %v2261
    %v2263 = vrot.slane %v2258, 4
    %v2264 = vsel %vm153, %v2263, %v2246
    %v2265 = vrot.slane %v2246, 4
    %v2266 = vsel %vm153, %v2258, %v2265
    %v2268 = vunpack.c.l.s4 1934713408
    %v2269 = vunpack.c.0.s8 %v2268
    %v2270 = vperm.slane %v2264, %v2269
    %v2272 = vunpack.c.l.s4 1934713408
    %v2273 = vunpack.c.0.s8 %v2272
    %v2274 = vperm.slane %v2266, %v2273
    %v2275 = vrot.slane %v2262, 4
    %v2276 = vsel %vm153, %v2275, %v2250
    %v2277 = vrot.slane %v2250, 4
    %v2278 = vsel %vm153, %v2262, %v2277
    %v2280 = vunpack.c.l.s4 1934713408
    %v2281 = vunpack.c.0.s8 %v2280
    %v2282 = vperm.slane %v2276, %v2281
    %v2284 = vunpack.c.l.s4 1934713408
    %v2285 = vunpack.c.0.s8 %v2284
    %v2286 = vperm.slane %v2278, %v2285
    %v2287 = vrot.slane %v2270, 4
    %v2288 = vsel %vm153, 0.0, %v2287
    %v2289 = vrot.slane %v2274, 4
    %v2290 = vsel %vm153, 0.0, %v2289
    %v2291 = vrot.slane %v2282, 4
    %v2292 = vsel %vm153, 0.0, %v2291
    %v2293 = vrot.slane %v2286, 4
    %v2294 = vsel %vm153, 0.0, %v2293
    %v2295 = vsel %vm153, %v2289, %v2270
    %v2297 = vunpack.c.l.s4 1983009808
    %v2298 = vunpack.c.0.s8 %v2297
    %v2299 = vperm.slane %v2295, %v2298
    %v2300 = vrot.slane %v2290, 4
    %v2301 = vsel %vm153, %v2300, %v2288
    %v2303 = vunpack.c.l.s4 1983009808
    %v2304 = vunpack.c.0.s8 %v2303
    %v2305 = vperm.slane %v2301, %v2304
    %v2306 = vsel %vm153, %v2293, %v2282
    %v2308 = vunpack.c.l.s4 1983009808
    %v2309 = vunpack.c.0.s8 %v2308
    %v2310 = vperm.slane %v2306, %v2309
    %v2311 = vrot.slane %v2294, 4
    %v2312 = vsel %vm153, %v2311, %v2292
    %v2314 = vunpack.c.l.s4 1983009808
    %v2315 = vunpack.c.0.s8 %v2314
    %v2316 = vperm.slane %v2312, %v2315
    %v2317 = vrot.slane %v2305, 4
    %v2318 = vsel %vm153, %v2317, %v2299
    %v2319 = vrot.slane %v2299, 4
    %v2320 = vsel %vm153, %v2305, %v2319
    %v2322 = vunpack.c.l.s4 1934713408
    %v2323 = vunpack.c.0.s8 %v2322
    %v2324 = vperm.slane %v2318, %v2323
    %v2326 = vunpack.c.l.s4 1934713408
    %v2327 = vunpack.c.0.s8 %v2326
    %v2328 = vperm.slane %v2320, %v2327
    %v2329 = vrot.slane %v2316, 4
    %v2330 = vsel %vm153, %v2329, %v2310
    %v2331 = vrot.slane %v2310, 4
    %v2332 = vsel %vm153, %v2316, %v2331
    %v2334 = vunpack.c.l.s4 1934713408
    %v2335 = vunpack.c.0.s8 %v2334
    %v2336 = vperm.slane %v2330, %v2335
    %v2338 = vunpack.c.l.s4 1934713408
    %v2339 = vunpack.c.0.s8 %v2338
    %v2340 = vperm.slane %v2332, %v2339
    %v2341 = vrot.slane %v2336, 4
    %v2342 = vsel %vm153, %v2341, %v2324
    %v2343 = vrot.slane %v2324, 4
    %v2344 = vsel %vm153, %v2336, %v2343
    %v2345 = vrot.slane %v2340, 4
    %v2346 = vsel %vm153, %v2345, %v2328
    %v2347 = vrot.slane %v2328, 4
    %v2348 = vsel %vm153, %v2340, %v2347
    %v2350 = vsel %vm507, %v2098, 0
    %v2353 = vsel %vm507, %v2220, 0
    %2355 = vmatpush.xpose.msra.mxu0 0.0
    %2356 = vmatpush.xpose.msra.mxu0 0.0
    %2357 = vmatpush.xpose.msra.mxu0 0.0
    %2358 = vmatpush.xpose.msra.mxu0 0.0
    %2359 = vmatpush.xpose.msra.mxu0 0.0
    %2360 = vmatpush.xpose.msra.mxu0 0.0
    %2361 = vmatpush.xpose.msra.mxu0 0.0
    %2362 = vmatpush.xpose.msra.mxu0 0.0
    %2363 = vmatpush.xpose.msra.mxu0 0.0
    %2364 = vmatpush.xpose.msra.mxu0 0.0
    %2365 = vmatpush.xpose.msra.mxu0 0.0
    %2366 = vmatpush.xpose.msra.mxu0 0.0
    %2367 = vmatpush.xpose.msra.mxu0 0.0
    %2368 = vmatpush.xpose.msra.mxu0 0.0
    %2369 = vmatpush.xpose.msra.mxu0 0.0
    %2370 = vmatpush.xpose.msra.mxu0 %v2353
    %2371 = vmatmul.f32.gmra.mxu0 %v2350
    %v2372 = vpop.f32.mrf.mxu0
    %v2373 = vadd.f32 0.0, %v2372
    %2374 = vdwg.mxu0
    %v2376 = vsel %vm507, %v2100, 0
    %v2379 = vsel %vm507, %v2222, 0
    %2381 = vmatpush.xpose.msra.mxu0 0.0
    %2382 = vmatpush.xpose.msra.mxu0 0.0
    %2383 = vmatpush.xpose.msra.mxu0 0.0
    %2384 = vmatpush.xpose.msra.mxu0 0.0
    %2385 = vmatpush.xpose.msra.mxu0 0.0
    %2386 = vmatpush.xpose.msra.mxu0 0.0
    %2387 = vmatpush.xpose.msra.mxu0 0.0
    %2388 = vmatpush.xpose.msra.mxu0 0.0
    %2389 = vmatpush.xpose.msra.mxu0 0.0
    %2390 = vmatpush.xpose.msra.mxu0 0.0
    %2391 = vmatpush.xpose.msra.mxu0 0.0
    %2392 = vmatpush.xpose.msra.mxu0 0.0
    %2393 = vmatpush.xpose.msra.mxu0 0.0
    %2394 = vmatpush.xpose.msra.mxu0 0.0
    %2395 = vmatpush.xpose.msra.mxu0 0.0
    %2396 = vmatpush.xpose.msra.mxu0 %v2379
    %2397 = vmatmul.f32.gmra.mxu0 %v2376
    %v2398 = vpop.f32.mrf.mxu0
    %v2399 = vadd.f32 0.0, %v2398
    %2400 = vdwg.mxu0
    %v2402 = vsel %vm507, %v2102, 0
    %v2405 = vsel %vm507, %v2224, 0
    %2407 = vmatpush.xpose.msra.mxu0 0.0
    %2408 = vmatpush.xpose.msra.mxu0 0.0
    %2409 = vmatpush.xpose.msra.mxu0 0.0
    %2410 = vmatpush.xpose.msra.mxu0 0.0
    %2411 = vmatpush.xpose.msra.mxu0 0.0
    %2412 = vmatpush.xpose.msra.mxu0 0.0
    %2413 = vmatpush.xpose.msra.mxu0 0.0
    %2414 = vmatpush.xpose.msra.mxu0 0.0
    %2415 = vmatpush.xpose.msra.mxu0 0.0
    %2416 = vmatpush.xpose.msra.mxu0 0.0
    %2417 = vmatpush.xpose.msra.mxu0 0.0
    %2418 = vmatpush.xpose.msra.mxu0 0.0
    %2419 = vmatpush.xpose.msra.mxu0 0.0
    %2420 = vmatpush.xpose.msra.mxu0 0.0
    %2421 = vmatpush.xpose.msra.mxu0 0.0
    %2422 = vmatpush.xpose.msra.mxu0 %v2405
    %2423 = vmatmul.f32.gmra.mxu0 %v2402
    %v2424 = vpop.f32.mrf.mxu0
    %v2425 = vadd.f32 0.0, %v2424
    %2426 = vdwg.mxu0
    %v2428 = vsel %vm507, %v2104, 0
    %v2431 = vsel %vm507, %v2226, 0
    %2433 = vmatpush.xpose.msra.mxu0 0.0
    %2434 = vmatpush.xpose.msra.mxu0 0.0
    %2435 = vmatpush.xpose.msra.mxu0 0.0
    %2436 = vmatpush.xpose.msra.mxu0 0.0
    %2437 = vmatpush.xpose.msra.mxu0 0.0
    %2438 = vmatpush.xpose.msra.mxu0 0.0
    %2439 = vmatpush.xpose.msra.mxu0 0.0
    %2440 = vmatpush.xpose.msra.mxu0 0.0
    %2441 = vmatpush.xpose.msra.mxu0 0.0
    %2442 = vmatpush.xpose.msra.mxu0 0.0
    %2443 = vmatpush.xpose.msra.mxu0 0.0
    %2444 = vmatpush.xpose.msra.mxu0 0.0
    %2445 = vmatpush.xpose.msra.mxu0 0.0
    %2446 = vmatpush.xpose.msra.mxu0 0.0
    %2447 = vmatpush.xpose.msra.mxu0 0.0
    %2448 = vmatpush.xpose.msra.mxu0 %v2431
    %2449 = vmatmul.f32.gmra.mxu0 %v2428
    %v2450 = vpop.f32.mrf.mxu0
    %v2451 = vadd.f32 0.0, %v2450
    %2452 = vdwg.mxu0
    %v2453 = vsel %vm507, %v2373, -inf
    %2454 = vmax.xlane.f32.xlu0 %v2453
    %v2455 = vpop.xlane.xlu0 %2454
    %v2456 = vsel %vm507, %v2399, -inf
    %2457 = vmax.xlane.f32.xlu0 %v2456
    %v2458 = vpop.xlane.xlu0 %2457
    %v2459 = vsel %vm507, %v2425, -inf
    %2460 = vmax.xlane.f32.xlu0 %v2459
    %v2461 = vpop.xlane.xlu0 %2460
    %v2462 = vsel %vm507, %v2451, -inf
    %2463 = vmax.xlane.f32.xlu0 %v2462
    %v2464 = vpop.xlane.xlu0 %2463
    %v2465 = vsub.f32 %v2373, %v2455
    %v2466 = vsub.f32 %v2399, %v2458
    %v2467 = vsub.f32 %v2425, %v2461
    %v2468 = vsub.f32 %v2451, %v2464
    %v2469 = vmul.f32 %v2465, 1.442695
    %v2470 = vpow.pop %v2469
    %v2471 = vmul.f32 %v2466, 1.442695
    %v2472 = vpow.pop %v2471
    %v2473 = vmul.f32 %v2467, 1.442695
    %v2474 = vpow.pop %v2473
    %v2475 = vmul.f32 %v2468, 1.442695
    %v2476 = vpow.pop %v2475
    %v2477 = vsel %vm507, %v2470, 0.0
    %2478 = vadd.xlane.f32.xlu0 %v2477
    %v2479 = vpop.xlane.xlu0 %2478
    %v2480 = vsel %vm507, %v2472, 0.0
    %2481 = vadd.xlane.f32.xlu0 %v2480
    %v2482 = vpop.xlane.xlu0 %2481
    %v2483 = vsel %vm507, %v2474, 0.0
    %2484 = vadd.xlane.f32.xlu0 %v2483
    %v2485 = vpop.xlane.xlu0 %2484
    %v2486 = vsel %vm507, %v2476, 0.0
    %2487 = vadd.xlane.f32.xlu0 %v2486
    %v2488 = vpop.xlane.xlu0 %2487
    %v2489 = vrcp.pop %v2479
    %v2490 = vmul.f32 %v2479, %v2489
    %v2491 = vsub.f32 1.0, %v2490
    %v2492 = vmul.f32 %v2489, %v2491
    %v2493 = vadd.f32 %v2489, %v2492
    %vm2494 = vweird.f32 %v2479
    %vm2495 = vweird.f32 %v2489
    %vm2496 = vmor %vm2494, %vm2495
    %v2497 = vsel %vm2496, %v2489, %v2493
    %v2498 = vand.u32 2147483647, %v2479
    %vm2499 = vcmp.eq.f32.partialorder %v2498, 8.507059e+37
    %v2500 = vand.u32 %v2479, 2147483648
    %v2501 = vor.u32 1.1754944e-38, %v2500
    %v2502 = vsel %vm2499, %v2501, %v2497
    %v2503 = vmul.f32 %v2470, %v2502
    %v2504 = vrcp.pop %v2482
    %v2505 = vmul.f32 %v2482, %v2504
    %v2506 = vsub.f32 1.0, %v2505
    %v2507 = vmul.f32 %v2504, %v2506
    %v2508 = vadd.f32 %v2504, %v2507
    %vm2509 = vweird.f32 %v2482
    %vm2510 = vweird.f32 %v2504
    %vm2511 = vmor %vm2509, %vm2510
    %v2512 = vsel %vm2511, %v2504, %v2508
    %v2513 = vand.u32 2147483647, %v2482
    %vm2514 = vcmp.eq.f32.partialorder %v2513, 8.507059e+37
    %v2515 = vand.u32 %v2482, 2147483648
    %v2516 = vor.u32 1.1754944e-38, %v2515
    %v2517 = vsel %vm2514, %v2516, %v2512
    %v2518 = vmul.f32 %v2472, %v2517
    %v2519 = vrcp.pop %v2485
    %v2520 = vmul.f32 %v2485, %v2519
    %v2521 = vsub.f32 1.0, %v2520
    %v2522 = vmul.f32 %v2519, %v2521
    %v2523 = vadd.f32 %v2519, %v2522
    %vm2524 = vweird.f32 %v2485
    %vm2525 = vweird.f32 %v2519
    %vm2526 = vmor %vm2524, %vm2525
    %v2527 = vsel %vm2526, %v2519, %v2523
    %v2528 = vand.u32 2147483647, %v2485
    %vm2529 = vcmp.eq.f32.partialorder %v2528, 8.507059e+37
    %v2530 = vand.u32 %v2485, 2147483648
    %v2531 = vor.u32 1.1754944e-38, %v2530
    %v2532 = vsel %vm2529, %v2531, %v2527
    %v2533 = vmul.f32 %v2474, %v2532
    %v2534 = vrcp.pop %v2488
    %v2535 = vmul.f32 %v2488, %v2534
    %v2536 = vsub.f32 1.0, %v2535
    %v2537 = vmul.f32 %v2534, %v2536
    %v2538 = vadd.f32 %v2534, %v2537
    %vm2539 = vweird.f32 %v2488
    %vm2540 = vweird.f32 %v2534
    %vm2541 = vmor %vm2539, %vm2540
    %v2542 = vsel %vm2541, %v2534, %v2538
    %v2543 = vand.u32 2147483647, %v2488
    %vm2544 = vcmp.eq.f32.partialorder %v2543, 8.507059e+37
    %v2545 = vand.u32 %v2488, 2147483648
    %v2546 = vor.u32 1.1754944e-38, %v2545
    %v2547 = vsel %vm2544, %v2546, %v2542
    %v2548 = vmul.f32 %v2476, %v2547
    %v2550 = vsel %vm507, %v2503, 0
    %2552 = vmatpush.msra.mxu0 0.0
    %2553 = vmatpush.msra.mxu0 0.0
    %2554 = vmatpush.msra.mxu0 0.0
    %2555 = vmatpush.msra.mxu0 0.0
    %2556 = vmatpush.msra.mxu0 0.0
    %2557 = vmatpush.msra.mxu0 0.0
    %2558 = vmatpush.msra.mxu0 0.0
    %2559 = vmatpush.msra.mxu0 0.0
    %2560 = vmatpush.msra.mxu0 0.0
    %2561 = vmatpush.msra.mxu0 0.0
    %2562 = vmatpush.msra.mxu0 0.0
    %2563 = vmatpush.msra.mxu0 0.0
    %2564 = vmatpush.msra.mxu0 0.0
    %2565 = vmatpush.msra.mxu0 0.0
    %2566 = vmatpush.msra.mxu0 0.0
    %2567 = vmatpush.msra.mxu0 %v2342
    %2568 = vmatmul.f32.gmra.mxu0 %v2550
    %v2569 = vpop.f32.mrf.mxu0
    %v2570 = vadd.f32 0.0, %v2569
    %2571 = vdwg.mxu0
    %v2573 = vsel %vm507, %v2518, 0
    %2575 = vmatpush.msra.mxu0 0.0
    %2576 = vmatpush.msra.mxu0 0.0
    %2577 = vmatpush.msra.mxu0 0.0
    %2578 = vmatpush.msra.mxu0 0.0
    %2579 = vmatpush.msra.mxu0 0.0
    %2580 = vmatpush.msra.mxu0 0.0
    %2581 = vmatpush.msra.mxu0 0.0
    %2582 = vmatpush.msra.mxu0 0.0
    %2583 = vmatpush.msra.mxu0 0.0
    %2584 = vmatpush.msra.mxu0 0.0
    %2585 = vmatpush.msra.mxu0 0.0
    %2586 = vmatpush.msra.mxu0 0.0
    %2587 = vmatpush.msra.mxu0 0.0
    %2588 = vmatpush.msra.mxu0 0.0
    %2589 = vmatpush.msra.mxu0 0.0
    %2590 = vmatpush.msra.mxu0 %v2344
    %2591 = vmatmul.f32.gmra.mxu0 %v2573
    %v2592 = vpop.f32.mrf.mxu0
    %v2593 = vadd.f32 0.0, %v2592
    %2594 = vdwg.mxu0
    %v2596 = vsel %vm507, %v2533, 0
    %2598 = vmatpush.msra.mxu0 0.0
    %2599 = vmatpush.msra.mxu0 0.0
    %2600 = vmatpush.msra.mxu0 0.0
    %2601 = vmatpush.msra.mxu0 0.0
    %2602 = vmatpush.msra.mxu0 0.0
    %2603 = vmatpush.msra.mxu0 0.0
    %2604 = vmatpush.msra.mxu0 0.0
    %2605 = vmatpush.msra.mxu0 0.0
    %2606 = vmatpush.msra.mxu0 0.0
    %2607 = vmatpush.msra.mxu0 0.0
    %2608 = vmatpush.msra.mxu0 0.0
    %2609 = vmatpush.msra.mxu0 0.0
    %2610 = vmatpush.msra.mxu0 0.0
    %2611 = vmatpush.msra.mxu0 0.0
    %2612 = vmatpush.msra.mxu0 0.0
    %2613 = vmatpush.msra.mxu0 %v2346
    %2614 = vmatmul.f32.gmra.mxu0 %v2596
    %v2615 = vpop.f32.mrf.mxu0
    %v2616 = vadd.f32 0.0, %v2615
    %2617 = vdwg.mxu0
    %v2619 = vsel %vm507, %v2548, 0
    %2621 = vmatpush.msra.mxu0 0.0
    %2622 = vmatpush.msra.mxu0 0.0
    %2623 = vmatpush.msra.mxu0 0.0
    %2624 = vmatpush.msra.mxu0 0.0
    %2625 = vmatpush.msra.mxu0 0.0
    %2626 = vmatpush.msra.mxu0 0.0
    %2627 = vmatpush.msra.mxu0 0.0
    %2628 = vmatpush.msra.mxu0 0.0
    %2629 = vmatpush.msra.mxu0 0.0
    %2630 = vmatpush.msra.mxu0 0.0
    %2631 = vmatpush.msra.mxu0 0.0
    %2632 = vmatpush.msra.mxu0 0.0
    %2633 = vmatpush.msra.mxu0 0.0
    %2634 = vmatpush.msra.mxu0 0.0
    %2635 = vmatpush.msra.mxu0 0.0
    %2636 = vmatpush.msra.mxu0 %v2348
    %2637 = vmatmul.f32.gmra.mxu0 %v2619
    %v2638 = vpop.f32.mrf.mxu0
    %v2639 = vadd.f32 0.0, %v2638
    %2640 = vdwg.mxu0
    %v2641 = vrot.slane %v2616, 4
    %v2642 = vsel %vm153, %v2641, %v2570
    %v2643 = vrot.slane %v2570, 4
    %v2644 = vsel %vm153, %v2616, %v2643
    %v2646 = vunpack.c.l.s4 1983009808
    %v2647 = vunpack.c.0.s8 %v2646
    %v2648 = vperm.slane %v2642, %v2647
    %v2650 = vunpack.c.l.s4 1983009808
    %v2651 = vunpack.c.0.s8 %v2650
    %v2652 = vperm.slane %v2644, %v2651
    %v2653 = vrot.slane %v2639, 4
    %v2654 = vsel %vm153, %v2653, %v2593
    %v2655 = vrot.slane %v2593, 4
    %v2656 = vsel %vm153, %v2639, %v2655
    %v2658 = vunpack.c.l.s4 1983009808
    %v2659 = vunpack.c.0.s8 %v2658
    %v2660 = vperm.slane %v2654, %v2659
    %v2662 = vunpack.c.l.s4 1983009808
    %v2663 = vunpack.c.0.s8 %v2662
    %v2664 = vperm.slane %v2656, %v2663
    %v2665 = vrot.slane %v2660, 4
    %v2666 = vsel %vm153, %v2665, %v2648
    %v2667 = vrot.slane %v2648, 4
    %v2668 = vsel %vm153, %v2660, %v2667
    %v2670 = vunpack.c.l.s4 1934713408
    %v2671 = vunpack.c.0.s8 %v2670
    %v2672 = vperm.slane %v2666, %v2671
    %v2674 = vunpack.c.l.s4 1934713408
    %v2675 = vunpack.c.0.s8 %v2674
    %v2676 = vperm.slane %v2668, %v2675
    %v2677 = vrot.slane %v2664, 4
    %v2678 = vsel %vm153, %v2677, %v2652
    %v2679 = vrot.slane %v2652, 4
    %v2680 = vsel %vm153, %v2664, %v2679
    %v2682 = vunpack.c.l.s4 1934713408
    %v2683 = vunpack.c.0.s8 %v2682
    %v2684 = vperm.slane %v2678, %v2683
    %v2686 = vunpack.c.l.s4 1934713408
    %v2687 = vunpack.c.0.s8 %v2686
    %v2688 = vperm.slane %v2680, %v2687
    %v2689 = vrot.slane %v2672, 4
    %v2690 = vsel %vm153, 0.0, %v2689
    %v2691 = vrot.slane %v2676, 4
    %v2692 = vsel %vm153, 0.0, %v2691
    %v2693 = vrot.slane %v2684, 4
    %v2694 = vsel %vm153, 0.0, %v2693
    %v2695 = vrot.slane %v2688, 4
    %v2696 = vsel %vm153, 0.0, %v2695
    %v2697 = vsel %vm153, %v2691, %v2672
    %v2699 = vunpack.c.l.s4 1983009808
    %v2700 = vunpack.c.0.s8 %v2699
    %v2701 = vperm.slane %v2697, %v2700
    %v2702 = vrot.slane %v2692, 4
    %v2703 = vsel %vm153, %v2702, %v2690
    %v2705 = vunpack.c.l.s4 1983009808
    %v2706 = vunpack.c.0.s8 %v2705
    %v2707 = vperm.slane %v2703, %v2706
    %v2708 = vsel %vm153, %v2695, %v2684
    %v2710 = vunpack.c.l.s4 1983009808
    %v2711 = vunpack.c.0.s8 %v2710
    %v2712 = vperm.slane %v2708, %v2711
    %v2713 = vrot.slane %v2696, 4
    %v2714 = vsel %vm153, %v2713, %v2694
    %v2716 = vunpack.c.l.s4 1983009808
    %v2717 = vunpack.c.0.s8 %v2716
    %v2718 = vperm.slane %v2714, %v2717
    %v2719 = vrot.slane %v2707, 4
    %v2720 = vsel %vm153, %v2719, %v2701
    %v2721 = vrot.slane %v2701, 4
    %v2722 = vsel %vm153, %v2707, %v2721
    %v2724 = vunpack.c.l.s4 1934713408
    %v2725 = vunpack.c.0.s8 %v2724
    %v2726 = vperm.slane %v2720, %v2725
    %v2728 = vunpack.c.l.s4 1934713408
    %v2729 = vunpack.c.0.s8 %v2728
    %v2730 = vperm.slane %v2722, %v2729
    %v2731 = vrot.slane %v2718, 4
    %v2732 = vsel %vm153, %v2731, %v2712
    %v2733 = vrot.slane %v2712, 4
    %v2734 = vsel %vm153, %v2718, %v2733
    %v2736 = vunpack.c.l.s4 1934713408
    %v2737 = vunpack.c.0.s8 %v2736
    %v2738 = vperm.slane %v2732, %v2737
    %v2740 = vunpack.c.l.s4 1934713408
    %v2741 = vunpack.c.0.s8 %v2740
    %v2742 = vperm.slane %v2734, %v2741
    %v2743 = vrot.slane %v2738, 4
    %v2744 = vsel %vm153, %v2743, %v2726
    %v2745 = vrot.slane %v2726, 4
    %v2746 = vsel %vm153, %v2738, %v2745
    %v2747 = vrot.slane %v2742, 4
    %v2748 = vsel %vm153, %v2747, %v2730
    %v2749 = vrot.slane %v2730, 4
    %v2750 = vsel %vm153, %v2742, %v2749
    %2752 = vrot.lane.b32.xlu0 %v2746, 8
    %v2753 = vpop.permute.xlu0 %2752
    %2756 = vrot.lane.b32.xlu0 %v2748, 16
    %v2757 = vpop.permute.xlu0 %2756
    %2760 = vrot.lane.b32.xlu0 %v2750, 24
    %v2761 = vpop.permute.xlu0 %2760
    %v2763 = vsel %vm507, %v2744, %v2753
    %v2764 = vsel %vm923, %v2763, %v2757
    %v2765 = vsel %vm925, %v2764, %v2761
    %2767 = vrot.lane.b32.xlu0 %v1983, 120
    %v2768 = vpop.permute.xlu0 %2767
    %2770 = vrot.lane.b32.xlu0 %v1983, 112
    %v2771 = vpop.permute.xlu0 %2770
    %2773 = vrot.lane.b32.xlu0 %v1983, 104
    %v2774 = vpop.permute.xlu0 %2773
    %v2776 = vrot.slane %v2771, 4
    %v2777 = vsel %vm153, %v2776, %v1983
    %v2778 = vrot.slane %v1983, 4
    %v2779 = vsel %vm153, %v2771, %v2778
    %v2781 = vunpack.c.l.s4 1983009808
    %v2782 = vunpack.c.0.s8 %v2781
    %v2783 = vperm.slane %v2777, %v2782
    %v2785 = vunpack.c.l.s4 1983009808
    %v2786 = vunpack.c.0.s8 %v2785
    %v2787 = vperm.slane %v2779, %v2786
    %v2788 = vrot.slane %v2774, 4
    %v2789 = vsel %vm153, %v2788, %v2768
    %v2790 = vrot.slane %v2768, 4
    %v2791 = vsel %vm153, %v2774, %v2790
    %v2793 = vunpack.c.l.s4 1983009808
    %v2794 = vunpack.c.0.s8 %v2793
    %v2795 = vperm.slane %v2789, %v2794
    %v2797 = vunpack.c.l.s4 1983009808
    %v2798 = vunpack.c.0.s8 %v2797
    %v2799 = vperm.slane %v2791, %v2798
    %v2800 = vrot.slane %v2795, 4
    %v2801 = vsel %vm153, %v2800, %v2783
    %v2802 = vrot.slane %v2783, 4
    %v2803 = vsel %vm153, %v2795, %v2802
    %v2805 = vunpack.c.l.s4 1934713408
    %v2806 = vunpack.c.0.s8 %v2805
    %v2807 = vperm.slane %v2801, %v2806
    %v2809 = vunpack.c.l.s4 1934713408
    %v2810 = vunpack.c.0.s8 %v2809
    %v2811 = vperm.slane %v2803, %v2810
    %v2812 = vrot.slane %v2799, 4
    %v2813 = vsel %vm153, %v2812, %v2787
    %v2814 = vrot.slane %v2787, 4
    %v2815 = vsel %vm153, %v2799, %v2814
    %v2817 = vunpack.c.l.s4 1934713408
    %v2818 = vunpack.c.0.s8 %v2817
    %v2819 = vperm.slane %v2813, %v2818
    %v2821 = vunpack.c.l.s4 1934713408
    %v2822 = vunpack.c.0.s8 %v2821
    %v2823 = vperm.slane %v2815, %v2822
    %v2824 = vrot.slane %v2807, 4
    %v2825 = vsel %vm153, 0.0, %v2824
    %v2826 = vrot.slane %v2811, 4
    %v2827 = vsel %vm153, 0.0, %v2826
    %v2828 = vrot.slane %v2819, 4
    %v2829 = vsel %vm153, 0.0, %v2828
    %v2830 = vrot.slane %v2823, 4
    %v2831 = vsel %vm153, 0.0, %v2830
    %v2832 = vsel %vm153, %v2826, %v2807
    %v2834 = vunpack.c.l.s4 1983009808
    %v2835 = vunpack.c.0.s8 %v2834
    %v2836 = vperm.slane %v2832, %v2835
    %v2837 = vrot.slane %v2827, 4
    %v2838 = vsel %vm153, %v2837, %v2825
    %v2840 = vunpack.c.l.s4 1983009808
    %v2841 = vunpack.c.0.s8 %v2840
    %v2842 = vperm.slane %v2838, %v2841
    %v2843 = vsel %vm153, %v2830, %v2819
    %v2845 = vunpack.c.l.s4 1983009808
    %v2846 = vunpack.c.0.s8 %v2845
    %v2847 = vperm.slane %v2843, %v2846
    %v2848 = vrot.slane %v2831, 4
    %v2849 = vsel %vm153, %v2848, %v2829
    %v2851 = vunpack.c.l.s4 1983009808
    %v2852 = vunpack.c.0.s8 %v2851
    %v2853 = vperm.slane %v2849, %v2852
    %v2854 = vrot.slane %v2842, 4
    %v2855 = vsel %vm153, %v2854, %v2836
    %v2856 = vrot.slane %v2836, 4
    %v2857 = vsel %vm153, %v2842, %v2856
    %v2859 = vunpack.c.l.s4 1934713408
    %v2860 = vunpack.c.0.s8 %v2859
    %v2861 = vperm.slane %v2855, %v2860
    %v2863 = vunpack.c.l.s4 1934713408
    %v2864 = vunpack.c.0.s8 %v2863
    %v2865 = vperm.slane %v2857, %v2864
    %v2866 = vrot.slane %v2853, 4
    %v2867 = vsel %vm153, %v2866, %v2847
    %v2868 = vrot.slane %v2847, 4
    %v2869 = vsel %vm153, %v2853, %v2868
    %v2871 = vunpack.c.l.s4 1934713408
    %v2872 = vunpack.c.0.s8 %v2871
    %v2873 = vperm.slane %v2867, %v2872
    %v2875 = vunpack.c.l.s4 1934713408
    %v2876 = vunpack.c.0.s8 %v2875
    %v2877 = vperm.slane %v2869, %v2876
    %v2878 = vrot.slane %v2873, 4
    %v2879 = vsel %vm153, %v2878, %v2861
    %v2880 = vrot.slane %v2861, 4
    %v2881 = vsel %vm153, %v2873, %v2880
    %v2882 = vrot.slane %v2877, 4
    %v2883 = vsel %vm153, %v2882, %v2865
    %v2884 = vrot.slane %v2865, 4
    %v2885 = vsel %vm153, %v2877, %v2884
    %2886 = vrot.lane.b32.xlu0 %v1983, 96
    %v2887 = vpop.permute.xlu0 %2886
    %2888 = vrot.lane.b32.xlu0 %v2768, 96
    %v2889 = vpop.permute.xlu0 %2888
    %2890 = vrot.lane.b32.xlu0 %v2771, 96
    %v2891 = vpop.permute.xlu0 %2890
    %2892 = vrot.lane.b32.xlu0 %v2774, 96
    %v2893 = vpop.permute.xlu0 %2892
    %v2898 = vrot.slane %v2891, 4
    %v2899 = vsel %vm153, %v2898, %v2887
    %v2900 = vrot.slane %v2887, 4
    %v2901 = vsel %vm153, %v2891, %v2900
    %v2903 = vunpack.c.l.s4 1983009808
    %v2904 = vunpack.c.0.s8 %v2903
    %v2905 = vperm.slane %v2899, %v2904
    %v2907 = vunpack.c.l.s4 1983009808
    %v2908 = vunpack.c.0.s8 %v2907
    %v2909 = vperm.slane %v2901, %v2908
    %v2910 = vrot.slane %v2893, 4
    %v2911 = vsel %vm153, %v2910, %v2889
    %v2912 = vrot.slane %v2889, 4
    %v2913 = vsel %vm153, %v2893, %v2912
    %v2915 = vunpack.c.l.s4 1983009808
    %v2916 = vunpack.c.0.s8 %v2915
    %v2917 = vperm.slane %v2911, %v2916
    %v2919 = vunpack.c.l.s4 1983009808
    %v2920 = vunpack.c.0.s8 %v2919
    %v2921 = vperm.slane %v2913, %v2920
    %v2922 = vrot.slane %v2917, 4
    %v2923 = vsel %vm153, %v2922, %v2905
    %v2924 = vrot.slane %v2905, 4
    %v2925 = vsel %vm153, %v2917, %v2924
    %v2927 = vunpack.c.l.s4 1934713408
    %v2928 = vunpack.c.0.s8 %v2927
    %v2929 = vperm.slane %v2923, %v2928
    %v2931 = vunpack.c.l.s4 1934713408
    %v2932 = vunpack.c.0.s8 %v2931
    %v2933 = vperm.slane %v2925, %v2932
    %v2934 = vrot.slane %v2921, 4
    %v2935 = vsel %vm153, %v2934, %v2909
    %v2936 = vrot.slane %v2909, 4
    %v2937 = vsel %vm153, %v2921, %v2936
    %v2939 = vunpack.c.l.s4 1934713408
    %v2940 = vunpack.c.0.s8 %v2939
    %v2941 = vperm.slane %v2935, %v2940
    %v2943 = vunpack.c.l.s4 1934713408
    %v2944 = vunpack.c.0.s8 %v2943
    %v2945 = vperm.slane %v2937, %v2944
    %v2946 = vrot.slane %v2929, 4
    %v2947 = vsel %vm153, 0.0, %v2946
    %v2948 = vrot.slane %v2933, 4
    %v2949 = vsel %vm153, 0.0, %v2948
    %v2950 = vrot.slane %v2941, 4
    %v2951 = vsel %vm153, 0.0, %v2950
    %v2952 = vrot.slane %v2945, 4
    %v2953 = vsel %vm153, 0.0, %v2952
    %v2954 = vsel %vm153, %v2948, %v2929
    %v2956 = vunpack.c.l.s4 1983009808
    %v2957 = vunpack.c.0.s8 %v2956
    %v2958 = vperm.slane %v2954, %v2957
    %v2959 = vrot.slane %v2949, 4
    %v2960 = vsel %vm153, %v2959, %v2947
    %v2962 = vunpack.c.l.s4 1983009808
    %v2963 = vunpack.c.0.s8 %v2962
    %v2964 = vperm.slane %v2960, %v2963
    %v2965 = vsel %vm153, %v2952, %v2941
    %v2967 = vunpack.c.l.s4 1983009808
    %v2968 = vunpack.c.0.s8 %v2967
    %v2969 = vperm.slane %v2965, %v2968
    %v2970 = vrot.slane %v2953, 4
    %v2971 = vsel %vm153, %v2970, %v2951
    %v2973 = vunpack.c.l.s4 1983009808
    %v2974 = vunpack.c.0.s8 %v2973
    %v2975 = vperm.slane %v2971, %v2974
    %v2976 = vrot.slane %v2964, 4
    %v2977 = vsel %vm153, %v2976, %v2958
    %v2978 = vrot.slane %v2958, 4
    %v2979 = vsel %vm153, %v2964, %v2978
    %v2981 = vunpack.c.l.s4 1934713408
    %v2982 = vunpack.c.0.s8 %v2981
    %v2983 = vperm.slane %v2977, %v2982
    %v2985 = vunpack.c.l.s4 1934713408
    %v2986 = vunpack.c.0.s8 %v2985
    %v2987 = vperm.slane %v2979, %v2986
    %v2988 = vrot.slane %v2975, 4
    %v2989 = vsel %vm153, %v2988, %v2969
    %v2990 = vrot.slane %v2969, 4
    %v2991 = vsel %vm153, %v2975, %v2990
    %v2993 = vunpack.c.l.s4 1934713408
    %v2994 = vunpack.c.0.s8 %v2993
    %v2995 = vperm.slane %v2989, %v2994
    %v2997 = vunpack.c.l.s4 1934713408
    %v2998 = vunpack.c.0.s8 %v2997
    %v2999 = vperm.slane %v2991, %v2998
    %v3000 = vrot.slane %v2995, 4
    %v3001 = vsel %vm153, %v3000, %v2983
    %v3002 = vrot.slane %v2983, 4
    %v3003 = vsel %vm153, %v2995, %v3002
    %v3004 = vrot.slane %v2999, 4
    %v3005 = vsel %vm153, %v3004, %v2987
    %v3006 = vrot.slane %v2987, 4
    %v3007 = vsel %vm153, %v2999, %v3006
    %3008 = vrot.lane.b32.xlu0 %v1983, 64
    %v3009 = vpop.permute.xlu0 %3008
    %3010 = vrot.lane.b32.xlu0 %v2768, 64
    %v3011 = vpop.permute.xlu0 %3010
    %3012 = vrot.lane.b32.xlu0 %v2771, 64
    %v3013 = vpop.permute.xlu0 %3012
    %3014 = vrot.lane.b32.xlu0 %v2774, 64
    %v3015 = vpop.permute.xlu0 %3014
    %v3020 = vrot.slane %v3013, 4
    %v3021 = vsel %vm153, %v3020, %v3009
    %v3022 = vrot.slane %v3009, 4
    %v3023 = vsel %vm153, %v3013, %v3022
    %v3025 = vunpack.c.l.s4 1983009808
    %v3026 = vunpack.c.0.s8 %v3025
    %v3027 = vperm.slane %v3021, %v3026
    %v3029 = vunpack.c.l.s4 1983009808
    %v3030 = vunpack.c.0.s8 %v3029
    %v3031 = vperm.slane %v3023, %v3030
    %v3032 = vrot.slane %v3015, 4
    %v3033 = vsel %vm153, %v3032, %v3011
    %v3034 = vrot.slane %v3011, 4
    %v3035 = vsel %vm153, %v3015, %v3034
    %v3037 = vunpack.c.l.s4 1983009808
    %v3038 = vunpack.c.0.s8 %v3037
    %v3039 = vperm.slane %v3033, %v3038
    %v3041 = vunpack.c.l.s4 1983009808
    %v3042 = vunpack.c.0.s8 %v3041
    %v3043 = vperm.slane %v3035, %v3042
    %v3044 = vrot.slane %v3039, 4
    %v3045 = vsel %vm153, %v3044, %v3027
    %v3046 = vrot.slane %v3027, 4
    %v3047 = vsel %vm153, %v3039, %v3046
    %v3049 = vunpack.c.l.s4 1934713408
    %v3050 = vunpack.c.0.s8 %v3049
    %v3051 = vperm.slane %v3045, %v3050
    %v3053 = vunpack.c.l.s4 1934713408
    %v3054 = vunpack.c.0.s8 %v3053
    %v3055 = vperm.slane %v3047, %v3054
    %v3056 = vrot.slane %v3043, 4
    %v3057 = vsel %vm153, %v3056, %v3031
    %v3058 = vrot.slane %v3031, 4
    %v3059 = vsel %vm153, %v3043, %v3058
    %v3061 = vunpack.c.l.s4 1934713408
    %v3062 = vunpack.c.0.s8 %v3061
    %v3063 = vperm.slane %v3057, %v3062
    %v3065 = vunpack.c.l.s4 1934713408
    %v3066 = vunpack.c.0.s8 %v3065
    %v3067 = vperm.slane %v3059, %v3066
    %v3068 = vrot.slane %v3051, 4
    %v3069 = vsel %vm153, 0.0, %v3068
    %v3070 = vrot.slane %v3055, 4
    %v3071 = vsel %vm153, 0.0, %v3070
    %v3072 = vrot.slane %v3063, 4
    %v3073 = vsel %vm153, 0.0, %v3072
    %v3074 = vrot.slane %v3067, 4
    %v3075 = vsel %vm153, 0.0, %v3074
    %v3076 = vsel %vm153, %v3070, %v3051
    %v3078 = vunpack.c.l.s4 1983009808
    %v3079 = vunpack.c.0.s8 %v3078
    %v3080 = vperm.slane %v3076, %v3079
    %v3081 = vrot.slane %v3071, 4
    %v3082 = vsel %vm153, %v3081, %v3069
    %v3084 = vunpack.c.l.s4 1983009808
    %v3085 = vunpack.c.0.s8 %v3084
    %v3086 = vperm.slane %v3082, %v3085
    %v3087 = vsel %vm153, %v3074, %v3063
    %v3089 = vunpack.c.l.s4 1983009808
    %v3090 = vunpack.c.0.s8 %v3089
    %v3091 = vperm.slane %v3087, %v3090
    %v3092 = vrot.slane %v3075, 4
    %v3093 = vsel %vm153, %v3092, %v3073
    %v3095 = vunpack.c.l.s4 1983009808
    %v3096 = vunpack.c.0.s8 %v3095
    %v3097 = vperm.slane %v3093, %v3096
    %v3098 = vrot.slane %v3086, 4
    %v3099 = vsel %vm153, %v3098, %v3080
    %v3100 = vrot.slane %v3080, 4
    %v3101 = vsel %vm153, %v3086, %v3100
    %v3103 = vunpack.c.l.s4 1934713408
    %v3104 = vunpack.c.0.s8 %v3103
    %v3105 = vperm.slane %v3099, %v3104
    %v3107 = vunpack.c.l.s4 1934713408
    %v3108 = vunpack.c.0.s8 %v3107
    %v3109 = vperm.slane %v3101, %v3108
    %v3110 = vrot.slane %v3097, 4
    %v3111 = vsel %vm153, %v3110, %v3091
    %v3112 = vrot.slane %v3091, 4
    %v3113 = vsel %vm153, %v3097, %v3112
    %v3115 = vunpack.c.l.s4 1934713408
    %v3116 = vunpack.c.0.s8 %v3115
    %v3117 = vperm.slane %v3111, %v3116
    %v3119 = vunpack.c.l.s4 1934713408
    %v3120 = vunpack.c.0.s8 %v3119
    %v3121 = vperm.slane %v3113, %v3120
    %v3122 = vrot.slane %v3117, 4
    %v3123 = vsel %vm153, %v3122, %v3105
    %v3124 = vrot.slane %v3105, 4
    %v3125 = vsel %vm153, %v3117, %v3124
    %v3126 = vrot.slane %v3121, 4
    %v3127 = vsel %vm153, %v3126, %v3109
    %v3128 = vrot.slane %v3109, 4
    %v3129 = vsel %vm153, %v3121, %v3128
    %v3131 = vsel %vm507, %v2879, 0
    %v3134 = vsel %vm507, %v3001, 0
    %3136 = vmatpush.xpose.msra.mxu0 0.0
    %3137 = vmatpush.xpose.msra.mxu0 0.0
    %3138 = vmatpush.xpose.msra.mxu0 0.0
    %3139 = vmatpush.xpose.msra.mxu0 0.0
    %3140 = vmatpush.xpose.msra.mxu0 0.0
    %3141 = vmatpush.xpose.msra.mxu0 0.0
    %3142 = vmatpush.xpose.msra.mxu0 0.0
    %3143 = vmatpush.xpose.msra.mxu0 0.0
    %3144 = vmatpush.xpose.msra.mxu0 0.0
    %3145 = vmatpush.xpose.msra.mxu0 0.0
    %3146 = vmatpush.xpose.msra.mxu0 0.0
    %3147 = vmatpush.xpose.msra.mxu0 0.0
    %3148 = vmatpush.xpose.msra.mxu0 0.0
    %3149 = vmatpush.xpose.msra.mxu0 0.0
    %3150 = vmatpush.xpose.msra.mxu0 0.0
    %3151 = vmatpush.xpose.msra.mxu0 %v3134
    %3152 = vmatmul.f32.gmra.mxu0 %v3131
    %v3153 = vpop.f32.mrf.mxu0
    %v3154 = vadd.f32 0.0, %v3153
    %3155 = vdwg.mxu0
    %v3157 = vsel %vm507, %v2881, 0
    %v3160 = vsel %vm507, %v3003, 0
    %3162 = vmatpush.xpose.msra.mxu0 0.0
    %3163 = vmatpush.xpose.msra.mxu0 0.0
    %3164 = vmatpush.xpose.msra.mxu0 0.0
    %3165 = vmatpush.xpose.msra.mxu0 0.0
    %3166 = vmatpush.xpose.msra.mxu0 0.0
    %3167 = vmatpush.xpose.msra.mxu0 0.0
    %3168 = vmatpush.xpose.msra.mxu0 0.0
    %3169 = vmatpush.xpose.msra.mxu0 0.0
    %3170 = vmatpush.xpose.msra.mxu0 0.0
    %3171 = vmatpush.xpose.msra.mxu0 0.0
    %3172 = vmatpush.xpose.msra.mxu0 0.0
    %3173 = vmatpush.xpose.msra.mxu0 0.0
    %3174 = vmatpush.xpose.msra.mxu0 0.0
    %3175 = vmatpush.xpose.msra.mxu0 0.0
    %3176 = vmatpush.xpose.msra.mxu0 0.0
    %3177 = vmatpush.xpose.msra.mxu0 %v3160
    %3178 = vmatmul.f32.gmra.mxu0 %v3157
    %v3179 = vpop.f32.mrf.mxu0
    %v3180 = vadd.f32 0.0, %v3179
    %3181 = vdwg.mxu0
    %v3183 = vsel %vm507, %v2883, 0
    %v3186 = vsel %vm507, %v3005, 0
    %3188 = vmatpush.xpose.msra.mxu0 0.0
    %3189 = vmatpush.xpose.msra.mxu0 0.0
    %3190 = vmatpush.xpose.msra.mxu0 0.0
    %3191 = vmatpush.xpose.msra.mxu0 0.0
    %3192 = vmatpush.xpose.msra.mxu0 0.0
    %3193 = vmatpush.xpose.msra.mxu0 0.0
    %3194 = vmatpush.xpose.msra.mxu0 0.0
    %3195 = vmatpush.xpose.msra.mxu0 0.0
    %3196 = vmatpush.xpose.msra.mxu0 0.0
    %3197 = vmatpush.xpose.msra.mxu0 0.0
    %3198 = vmatpush.xpose.msra.mxu0 0.0
    %3199 = vmatpush.xpose.msra.mxu0 0.0
    %3200 = vmatpush.xpose.msra.mxu0 0.0
    %3201 = vmatpush.xpose.msra.mxu0 0.0
    %3202 = vmatpush.xpose.msra.mxu0 0.0
    %3203 = vmatpush.xpose.msra.mxu0 %v3186
    %3204 = vmatmul.f32.gmra.mxu0 %v3183
    %v3205 = vpop.f32.mrf.mxu0
    %v3206 = vadd.f32 0.0, %v3205
    %3207 = vdwg.mxu0
    %v3209 = vsel %vm507, %v2885, 0
    %v3212 = vsel %vm507, %v3007, 0
    %3214 = vmatpush.xpose.msra.mxu0 0.0
    %3215 = vmatpush.xpose.msra.mxu0 0.0
    %3216 = vmatpush.xpose.msra.mxu0 0.0
    %3217 = vmatpush.xpose.msra.mxu0 0.0
    %3218 = vmatpush.xpose.msra.mxu0 0.0
    %3219 = vmatpush.xpose.msra.mxu0 0.0
    %3220 = vmatpush.xpose.msra.mxu0 0.0
    %3221 = vmatpush.xpose.msra.mxu0 0.0
    %3222 = vmatpush.xpose.msra.mxu0 0.0
    %3223 = vmatpush.xpose.msra.mxu0 0.0
    %3224 = vmatpush.xpose.msra.mxu0 0.0
    %3225 = vmatpush.xpose.msra.mxu0 0.0
    %3226 = vmatpush.xpose.msra.mxu0 0.0
    %3227 = vmatpush.xpose.msra.mxu0 0.0
    %3228 = vmatpush.xpose.msra.mxu0 0.0
    %3229 = vmatpush.xpose.msra.mxu0 %v3212
    %3230 = vmatmul.f32.gmra.mxu0 %v3209
    %v3231 = vpop.f32.mrf.mxu0
    %v3232 = vadd.f32 0.0, %v3231
    %3233 = vdwg.mxu0
    %v3234 = vsel %vm507, %v3154, -inf
    %3235 = vmax.xlane.f32.xlu0 %v3234
    %v3236 = vpop.xlane.xlu0 %3235
    %v3237 = vsel %vm507, %v3180, -inf
    %3238 = vmax.xlane.f32.xlu0 %v3237
    %v3239 = vpop.xlane.xlu0 %3238
    %v3240 = vsel %vm507, %v3206, -inf
    %3241 = vmax.xlane.f32.xlu0 %v3240
    %v3242 = vpop.xlane.xlu0 %3241
    %v3243 = vsel %vm507, %v3232, -inf
    %3244 = vmax.xlane.f32.xlu0 %v3243
    %v3245 = vpop.xlane.xlu0 %3244
    %v3246 = vsub.f32 %v3154, %v3236
    %v3247 = vsub.f32 %v3180, %v3239
    %v3248 = vsub.f32 %v3206, %v3242
    %v3249 = vsub.f32 %v3232, %v3245
    %v3250 = vmul.f32 %v3246, 1.442695
    %v3251 = vpow.pop %v3250
    %v3252 = vmul.f32 %v3247, 1.442695
    %v3253 = vpow.pop %v3252
    %v3254 = vmul.f32 %v3248, 1.442695
    %v3255 = vpow.pop %v3254
    %v3256 = vmul.f32 %v3249, 1.442695
    %v3257 = vpow.pop %v3256
    %v3258 = vsel %vm507, %v3251, 0.0
    %3259 = vadd.xlane.f32.xlu0 %v3258
    %v3260 = vpop.xlane.xlu0 %3259
    %v3261 = vsel %vm507, %v3253, 0.0
    %3262 = vadd.xlane.f32.xlu0 %v3261
    %v3263 = vpop.xlane.xlu0 %3262
    %v3264 = vsel %vm507, %v3255, 0.0
    %3265 = vadd.xlane.f32.xlu0 %v3264
    %v3266 = vpop.xlane.xlu0 %3265
    %v3267 = vsel %vm507, %v3257, 0.0
    %3268 = vadd.xlane.f32.xlu0 %v3267
    %v3269 = vpop.xlane.xlu0 %3268
    %v3270 = vrcp.pop %v3260
    %v3271 = vmul.f32 %v3260, %v3270
    %v3272 = vsub.f32 1.0, %v3271
    %v3273 = vmul.f32 %v3270, %v3272
    %v3274 = vadd.f32 %v3270, %v3273
    %vm3275 = vweird.f32 %v3260
    %vm3276 = vweird.f32 %v3270
    %vm3277 = vmor %vm3275, %vm3276
    %v3278 = vsel %vm3277, %v3270, %v3274
    %v3279 = vand.u32 2147483647, %v3260
    %vm3280 = vcmp.eq.f32.partialorder %v3279, 8.507059e+37
    %v3281 = vand.u32 %v3260, 2147483648
    %v3282 = vor.u32 1.1754944e-38, %v3281
    %v3283 = vsel %vm3280, %v3282, %v3278
    %v3284 = vmul.f32 %v3251, %v3283
    %v3285 = vrcp.pop %v3263
    %v3286 = vmul.f32 %v3263, %v3285
    %v3287 = vsub.f32 1.0, %v3286
    %v3288 = vmul.f32 %v3285, %v3287
    %v3289 = vadd.f32 %v3285, %v3288
    %vm3290 = vweird.f32 %v3263
    %vm3291 = vweird.f32 %v3285
    %vm3292 = vmor %vm3290, %vm3291
    %v3293 = vsel %vm3292, %v3285, %v3289
    %v3294 = vand.u32 2147483647, %v3263
    %vm3295 = vcmp.eq.f32.partialorder %v3294, 8.507059e+37
    %v3296 = vand.u32 %v3263, 2147483648
    %v3297 = vor.u32 1.1754944e-38, %v3296
    %v3298 = vsel %vm3295, %v3297, %v3293
    %v3299 = vmul.f32 %v3253, %v3298
    %v3300 = vrcp.pop %v3266
    %v3301 = vmul.f32 %v3266, %v3300
    %v3302 = vsub.f32 1.0, %v3301
    %v3303 = vmul.f32 %v3300, %v3302
    %v3304 = vadd.f32 %v3300, %v3303
    %vm3305 = vweird.f32 %v3266
    %vm3306 = vweird.f32 %v3300
    %vm3307 = vmor %vm3305, %vm3306
    %v3308 = vsel %vm3307, %v3300, %v3304
    %v3309 = vand.u32 2147483647, %v3266
    %vm3310 = vcmp.eq.f32.partialorder %v3309, 8.507059e+37
    %v3311 = vand.u32 %v3266, 2147483648
    %v3312 = vor.u32 1.1754944e-38, %v3311
    %v3313 = vsel %vm3310, %v3312, %v3308
    %v3314 = vmul.f32 %v3255, %v3313
    %v3315 = vrcp.pop %v3269
    %v3316 = vmul.f32 %v3269, %v3315
    %v3317 = vsub.f32 1.0, %v3316
    %v3318 = vmul.f32 %v3315, %v3317
    %v3319 = vadd.f32 %v3315, %v3318
    %vm3320 = vweird.f32 %v3269
    %vm3321 = vweird.f32 %v3315
    %vm3322 = vmor %vm3320, %vm3321
    %v3323 = vsel %vm3322, %v3315, %v3319
    %v3324 = vand.u32 2147483647, %v3269
    %vm3325 = vcmp.eq.f32.partialorder %v3324, 8.507059e+37
    %v3326 = vand.u32 %v3269, 2147483648
    %v3327 = vor.u32 1.1754944e-38, %v3326
    %v3328 = vsel %vm3325, %v3327, %v3323
    %v3329 = vmul.f32 %v3257, %v3328
    %v3331 = vsel %vm507, %v3284, 0
    %3333 = vmatpush.msra.mxu0 0.0
    %3334 = vmatpush.msra.mxu0 0.0
    %3335 = vmatpush.msra.mxu0 0.0
    %3336 = vmatpush.msra.mxu0 0.0
    %3337 = vmatpush.msra.mxu0 0.0
    %3338 = vmatpush.msra.mxu0 0.0
    %3339 = vmatpush.msra.mxu0 0.0
    %3340 = vmatpush.msra.mxu0 0.0
    %3341 = vmatpush.msra.mxu0 0.0
    %3342 = vmatpush.msra.mxu0 0.0
    %3343 = vmatpush.msra.mxu0 0.0
    %3344 = vmatpush.msra.mxu0 0.0
    %3345 = vmatpush.msra.mxu0 0.0
    %3346 = vmatpush.msra.mxu0 0.0
    %3347 = vmatpush.msra.mxu0 0.0
    %3348 = vmatpush.msra.mxu0 %v3123
    %3349 = vmatmul.f32.gmra.mxu0 %v3331
    %v3350 = vpop.f32.mrf.mxu0
    %v3351 = vadd.f32 0.0, %v3350
    %3352 = vdwg.mxu0
    %v3354 = vsel %vm507, %v3299, 0
    %3356 = vmatpush.msra.mxu0 0.0
    %3357 = vmatpush.msra.mxu0 0.0
    %3358 = vmatpush.msra.mxu0 0.0
    %3359 = vmatpush.msra.mxu0 0.0
    %3360 = vmatpush.msra.mxu0 0.0
    %3361 = vmatpush.msra.mxu0 0.0
    %3362 = vmatpush.msra.mxu0 0.0
    %3363 = vmatpush.msra.mxu0 0.0
    %3364 = vmatpush.msra.mxu0 0.0
    %3365 = vmatpush.msra.mxu0 0.0
    %3366 = vmatpush.msra.mxu0 0.0
    %3367 = vmatpush.msra.mxu0 0.0
    %3368 = vmatpush.msra.mxu0 0.0
    %3369 = vmatpush.msra.mxu0 0.0
    %3370 = vmatpush.msra.mxu0 0.0
    %3371 = vmatpush.msra.mxu0 %v3125
    %3372 = vmatmul.f32.gmra.mxu0 %v3354
    %v3373 = vpop.f32.mrf.mxu0
    %v3374 = vadd.f32 0.0, %v3373
    %3375 = vdwg.mxu0
    %v3377 = vsel %vm507, %v3314, 0
    %3379 = vmatpush.msra.mxu0 0.0
    %3380 = vmatpush.msra.mxu0 0.0
    %3381 = vmatpush.msra.mxu0 0.0
    %3382 = vmatpush.msra.mxu0 0.0
    %3383 = vmatpush.msra.mxu0 0.0
    %3384 = vmatpush.msra.mxu0 0.0
    %3385 = vmatpush.msra.mxu0 0.0
    %3386 = vmatpush.msra.mxu0 0.0
    %3387 = vmatpush.msra.mxu0 0.0
    %3388 = vmatpush.msra.mxu0 0.0
    %3389 = vmatpush.msra.mxu0 0.0
    %3390 = vmatpush.msra.mxu0 0.0
    %3391 = vmatpush.msra.mxu0 0.0
    %3392 = vmatpush.msra.mxu0 0.0
    %3393 = vmatpush.msra.mxu0 0.0
    %3394 = vmatpush.msra.mxu0 %v3127
    %3395 = vmatmul.f32.gmra.mxu0 %v3377
    %v3396 = vpop.f32.mrf.mxu0
    %v3397 = vadd.f32 0.0, %v3396
    %3398 = vdwg.mxu0
    %v3400 = vsel %vm507, %v3329, 0
    %3402 = vmatpush.msra.mxu0 0.0
    %3403 = vmatpush.msra.mxu0 0.0
    %3404 = vmatpush.msra.mxu0 0.0
    %3405 = vmatpush.msra.mxu0 0.0
    %3406 = vmatpush.msra.mxu0 0.0
    %3407 = vmatpush.msra.mxu0 0.0
    %3408 = vmatpush.msra.mxu0 0.0
    %3409 = vmatpush.msra.mxu0 0.0
    %3410 = vmatpush.msra.mxu0 0.0
    %3411 = vmatpush.msra.mxu0 0.0
    %3412 = vmatpush.msra.mxu0 0.0
    %3413 = vmatpush.msra.mxu0 0.0
    %3414 = vmatpush.msra.mxu0 0.0
    %3415 = vmatpush.msra.mxu0 0.0
    %3416 = vmatpush.msra.mxu0 0.0
    %3417 = vmatpush.msra.mxu0 %v3129
    %3418 = vmatmul.f32.gmra.mxu0 %v3400
    %v3419 = vpop.f32.mrf.mxu0
    %v3420 = vadd.f32 0.0, %v3419
    %3421 = vdwg.mxu0
    %v3422 = vrot.slane %v3397, 4
    %v3423 = vsel %vm153, %v3422, %v3351
    %v3424 = vrot.slane %v3351, 4
    %v3425 = vsel %vm153, %v3397, %v3424
    %v3427 = vunpack.c.l.s4 1983009808
    %v3428 = vunpack.c.0.s8 %v3427
    %v3429 = vperm.slane %v3423, %v3428
    %v3431 = vunpack.c.l.s4 1983009808
    %v3432 = vunpack.c.0.s8 %v3431
    %v3433 = vperm.slane %v3425, %v3432
    %v3434 = vrot.slane %v3420, 4
    %v3435 = vsel %vm153, %v3434, %v3374
    %v3436 = vrot.slane %v3374, 4
    %v3437 = vsel %vm153, %v3420, %v3436
    %v3439 = vunpack.c.l.s4 1983009808
    %v3440 = vunpack.c.0.s8 %v3439
    %v3441 = vperm.slane %v3435, %v3440
    %v3443 = vunpack.c.l.s4 1983009808
    %v3444 = vunpack.c.0.s8 %v3443
    %v3445 = vperm.slane %v3437, %v3444
    %v3446 = vrot.slane %v3441, 4
    %v3447 = vsel %vm153, %v3446, %v3429
    %v3448 = vrot.slane %v3429, 4
    %v3449 = vsel %vm153, %v3441, %v3448
    %v3451 = vunpack.c.l.s4 1934713408
    %v3452 = vunpack.c.0.s8 %v3451
    %v3453 = vperm.slane %v3447, %v3452
    %v3455 = vunpack.c.l.s4 1934713408
    %v3456 = vunpack.c.0.s8 %v3455
    %v3457 = vperm.slane %v3449, %v3456
    %v3458 = vrot.slane %v3445, 4
    %v3459 = vsel %vm153, %v3458, %v3433
    %v3460 = vrot.slane %v3433, 4
    %v3461 = vsel %vm153, %v3445, %v3460
    %v3463 = vunpack.c.l.s4 1934713408
    %v3464 = vunpack.c.0.s8 %v3463
    %v3465 = vperm.slane %v3459, %v3464
    %v3467 = vunpack.c.l.s4 1934713408
    %v3468 = vunpack.c.0.s8 %v3467
    %v3469 = vperm.slane %v3461, %v3468
    %v3470 = vrot.slane %v3453, 4
    %v3471 = vsel %vm153, 0.0, %v3470
    %v3472 = vrot.slane %v3457, 4
    %v3473 = vsel %vm153, 0.0, %v3472
    %v3474 = vrot.slane %v3465, 4
    %v3475 = vsel %vm153, 0.0, %v3474
    %v3476 = vrot.slane %v3469, 4
    %v3477 = vsel %vm153, 0.0, %v3476
    %v3478 = vsel %vm153, %v3472, %v3453
    %v3480 = vunpack.c.l.s4 1983009808
    %v3481 = vunpack.c.0.s8 %v3480
    %v3482 = vperm.slane %v3478, %v3481
    %v3483 = vrot.slane %v3473, 4
    %v3484 = vsel %vm153, %v3483, %v3471
    %v3486 = vunpack.c.l.s4 1983009808
    %v3487 = vunpack.c.0.s8 %v3486
    %v3488 = vperm.slane %v3484, %v3487
    %v3489 = vsel %vm153, %v3476, %v3465
    %v3491 = vunpack.c.l.s4 1983009808
    %v3492 = vunpack.c.0.s8 %v3491
    %v3493 = vperm.slane %v3489, %v3492
    %v3494 = vrot.slane %v3477, 4
    %v3495 = vsel %vm153, %v3494, %v3475
    %v3497 = vunpack.c.l.s4 1983009808
    %v3498 = vunpack.c.0.s8 %v3497
    %v3499 = vperm.slane %v3495, %v3498
    %v3500 = vrot.slane %v3488, 4
    %v3501 = vsel %vm153, %v3500, %v3482
    %v3502 = vrot.slane %v3482, 4
    %v3503 = vsel %vm153, %v3488, %v3502
    %v3505 = vunpack.c.l.s4 1934713408
    %v3506 = vunpack.c.0.s8 %v3505
    %v3507 = vperm.slane %v3501, %v3506
    %v3509 = vunpack.c.l.s4 1934713408
    %v3510 = vunpack.c.0.s8 %v3509
    %v3511 = vperm.slane %v3503, %v3510
    %v3512 = vrot.slane %v3499, 4
    %v3513 = vsel %vm153, %v3512, %v3493
    %v3514 = vrot.slane %v3493, 4
    %v3515 = vsel %vm153, %v3499, %v3514
    %v3517 = vunpack.c.l.s4 1934713408
    %v3518 = vunpack.c.0.s8 %v3517
    %v3519 = vperm.slane %v3513, %v3518
    %v3521 = vunpack.c.l.s4 1934713408
    %v3522 = vunpack.c.0.s8 %v3521
    %v3523 = vperm.slane %v3515, %v3522
    %v3524 = vrot.slane %v3519, 4
    %v3525 = vsel %vm153, %v3524, %v3507
    %v3526 = vrot.slane %v3507, 4
    %v3527 = vsel %vm153, %v3519, %v3526
    %v3528 = vrot.slane %v3523, 4
    %v3529 = vsel %vm153, %v3528, %v3511
    %v3530 = vrot.slane %v3511, 4
    %v3531 = vsel %vm153, %v3523, %v3530
    %3533 = vrot.lane.b32.xlu0 %v3527, 8
    %v3534 = vpop.permute.xlu0 %3533
    %3537 = vrot.lane.b32.xlu0 %v3529, 16
    %v3538 = vpop.permute.xlu0 %3537
    %3541 = vrot.lane.b32.xlu0 %v3531, 24
    %v3542 = vpop.permute.xlu0 %3541
    %v3544 = vsel %vm507, %v3525, %v3534
    %v3545 = vsel %vm923, %v3544, %v3538
    %v3546 = vsel %vm925, %v3545, %v3542
    %s3547 = scalar_lea.vmem %s4, 32
    %v3548 = vld [vmem:[%s3547] sm:$0xff]
    %v3549 = vld [vmem:[%s3547 + $0x8] sm:$0xff]
    %v3550 = vld [vmem:[%s3547 + $0x10] sm:$0xff]
    %v3551 = vld [vmem:[%s3547 + $0x18] sm:$0xff]
    %v3553 = vsel %vm112, %v2765, 0
    %v3556 = vsel %vm112, %v3546, 0
    %3558 = vmatpush.msra.mxu0 0.0
    %3559 = vmatpush.msra.mxu0 0.0
    %3560 = vmatpush.msra.mxu0 0.0
    %3561 = vmatpush.msra.mxu0 0.0
    %3562 = vmatpush.msra.mxu0 0.0
    %3563 = vmatpush.msra.mxu0 0.0
    %3564 = vmatpush.msra.mxu0 0.0
    %3565 = vmatpush.msra.mxu0 0.0
    %3566 = vmatpush.msra.mxu0 0.0
    %3567 = vmatpush.msra.mxu0 0.0
    %3568 = vmatpush.msra.mxu0 0.0
    %3569 = vmatpush.msra.mxu0 0.0
    %3570 = vmatpush.msra.mxu0 %v3551
    %3571 = vmatpush.msra.mxu0 %v3550
    %3572 = vmatpush.msra.mxu0 %v3549
    %3573 = vmatpush.msra.mxu0 %v3548
    %3574 = vmatmul.f32.gmra.mxu0 %v3553
    %v3575 = vpop.f32.mrf.mxu0
    %v3576 = vadd.f32 %v1949, %v3575
    %3577 = vmatmul.f32.gmra.mxu0 %v3556
    %v3578 = vpop.f32.mrf.mxu0
    %v3579 = vadd.f32 %v1950, %v3578
    %3580 = vdwg.mxu0
    %s3581 = scalar_lea.vmem %s5, 1
    %v3582 = vld [vmem:[%s3581] sm:$0x1]
    %s3583 = scalar_lea.vmem %s6, 1
    %v3584 = vld [vmem:[%s3583] sm:$0x1]
    %v3585 = vsel %vm112, %v3576, 0.0
    %3586 = vadd.xlane.f32.xlu0 %v3585
    %v3587 = vpop.xlane.xlu0 %3586
    %v3588 = vsel %vm112, %v3579, 0.0
    %3589 = vadd.xlane.f32.xlu0 %v3588
    %v3590 = vpop.xlane.xlu0 %3589
    %v3591 = vmul.f32 %v3587, %v1755
    %v3592 = vmul.f32 %v3590, %v1755
    %v3593 = vmul.f32 %v3576, %v3576
    %v3594 = vmul.f32 %v3579, %v3579
    %v3595 = vsel %vm112, %v3593, 0.0
    %3596 = vadd.xlane.f32.xlu0 %v3595
    %v3597 = vpop.xlane.xlu0 %3596
    %v3598 = vsel %vm112, %v3594, 0.0
    %3599 = vadd.xlane.f32.xlu0 %v3598
    %v3600 = vpop.xlane.xlu0 %3599
    %v3601 = vmul.f32 %v3597, %v1755
    %v3602 = vmul.f32 %v3600, %v1755
    %v3603 = vmul.f32 %v3591, %v3591
    %v3604 = vmul.f32 %v3592, %v3592
    %v3605 = vsub.f32 %v3601, %v3603
    %v3606 = vsub.f32 %v3602, %v3604
    %v3607 = vsub.f32 %v3576, %v3591
    %v3608 = vsub.f32 %v3579, %v3592
    %v3609 = vadd.f32 %v3605, 1e-05
    %v3610 = vadd.f32 %v3606, 1e-05
    %v3611 = vrsqrt.pop %v3609
    %v3612 = vmul.f32 %v3611, %v3609
    %v3613 = vmul.f32 %v3612, %v3611
    %v3614 = vmul.f32 0.5, %v3613
    %v3615 = vsub.f32 1.5, %v3614
    %v3616 = vmul.f32 %v3611, %v3615
    %vm3617 = vweird.f32 %v3609
    %vm3618 = vweird.f32 %v3611
    %vm3619 = vmor %vm3617, %vm3618
    %v3620 = vsel %vm3619, %v3611, %v3616
    %v3621 = vrsqrt.pop %v3610
    %v3622 = vmul.f32 %v3621, %v3610
    %v3623 = vmul.f32 %v3622, %v3621
    %v3624 = vmul.f32 0.5, %v3623
    %v3625 = vsub.f32 1.5, %v3624
    %v3626 = vmul.f32 %v3621, %v3625
    %vm3627 = vweird.f32 %v3610
    %vm3628 = vweird.f32 %v3621
    %vm3629 = vmor %vm3627, %vm3628
    %v3630 = vsel %vm3629, %v3621, %v3626
    %v3631 = vmul.f32 %v3607, %v3620
    %v3632 = vmul.f32 %v3608, %v3630
    %v3634 = vperm.slane %v3582, 0
    %v3636 = vmul.f32 %v3631, %v3634
    %v3637 = vmul.f32 %v3632, %v3634
    %v3639 = vperm.slane %v3584, 0
    %v3641 = vadd.f32 %v3636, %v3639
    %v3642 = vadd.f32 %v3637, %v3639
    %s3643 = scalar_lea.vmem %s9, 32
    %v3644 = vld [vmem:[%s3643] sm:$0xff]
    %v3645 = vld [vmem:[%s3643 + $0x8] sm:$0xff]
    %v3646 = vld [vmem:[%s3643 + $0x10] sm:$0xff]
    %v3647 = vld [vmem:[%s3643 + $0x18] sm:$0xff]
    %s3648 = scalar_lea.vmem %s10, 1
    %v3649 = vld [vmem:[%s3648] sm:$0x1]
    %v3651 = vperm.slane %v3649, 0
    %v3654 = vsel %vm112, %v3641, 0
    %v3657 = vsel %vm112, %v3642, 0
    %3659 = vmatpush.msra.mxu0 0.0
    %3660 = vmatpush.msra.mxu0 0.0
    %3661 = vmatpush.msra.mxu0 0.0
    %3662 = vmatpush.msra.mxu0 0.0
    %3663 = vmatpush.msra.mxu0 0.0
    %3664 = vmatpush.msra.mxu0 0.0
    %3665 = vmatpush.msra.mxu0 0.0
    %3666 = vmatpush.msra.mxu0 0.0
    %3667 = vmatpush.msra.mxu0 0.0
    %3668 = vmatpush.msra.mxu0 0.0
    %3669 = vmatpush.msra.mxu0 0.0
    %3670 = vmatpush.msra.mxu0 0.0
    %3671 = vmatpush.msra.mxu0 %v3647
    %3672 = vmatpush.msra.mxu0 %v3646
    %3673 = vmatpush.msra.mxu0 %v3645
    %3674 = vmatpush.msra.mxu0 %v3644
    %3675 = vmatmul.f32.gmra.mxu0 %v3654
    %v3676 = vpop.f32.mrf.mxu0
    %v3677 = vadd.f32 %v3651, %v3676
    %3678 = vmatmul.f32.gmra.mxu0 %v3657
    %v3679 = vpop.f32.mrf.mxu0
    %v3680 = vadd.f32 %v3651, %v3679
    %3681 = vdwg.mxu0
    %v3682 = vmax.f32 %v3677, 0.0
    %v3683 = vmax.f32 %v3680, 0.0
    %s3684 = scalar_lea.vmem %s11, 64
    %v3685 = vld [vmem:[%s3684] sm:$0xff]
    %v3686 = vld [vmem:[%s3684 + $0x8] sm:$0xff]
    %v3687 = vld [vmem:[%s3684 + $0x10] sm:$0xff]
    %v3688 = vld [vmem:[%s3684 + $0x18] sm:$0xff]
    %v3689 = vld [vmem:[%s3684 + $0x20] sm:$0xff]
    %v3690 = vld [vmem:[%s3684 + $0x28] sm:$0xff]
    %v3691 = vld [vmem:[%s3684 + $0x30] sm:$0xff]
    %v3692 = vld [vmem:[%s3684 + $0x38] sm:$0xff]
    %s3693 = scalar_lea.vmem %s12, 1
    %v3694 = vld [vmem:[%s3693] sm:$0x1]
    %v3696 = vperm.slane %v3694, 0
    %v3699 = vsel %vm1859, %v3682, 0
    %v3702 = vsel %vm1859, %v3683, 0
    %3704 = vmatpush.msra.mxu0 0.0
    %3705 = vmatpush.msra.mxu0 0.0
    %3706 = vmatpush.msra.mxu0 0.0
    %3707 = vmatpush.msra.mxu0 0.0
    %3708 = vmatpush.msra.mxu0 0.0
    %3709 = vmatpush.msra.mxu0 0.0
    %3710 = vmatpush.msra.mxu0 0.0
    %3711 = vmatpush.msra.mxu0 0.0
    %3712 = vmatpush.msra.mxu0 %v3692
    %3713 = vmatpush.msra.mxu0 %v3691
    %3714 = vmatpush.msra.mxu0 %v3690
    %3715 = vmatpush.msra.mxu0 %v3689
    %3716 = vmatpush.msra.mxu0 %v3688
    %3717 = vmatpush.msra.mxu0 %v3687
    %3718 = vmatpush.msra.mxu0 %v3686
    %3719 = vmatpush.msra.mxu0 %v3685
    %3720 = vmatmul.f32.gmra.mxu0 %v3699
    %v3721 = vpop.f32.mrf.mxu0
    %v3722 = vadd.f32 %v3696, %v3721
    %3723 = vmatmul.f32.gmra.mxu0 %v3702
    %v3724 = vpop.f32.mrf.mxu0
    %v3725 = vadd.f32 %v3696, %v3724
    %3726 = vdwg.mxu0
    %v3727 = vadd.f32 %v3722, %v3641
    %v3728 = vadd.f32 %v3725, %v3642
    %s3729 = scalar_lea.vmem %s7, 1
    %v3730 = vld [vmem:[%s3729] sm:$0x1]
    %s3731 = scalar_lea.vmem %s8, 1
    %v3732 = vld [vmem:[%s3731] sm:$0x1]
    %v3733 = vsel %vm112, %v3727, 0.0
    %3734 = vadd.xlane.f32.xlu0 %v3733
    %v3735 = vpop.xlane.xlu0 %3734
    %v3736 = vsel %vm112, %v3728, 0.0
    %3737 = vadd.xlane.f32.xlu0 %v3736
    %v3738 = vpop.xlane.xlu0 %3737
    %v3739 = vmul.f32 %v3735, %v1755
    %v3740 = vmul.f32 %v3738, %v1755
    %v3741 = vmul.f32 %v3727, %v3727
    %v3742 = vmul.f32 %v3728, %v3728
    %v3743 = vsel %vm112, %v3741, 0.0
    %3744 = vadd.xlane.f32.xlu0 %v3743
    %v3745 = vpop.xlane.xlu0 %3744
    %v3746 = vsel %vm112, %v3742, 0.0
    %3747 = vadd.xlane.f32.xlu0 %v3746
    %v3748 = vpop.xlane.xlu0 %3747
    %v3749 = vmul.f32 %v3745, %v1755
    %v3750 = vmul.f32 %v3748, %v1755
    %v3751 = vmul.f32 %v3739, %v3739
    %v3752 = vmul.f32 %v3740, %v3740
    %v3753 = vsub.f32 %v3749, %v3751
    %v3754 = vsub.f32 %v3750, %v3752
    %v3755 = vsub.f32 %v3727, %v3739
    %v3756 = vsub.f32 %v3728, %v3740
    %v3757 = vadd.f32 %v3753, 1e-05
    %v3758 = vadd.f32 %v3754, 1e-05
    %v3759 = vrsqrt.pop %v3757
    %v3760 = vmul.f32 %v3759, %v3757
    %v3761 = vmul.f32 %v3760, %v3759
    %v3762 = vmul.f32 0.5, %v3761
    %v3763 = vsub.f32 1.5, %v3762
    %v3764 = vmul.f32 %v3759, %v3763
    %vm3765 = vweird.f32 %v3757
    %vm3766 = vweird.f32 %v3759
    %vm3767 = vmor %vm3765, %vm3766
    %v3768 = vsel %vm3767, %v3759, %v3764
    %v3769 = vrsqrt.pop %v3758
    %v3770 = vmul.f32 %v3769, %v3758
    %v3771 = vmul.f32 %v3770, %v3769
    %v3772 = vmul.f32 0.5, %v3771
    %v3773 = vsub.f32 1.5, %v3772
    %v3774 = vmul.f32 %v3769, %v3773
    %vm3775 = vweird.f32 %v3758
    %vm3776 = vweird.f32 %v3769
    %vm3777 = vmor %vm3775, %vm3776
    %v3778 = vsel %vm3777, %v3769, %v3774
    %v3779 = vmul.f32 %v3755, %v3768
    %v3780 = vmul.f32 %v3756, %v3778
    %v3782 = vperm.slane %v3730, 0
    %v3784 = vmul.f32 %v3779, %v3782
    %v3785 = vmul.f32 %v3780, %v3782
    %v3787 = vperm.slane %v3732, 0
    %v3789 = vadd.f32 %v3784, %v3787
    %v3790 = vadd.f32 %v3785, %v3787
    %v3791 = vld [vmem:[%s13] sm:$0xff]
    %v3792 = vld [vmem:[%s13 + $0x8] sm:$0xff]
    %v3793 = vld [vmem:[%s13 + $0x10] sm:$0xff]
    %v3794 = vld [vmem:[%s13 + $0x18] sm:$0xff]
    %v3795 = vld [vmem:[%s14] sm:$0x1]
    %v3797 = vperm.slane %v3795, 0
    %v3800 = vsel %vm112, %v3789, 0
    %v3803 = vsel %vm112, %v3790, 0
    %3805 = vmatpush.msra.mxu0 0.0
    %3806 = vmatpush.msra.mxu0 0.0
    %3807 = vmatpush.msra.mxu0 0.0
    %3808 = vmatpush.msra.mxu0 0.0
    %3809 = vmatpush.msra.mxu0 0.0
    %3810 = vmatpush.msra.mxu0 0.0
    %3811 = vmatpush.msra.mxu0 0.0
    %3812 = vmatpush.msra.mxu0 0.0
    %3813 = vmatpush.msra.mxu0 0.0
    %3814 = vmatpush.msra.mxu0 0.0
    %3815 = vmatpush.msra.mxu0 0.0
    %3816 = vmatpush.msra.mxu0 0.0
    %3817 = vmatpush.msra.mxu0 %v3794
    %3818 = vmatpush.msra.mxu0 %v3793
    %3819 = vmatpush.msra.mxu0 %v3792
    %3820 = vmatpush.msra.mxu0 %v3791
    %3821 = vmatmul.f32.gmra.mxu0 %v3800
    %v3822 = vpop.f32.mrf.mxu0
    %v3823 = vadd.f32 %v3797, %v3822
    %3824 = vmatmul.f32.gmra.mxu0 %v3803
    %v3825 = vpop.f32.mrf.mxu0
    %v3826 = vadd.f32 %v3797, %v3825
    %3827 = vdwg.mxu0
    %3828 = vst [vmem:[#allocation2] sm:$0xff] %v3823
    %3829 = vst [vmem:[#allocation2 + $0x8] sm:$0xff] %v3826
    // Predicated region
    $region62: #{gpt2_forward.1} parent=1 // pred_check
      _
    $region63: #{gpt2_forward.1} parent=1 // pred_check_branch
      %3831 = sbr.rel (0) target = $region65
    $region64: #{gpt2_forward.1} parent=1 // pred_region
      %3833 = vsyncadd [#allocation3], 0
      %s3834 = sshll.u32 [#allocation2], 4
      %s3835 = int_to_ptr.vmem [resolvable:$true] %s3834
      %s3836 = sshll.u32 %s15, 4
      %s3837 = int_to_ptr.hbm [resolvable:$true] %s3836
      %3842 = dma.vmem_to_hbm [thread:$0]  %s3835, 256, %s3837, [#allocation3], 128, 128, 8
    $region65: #{gpt2_forward.1} parent=1 // pred_fallthru
      _
    // Predicated region
    $region66: #{gpt2_forward.1} parent=1 // pred_check
      _
    $region67: #{gpt2_forward.1} parent=1 // pred_check_branch
      %3844 = sbr.rel (0) target = $region69
    $region68: #{gpt2_forward.1} parent=1 // pred_region
      %3846 = dma.done [#allocation3], 256
    $region69: #{gpt2_forward.1} parent=1 // pred_fallthru
      _
    %3847 = vsyncpa [#allocation3], 1

</llo_original>
